<compile_context>
chip_gen: v6e
topology: v6e:2x2x1
jax: 0.10.0
libtpu: 0.0.40
codegen_flags: <defaults>
</compile_context>

<pallas_src>
import functools
import math

import jax
import jax.numpy as jnp
from jax.experimental import pallas as pl
from jax.experimental.pallas import tpu as pltpu

LRELU_SLOPE = 0.1
CP = 128          # padded channel (lane) width used inside the fused kernel
HALO = 8          # zero halo rows above/below the live signal in the tap buffer
                  # (must exceed the max conv padding, which is 6 here)

# ------------------- small, deterministic HiFi-GAN config -------------------
CFG = dict(
    upsample_initial_channel=32,
    upsample_rates=(2, 2),
    upsample_kernel_sizes=(4, 4),
    resblock_kernel_sizes=(3, 5),
    resblock_dilation_sizes=((1, 3), (1, 3)),
)


def _leaky(x):
    return jnp.where(x >= 0, x, LRELU_SLOPE * x)


# ========================= fused Pallas forward kernel ========================
def _fused_vocoder_kernel(x_ref, w_ref, b_ref, o_ref, tap_ref, *, plan):
    h = HALO
    t = plan["t0"]

    # Zero only the halo bands that can hold stale data (previous grid step or
    # uninitialized scratch).  Must run every grid step: under "parallel"
    # semantics each TensorCore owns its own scratch buffer.
    zero_band = jnp.zeros((HALO, CP), tap_ref.dtype)
    for r0 in plan["zero_rows"]:
        tap_ref[pl.ds(r0, HALO), :] = zero_band

    def bias_row(idx):
        return b_ref[pl.ds(idx, 1), :]                          # (1, CP) f32

    def store_live(t_len, val):
        tap_ref[pl.ds(h, t_len), :] = val.astype(tap_ref.dtype)

    def conv_from_tap(t_len, spec):
        """One Conv1d over the live tap rows.

        packed mode: all K taps share ONE 128-lane contraction.  Tap j lives in
            lanes [j*cin, (j+1)*cin) of the im2col row, built with lane rolls of
            the shifted tap slices (lanes >= cin of each slice are exact zeros).
        multi mode: K accumulated depth-128 matmuls (only conv_pre needs it).
        """
        w_off, b_idx, k, dil, pad, cin, packed = spec
        start = h - pad
        if packed:
            xi = tap_ref[pl.ds(start, t_len), :]
            for j in range(1, k):
                sl = tap_ref[pl.ds(start + j * dil, t_len), :]
                xi = xi + pltpu.roll(sl, shift=j * cin, axis=1)
            acc = jnp.dot(xi.astype(jnp.bfloat16),
                          w_ref[pl.ds(w_off, CP), :],
                          preferred_element_type=jnp.float32)
        else:
            acc = jnp.dot(tap_ref[pl.ds(start, t_len), :].astype(jnp.bfloat16),
                          w_ref[pl.ds(w_off, CP), :],
                          preferred_element_type=jnp.float32)
            for j in range(1, k):
                acc = acc + jnp.dot(
                    tap_ref[pl.ds(start + j * dil, t_len), :].astype(jnp.bfloat16),
                    w_ref[pl.ds(w_off + j * CP, CP), :],
                    preferred_element_type=jnp.float32)
        return acc + bias_row(b_idx)

    # --- project_to_mel: 1x1 conv straight off the input block (Cin = 256) ---
    x_in = x_ref[0].astype(jnp.bfloat16)                        # (t0, Cin_feat)
    w_proj = w_ref[pl.ds(plan["proj_w_off"], plan["proj_rows"]), :]
    x = (jnp.dot(x_in, w_proj, preferred_element_type=jnp.float32)
         + bias_row(plan["proj_b_idx"]))                        # (t0, CP) f32

    # --- conv_pre (K=7, pad=3), no activation before it ---
    store_live(t, x)
    x = conv_from_tap(t, plan["conv_pre"])

    # --- upsample stages ---
    for st in plan["stages"]:
        # leaky_relu -> ConvTranspose1d(stride 2) as two polyphase K=2 convs.
        store_live(t, _leaky(x))
        even = conv_from_tap(t, st["up_even"])
        odd = conv_from_tap(t, st["up_odd"])
        # Interleave the phases with two strided sublane stores (rows 2m and
        # 2m+1) into the tap buffer, then read back the residual base.
        tap_ref[pl.ds(h, t, stride=2), :] = even.astype(tap_ref.dtype)
        tap_ref[pl.ds(h + 1, t, stride=2), :] = odd.astype(tap_ref.dtype)
        t = 2 * t
        x = tap_ref[pl.ds(h, t), :]                             # (2t, CP) f32

        # Fused resblocks: residual adds + xs-average stay in registers.
        xs = None
        for rb in st["resblocks"]:
            cur = x
            for c1_spec, c2_spec in rb:
                store_live(t, _leaky(cur))
                y = conv_from_tap(t, c1_spec)
                store_live(t, _leaky(y))
                y = conv_from_tap(t, c2_spec)
                cur = cur + y
            xs = cur if xs is None else xs + cur
        x = xs * (1.0 / len(st["resblocks"]))

    # --- leaky_relu -> conv_post (K=7) -> tanh; only lane 0 is a real channel ---
    store_live(t, _leaky(x))
    y = conv_from_tap(t, plan["conv_post"])
    # TODO(synk): for production T, repack the audio lane-dense in-kernel so the
    # HBM writeback is (T//128,128) instead of (T,128).
    o_ref[0] = jnp.tanh(y).astype(o_ref.dtype)


# =============== weight packing (tight im2col layout, bf16 slab) ==============
def _build_plan_and_pack(params):
    """Pack all conv weights into ONE bf16 (rows, CP) slab and all biases into
    ONE f32 (L, CP) slab; record static row offsets / conv geometry."""
    w_blocks, b_rows = [], []
    row = [0]

    def _push_w(blk):
        off = row[0]
        w_blocks.append(blk.astype(jnp.bfloat16))
        row[0] += blk.shape[0]
        return off

    def _push_b(b, cout):
        b_rows.append(jnp.pad(b, (0, CP - cout)))
        return len(b_rows) - 1

    def _pack_tight(taps, cout):
        # taps: list of (cin, cout) blocks -> one (CP, CP) block with tap j at
        # rows [j*cin, (j+1)*cin), matching the lane-rolled im2col row.
        cin = taps[0].shape[0]
        assert len(taps) * cin <= CP
        blk = jnp.concatenate(taps, axis=0)                     # (k*cin, cout)
        return jnp.pad(blk, ((0, CP - blk.shape[0]), (0, CP - cout)))

    def add_conv(name, dilation):
        w = params[name + "_w"]                                 # (Cout, Cin, K)
        cout, cin, k = w.shape
        assert cout <= CP
        pad = dilation * (k - 1) // 2
        assert pad < HALO
        bidx = _push_b(params[name + "_b"], cout)
        taps = [w[:, :, kk].T for kk in range(k)]               # (Cin, Cout)
        if k * cin <= CP:                                       # tight packing
            off = _push_w(_pack_tight(taps, cout))
            return (off, bidx, k, dilation, pad, cin, True)
        # conv_pre only: one (CP, CP) block per tap, K accumulated matmuls.
        assert cin <= CP
        blks = [jnp.pad(tp, ((0, CP - cin), (0, CP - cout))) for tp in taps]
        off = _push_w(jnp.concatenate(blks, axis=0))            # (k*CP, CP)
        return (off, bidx, k, dilation, pad, cin, False)

    def add_convT(name):
        # ConvTranspose1d(stride=2, K=4, padding=1) polyphase:
        #   out[2m]   = b + x[m-1]*W[:,:,3] + x[m]*W[:,:,1]   (K=2 conv, pad=1)
        #   out[2m+1] = b + x[m]*W[:,:,2]   + x[m+1]*W[:,:,0] (K=2 conv, pad=0)
        # TODO(synk): packing specialized to stride=2, K=4, padding=1.
        w = params[name + "_w"]                                 # (Cin, Cout, K)
        cin, cout, k = w.shape
        assert k == 4 and 2 * cin <= CP and cout <= CP
        bidx = _push_b(params[name + "_b"], cout)
        off_e = _push_w(_pack_tight([w[:, :, 3], w[:, :, 1]], cout))
        off_o = _push_w(_pack_tight([w[:, :, 2], w[:, :, 0]], cout))
        return ((off_e, bidx, 2, 1, 1, cin, True),
                (off_o, bidx, 2, 1, 0, cin, True))

    plan = {}

    # project_to_mel: Conv1d(256 -> 80, kernel_size=1); exact 256-deep matmul.
    wp = params["proj_w"]                                       # (80, 256, 1)
    cout_p, cin_p, _ = wp.shape
    assert cin_p % 8 == 0 and cout_p <= CP
    plan["proj_w_off"] = _push_w(jnp.pad(wp[:, :, 0].T, ((0, 0), (0, CP - cout_p))))
    plan["proj_b_idx"] = _push_b(params["proj_b"], cout_p)
    plan["proj_rows"] = cin_p

    plan["conv_pre"] = add_conv("conv_pre", 1)

    stages = []
    for i, _ in enumerate(zip(CFG["upsample_rates"],
                              CFG["upsample_kernel_sizes"])):
        up_even, up_odd = add_convT(f"ups{i}")
        rbs = []
        for j, (_krb, dils) in enumerate(zip(CFG["resblock_kernel_sizes"],
                                             CFG["resblock_dilation_sizes"])):
            pairs = []
            for n, d in enumerate(dils):
                pairs.append((add_conv(f"rb{i}_{j}_c1_{n}", d),
                              add_conv(f"rb{i}_{j}_c2_{n}", 1)))
            rbs.append(pairs)
        stages.append(dict(up_even=up_even, up_odd=up_odd, resblocks=rbs))
    plan["stages"] = stages

    plan["conv_post"] = add_conv("conv_post", 1)

    w_packed = jnp.concatenate(w_blocks, axis=0)                # bf16 (rows, CP)
    w_packed = jnp.pad(w_packed, ((0, (-w_packed.shape[0]) % 16), (0, 0)))
    b_packed = jnp.stack(b_rows, axis=0).astype(jnp.float32)    # f32 (L, CP)
    b_packed = jnp.pad(b_packed, ((0, (-b_packed.shape[0]) % 8), (0, 0)))
    return plan, w_packed, b_packed


# ============================ Pallas forward wrapper ==========================
def hifigan_vocoder_forward(params, modulated_content):
    """modulated_content: [B, 256, T'] (PyTorch NCT).  Returns [B, 1, T_audio]."""
    x = jnp.transpose(modulated_content, (0, 2, 1)).astype(jnp.float32)  # [B,T,C]
    batch, t0, c_feat = x.shape
    # TODO(synk): pad T' to a multiple of 8 in the wrapper instead of asserting.
    assert t0 % 8 == 0

    plan, w_packed, b_packed = _build_plan_and_pack(params)
    assert plan["proj_rows"] == c_feat
    plan["t0"] = t0

    # Live time extents at which convs read the tap buffer; the <=HALO rows just
    # past each extent (plus the lower halo) must be zero at every grid step.
    lengths, t_audio = [], t0
    lengths.append(t_audio)
    for u in CFG["upsample_rates"]:
        t_audio *= u
        lengths.append(t_audio)
    plan["zero_rows"] = tuple([0] + [HALO + L for L in lengths])

    tap_rows = t_audio + 2 * HALO

    out = pl.pallas_call(
        functools.partial(_fused_vocoder_kernel, plan=plan),
        out_shape=jax.ShapeDtypeStruct((batch, t_audio, CP), jnp.float32),
        grid_spec=pltpu.PrefetchScalarGridSpec(
            num_scalar_prefetch=0,
            grid=(batch,),
            in_specs=[
                pl.BlockSpec((1, t0, c_feat), lambda b: (b, 0, 0)),
                # weights/bias are grid-invariant -> single pipeline buffer
                pl.BlockSpec(w_packed.shape, lambda b: (0, 0),
                             pipeline_mode=pl.Buffered(1)),
                pl.BlockSpec(b_packed.shape, lambda b: (0, 0),
                             pipeline_mode=pl.Buffered(1)),
            ],
            out_specs=pl.BlockSpec((1, t_audio, CP), lambda b: (b, 0, 0)),
            scratch_shapes=[pltpu.VMEM((tap_rows, CP), jnp.float32)],
        ),
        compiler_params=pltpu.CompilerParams(
            dimension_semantics=("parallel",),   # batch shards over v7x's 2 TCs
            vmem_limit_bytes=32 * 1024 * 1024,
        ),
    )(x, w_packed, b_packed)

    # Only lane 0 of the output slab is a real audio channel.
    return jnp.transpose(out[:, :, :1], (0, 2, 1))              # [B, 1, T_audio]


# ======================= pure-jnp reference (unfused) =========================
def _conv1d_ref(x, w, b, *, padding=0, dilation=1):
    _, t, _ = x.shape
    cout, _, k = w.shape
    t_out = t + 2 * padding - dilation * (k - 1)
    xp = jnp.pad(x, ((0, 0), (padding, padding), (0, 0)))
    wk = jnp.transpose(w, (2, 1, 0))
    out = b.reshape(1, 1, cout)
    for kk in range(k):
        out = out + jnp.einsum(
            "btc,cd->btd", xp[:, kk * dilation:kk * dilation + t_out, :], wk[kk])
    return out


def _conv_transpose1d_ref(x, w, b, *, stride, padding):
    bsz, t, cin = x.shape
    _, _, k = w.shape
    t_up = (t - 1) * stride + 1
    xu = jnp.zeros((bsz, t_up, cin), x.dtype).at[:, ::stride, :].set(x)
    wc = jnp.flip(jnp.transpose(w, (1, 0, 2)), axis=2)
    return _conv1d_ref(xu, wc, b, padding=k - 1 - padding, dilation=1)


def hifigan_vocoder_forward_ref(params, modulated_content):
    x = jnp.transpose(modulated_content, (0, 2, 1))
    x = _conv1d_ref(x, params["proj_w"], params["proj_b"])
    x = _conv1d_ref(x, params["conv_pre_w"], params["conv_pre_b"], padding=3)
    nk = len(CFG["resblock_kernel_sizes"])
    for i, (u, ku) in enumerate(zip(CFG["upsample_rates"],
                                    CFG["upsample_kernel_sizes"])):
        x = _conv_transpose1d_ref(_leaky(x), params[f"ups{i}_w"],
                                  params[f"ups{i}_b"], stride=u,
                                  padding=(ku - u) // 2)
        xs = None
        for j, (krb, dils) in enumerate(zip(CFG["resblock_kernel_sizes"],
                                            CFG["resblock_dilation_sizes"])):
            cur = x
            for n, d in enumerate(dils):
                xt = _conv1d_ref(_leaky(cur), params[f"rb{i}_{j}_c1_{n}_w"],
                                 params[f"rb{i}_{j}_c1_{n}_b"],
                                 padding=(krb * d - d) // 2, dilation=d)
                xt = _conv1d_ref(_leaky(xt), params[f"rb{i}_{j}_c2_{n}_w"],
                                 params[f"rb{i}_{j}_c2_{n}_b"],
                                 padding=(krb - 1) // 2)
                cur = xt + cur
            xs = cur if xs is None else xs + cur
        x = xs / nk
    x = jnp.tanh(_conv1d_ref(_leaky(x), params["conv_post_w"],
                             params["conv_post_b"], padding=3))
    return jnp.transpose(x, (0, 2, 1))


# --------------------------- deterministic params ----------------------------
def init_params(key):
    params = {}

    def add_conv(name, cin, cout, k):
        nonlocal key
        key, kw, kb = jax.random.split(key, 3)
        bound = 1.0 / math.sqrt(cin * k)
        params[name + "_w"] = jax.random.uniform(kw, (cout, cin, k),
                                                 jnp.float32, -bound, bound)
        params[name + "_b"] = jax.random.uniform(kb, (cout,), jnp.float32,
                                                 -bound, bound)

    def add_convT(name, cin, cout, k):
        nonlocal key
        key, kw, kb = jax.random.split(key, 3)
        bound = 1.0 / math.sqrt(cin * k)
        params[name + "_w"] = jax.random.uniform(kw, (cin, cout, k),
                                                 jnp.float32, -bound, bound)
        params[name + "_b"] = jax.random.uniform(kb, (cout,), jnp.float32,
                                                 -bound, bound)

    c0 = CFG["upsample_initial_channel"]
    add_conv("proj", 256, 80, 1)          # project_to_mel
    add_conv("conv_pre", 80, c0, 7)
    ch = c0
    for i, (u, ku) in enumerate(zip(CFG["upsample_rates"],
                                    CFG["upsample_kernel_sizes"])):
        add_convT(f"ups{i}", ch, ch // 2, ku)
        ch = ch // 2
        for j, (krb, dils) in enumerate(zip(CFG["resblock_kernel_sizes"],
                                            CFG["resblock_dilation_sizes"])):
            for n, _d in enumerate(dils):
                add_conv(f"rb{i}_{j}_c1_{n}", ch, ch, krb)
                add_conv(f"rb{i}_{j}_c2_{n}", ch, ch, krb)
    add_conv("conv_post", ch, 1, 7)
    return params


# ------------------------------------ main -----------------------------------
if __name__ == "__main__":
    key = jax.random.PRNGKey(0)
    pkey, xkey = jax.random.split(key)
    params = init_params(pkey)

    B, C_FEAT, T_PRIME = 2, 256, 8
    modulated_content = jax.random.normal(xkey, (B, C_FEAT, T_PRIME), jnp.float32)

    fwd = jax.jit(hifigan_vocoder_forward)
    audio = jax.block_until_ready(fwd(params, modulated_content))

    t_audio = T_PRIME
    for u in CFG["upsample_rates"]:
        t_audio *= u
    assert audio.shape == (B, 1, t_audio), audio.shape

    # sanity check against a pure-jnp f32 implementation of the same math
    # (tolerance loosened because weights / matmul inputs are bf16 in-kernel).
    ref = hifigan_vocoder_forward_ref(params, modulated_content)
    err = float(jnp.max(jnp.abs(audio - ref)))
    assert err < 3e-2, f"max abs error {err}"

    print("KERNEL_OK")
</pallas_src>

<mosaic_0001>
module attributes {stable_mosaic.version = 11 : i64} {
  func.func @_fused_vocoder_kernel(%arg0: i32, %arg1: memref<1x8x256xf32, #tpu.memory_space<vmem>>, %arg2: memref<3840x128xbf16, #tpu.memory_space<vmem>>, %arg3: memref<24x128xf32, #tpu.memory_space<vmem>>, %arg4: memref<1x32x128xf32, #tpu.memory_space<vmem>>, %arg5: memref<48x128xf32, #tpu.memory_space<vmem>>) attributes {dimension_semantics = [#tpu.dimension_semantics<parallel>], iteration_bounds = array<i64: 2>, scalar_prefetch = 0 : i64, scratch_operands = 1 : i64, tpu.core_type = #tpu.core_type<tc>, window_params = [{transform_indices = @transform_0, window_bounds = array<i64: 1, 8, 256>}, {pipeline_mode = #tpu.pipeline_mode<synchronous>, transform_indices = @transform_1, window_bounds = array<i64: 3840, 128>}, {pipeline_mode = #tpu.pipeline_mode<synchronous>, transform_indices = @transform_2, window_bounds = array<i64: 24, 128>}, {transform_indices = @transform_3, window_bounds = array<i64: 1, 32, 128>}]} {
    %cst = arith.constant 0.000000e+00 : f32
    %0 = vector.broadcast %cst : f32 to vector<8x128xf32>
    %c0 = arith.constant 0 : index
    %c0_0 = arith.constant 0 : index
    %1 = vector.load %arg5[%c0, %c0_0] : memref<48x128xf32, #tpu.memory_space<vmem>>, vector<8x128xf32>
    tpu.vector_store %arg5[%c0, %c0_0], %0 {strides = array<i32>} : memref<48x128xf32, #tpu.memory_space<vmem>>, vector<8x128xf32>,
    %c16 = arith.constant 16 : index
    %c0_1 = arith.constant 0 : index
    %2 = vector.load %arg5[%c16, %c0_1] : memref<48x128xf32, #tpu.memory_space<vmem>>, vector<8x128xf32>
    tpu.vector_store %arg5[%c16, %c0_1], %0 {strides = array<i32>} : memref<48x128xf32, #tpu.memory_space<vmem>>, vector<8x128xf32>,
    %c24 = arith.constant 24 : index
    %c0_2 = arith.constant 0 : index
    %3 = vector.load %arg5[%c24, %c0_2] : memref<48x128xf32, #tpu.memory_space<vmem>>, vector<8x128xf32>
    tpu.vector_store %arg5[%c24, %c0_2], %0 {strides = array<i32>} : memref<48x128xf32, #tpu.memory_space<vmem>>, vector<8x128xf32>,
    %c40 = arith.constant 40 : index
    %c0_3 = arith.constant 0 : index
    %4 = vector.load %arg5[%c40, %c0_3] : memref<48x128xf32, #tpu.memory_space<vmem>>, vector<8x128xf32>
    tpu.vector_store %arg5[%c40, %c0_3], %0 {strides = array<i32>} : memref<48x128xf32, #tpu.memory_space<vmem>>, vector<8x128xf32>,
    %c0_4 = arith.constant 0 : index
    %c0_5 = arith.constant 0 : index
    %c0_6 = arith.constant 0 : index
    %5 = vector.load %arg1[%c0_4, %c0_5, %c0_6] : memref<1x8x256xf32, #tpu.memory_space<vmem>>, vector<1x8x256xf32>
    %6 = vector.shape_cast %5 : vector<1x8x256xf32> to vector<8x256xf32>
    %7 = arith.truncf %6 : vector<8x256xf32> to vector<8x256xbf16>
    %c0_7 = arith.constant 0 : index
    %c0_8 = arith.constant 0 : index
    %8 = vector.load %arg2[%c0_7, %c0_8] : memref<3840x128xbf16, #tpu.memory_space<vmem>>, vector<256x128xbf16>
    %cst_9 = arith.constant dense<0.000000e+00> : vector<8x128xf32>
    %9 = tpu.matmul %7, %8, %cst_9 {dimension_numbers = #tpu.dot_dimension_numbers<[1], [0], [0], [1], [0, 0, 1, 1], [], []>} : vector<8x256xbf16>, vector<256x128xbf16>, vector<8x128xf32> -> vector<8x128xf32>
    %c0_10 = arith.constant 0 : index
    %c0_11 = arith.constant 0 : index
    %10 = vector.load %arg3[%c0_10, %c0_11] : memref<24x128xf32, #tpu.memory_space<vmem>>, vector<1x128xf32>
    %11 = vector.broadcast %10 : vector<1x128xf32> to vector<8x128xf32>
    %12 = arith.addf %9, %11 : vector<8x128xf32>
    %c8 = arith.constant 8 : index
    %c0_12 = arith.constant 0 : index
    %13 = vector.load %arg5[%c8, %c0_12] : memref<48x128xf32, #tpu.memory_space<vmem>>, vector<8x128xf32>
    tpu.vector_store %arg5[%c8, %c0_12], %12 {strides = array<i32>} : memref<48x128xf32, #tpu.memory_space<vmem>>, vector<8x128xf32>,
    %c5 = arith.constant 5 : index
    %c0_13 = arith.constant 0 : index
    %14 = vector.load %arg5[%c5, %c0_13] : memref<48x128xf32, #tpu.memory_space<vmem>>, vector<8x128xf32>
    %15 = arith.truncf %14 : vector<8x128xf32> to vector<8x128xbf16>
    %c256 = arith.constant 256 : index
    %c0_14 = arith.constant 0 : index
    %16 = vector.load %arg2[%c256, %c0_14] : memref<3840x128xbf16, #tpu.memory_space<vmem>>, vector<128x128xbf16>
    %cst_15 = arith.constant dense<0.000000e+00> : vector<8x128xf32>
    %17 = tpu.matmul %15, %16, %cst_15 {dimension_numbers = #tpu.dot_dimension_numbers<[1], [0], [0], [1], [0, 0, 1, 1], [], []>} : vector<8x128xbf16>, vector<128x128xbf16>, vector<8x128xf32> -> vector<8x128xf32>
    %c6 = arith.constant 6 : index
    %c0_16 = arith.constant 0 : index
    %18 = vector.load %arg5[%c6, %c0_16] : memref<48x128xf32, #tpu.memory_space<vmem>>, vector<8x128xf32>
    %19 = arith.truncf %18 : vector<8x128xf32> to vector<8x128xbf16>
    %c384 = arith.constant 384 : index
    %c0_17 = arith.constant 0 : index
    %20 = vector.load %arg2[%c384, %c0_17] : memref<3840x128xbf16, #tpu.memory_space<vmem>>, vector<128x128xbf16>
    %cst_18 = arith.constant dense<0.000000e+00> : vector<8x128xf32>
    %21 = tpu.matmul %19, %20, %cst_18 {dimension_numbers = #tpu.dot_dimension_numbers<[1], [0], [0], [1], [0, 0, 1, 1], [], []>} : vector<8x128xbf16>, vector<128x128xbf16>, vector<8x128xf32> -> vector<8x128xf32>
    %22 = arith.addf %17, %21 : vector<8x128xf32>
    %c7 = arith.constant 7 : index
    %c0_19 = arith.constant 0 : index
    %23 = vector.load %arg5[%c7, %c0_19] : memref<48x128xf32, #tpu.memory_space<vmem>>, vector<8x128xf32>
    %24 = arith.truncf %23 : vector<8x128xf32> to vector<8x128xbf16>
    %c512 = arith.constant 512 : index
    %c0_20 = arith.constant 0 : index
    %25 = vector.load %arg2[%c512, %c0_20] : memref<3840x128xbf16, #tpu.memory_space<vmem>>, vector<128x128xbf16>
    %cst_21 = arith.constant dense<0.000000e+00> : vector<8x128xf32>
    %26 = tpu.matmul %24, %25, %cst_21 {dimension_numbers = #tpu.dot_dimension_numbers<[1], [0], [0], [1], [0, 0, 1, 1], [], []>} : vector<8x128xbf16>, vector<128x128xbf16>, vector<8x128xf32> -> vector<8x128xf32>
    %27 = arith.addf %22, %26 : vector<8x128xf32>
    %c8_22 = arith.constant 8 : index
    %c0_23 = arith.constant 0 : index
    %28 = vector.load %arg5[%c8_22, %c0_23] : memref<48x128xf32, #tpu.memory_space<vmem>>, vector<8x128xf32>
    %29 = arith.truncf %28 : vector<8x128xf32> to vector<8x128xbf16>
    %c640 = arith.constant 640 : index
    %c0_24 = arith.constant 0 : index
    %30 = vector.load %arg2[%c640, %c0_24] : memref<3840x128xbf16, #tpu.memory_space<vmem>>, vector<128x128xbf16>
    %cst_25 = arith.constant dense<0.000000e+00> : vector<8x128xf32>
    %31 = tpu.matmul %29, %30, %cst_25 {dimension_numbers = #tpu.dot_dimension_numbers<[1], [0], [0], [1], [0, 0, 1, 1], [], []>} : vector<8x128xbf16>, vector<128x128xbf16>, vector<8x128xf32> -> vector<8x128xf32>
    %32 = arith.addf %27, %31 : vector<8x128xf32>
    %c9 = arith.constant 9 : index
    %c0_26 = arith.constant 0 : index
    %33 = vector.load %arg5[%c9, %c0_26] : memref<48x128xf32, #tpu.memory_space<vmem>>, vector<8x128xf32>
    %34 = arith.truncf %33 : vector<8x128xf32> to vector<8x128xbf16>
    %c768 = arith.constant 768 : index
    %c0_27 = arith.constant 0 : index
    %35 = vector.load %arg2[%c768, %c0_27] : memref<3840x128xbf16, #tpu.memory_space<vmem>>, vector<128x128xbf16>
    %cst_28 = arith.constant dense<0.000000e+00> : vector<8x128xf32>
    %36 = tpu.matmul %34, %35, %cst_28 {dimension_numbers = #tpu.dot_dimension_numbers<[1], [0], [0], [1], [0, 0, 1, 1], [], []>} : vector<8x128xbf16>, vector<128x128xbf16>, vector<8x128xf32> -> vector<8x128xf32>
    %37 = arith.addf %32, %36 : vector<8x128xf32>
    %c10 = arith.constant 10 : index
    %c0_29 = arith.constant 0 : index
    %38 = vector.load %arg5[%c10, %c0_29] : memref<48x128xf32, #tpu.memory_space<vmem>>, vector<8x128xf32>
    %39 = arith.truncf %38 : vector<8x128xf32> to vector<8x128xbf16>
    %c896 = arith.constant 896 : index
    %c0_30 = arith.constant 0 : index
    %40 = vector.load %arg2[%c896, %c0_30] : memref<3840x128xbf16, #tpu.memory_space<vmem>>, vector<128x128xbf16>
    %cst_31 = arith.constant dense<0.000000e+00> : vector<8x128xf32>
    %41 = tpu.matmul %39, %40, %cst_31 {dimension_numbers = #tpu.dot_dimension_numbers<[1], [0], [0], [1], [0, 0, 1, 1], [], []>} : vector<8x128xbf16>, vector<128x128xbf16>, vector<8x128xf32> -> vector<8x128xf32>
    %42 = arith.addf %37, %41 : vector<8x128xf32>
    %c11 = arith.constant 11 : index
    %c0_32 = arith.constant 0 : index
    %43 = vector.load %arg5[%c11, %c0_32] : memref<48x128xf32, #tpu.memory_space<vmem>>, vector<8x128xf32>
    %44 = arith.truncf %43 : vector<8x128xf32> to vector<8x128xbf16>
    %c1024 = arith.constant 1024 : index
    %c0_33 = arith.constant 0 : index
    %45 = vector.load %arg2[%c1024, %c0_33] : memref<3840x128xbf16, #tpu.memory_space<vmem>>, vector<128x128xbf16>
    %cst_34 = arith.constant dense<0.000000e+00> : vector<8x128xf32>
    %46 = tpu.matmul %44, %45, %cst_34 {dimension_numbers = #tpu.dot_dimension_numbers<[1], [0], [0], [1], [0, 0, 1, 1], [], []>} : vector<8x128xbf16>, vector<128x128xbf16>, vector<8x128xf32> -> vector<8x128xf32>
    %47 = arith.addf %42, %46 : vector<8x128xf32>
    %c1 = arith.constant 1 : index
    %c0_35 = arith.constant 0 : index
    %48 = vector.load %arg3[%c1, %c0_35] : memref<24x128xf32, #tpu.memory_space<vmem>>, vector<1x128xf32>
    %49 = vector.broadcast %48 : vector<1x128xf32> to vector<8x128xf32>
    %50 = arith.addf %47, %49 : vector<8x128xf32>
    %cst_36 = arith.constant 0.000000e+00 : f32
    %51 = vector.broadcast %cst_36 : f32 to vector<8x128xf32>
    %52 = arith.cmpf oge, %50, %51 : vector<8x128xf32>
    %cst_37 = arith.constant 1.000000e-01 : f32
    %53 = vector.broadcast %cst_37 : f32 to vector<8x128xf32>
    %54 = arith.mulf %53, %50 : vector<8x128xf32>
    %55 = arith.select %52, %50, %54 : vector<8x128xi1>, vector<8x128xf32>
    %c8_38 = arith.constant 8 : index
    %c0_39 = arith.constant 0 : index
    %56 = vector.load %arg5[%c8_38, %c0_39] : memref<48x128xf32, #tpu.memory_space<vmem>>, vector<8x128xf32>
    tpu.vector_store %arg5[%c8_38, %c0_39], %55 {strides = array<i32>} : memref<48x128xf32, #tpu.memory_space<vmem>>, vector<8x128xf32>,
    %c7_40 = arith.constant 7 : index
    %c0_41 = arith.constant 0 : index
    %57 = vector.load %arg5[%c7_40, %c0_41] : memref<48x128xf32, #tpu.memory_space<vmem>>, vector<8x128xf32>
    %c8_42 = arith.constant 8 : index
    %c0_43 = arith.constant 0 : index
    %58 = vector.load %arg5[%c8_42, %c0_43] : memref<48x128xf32, #tpu.memory_space<vmem>>, vector<8x128xf32>
    %c32_i32 = arith.constant 32 : i32
    %59 = tpu.dynamic_rotate %58 by %c32_i32 dim 1 : vector<8x128xf32>, i32 -> vector<8x128xf32>
    %60 = arith.addf %57, %59 : vector<8x128xf32>
    %61 = arith.truncf %60 : vector<8x128xf32> to vector<8x128xbf16>
    %c1152 = arith.constant 1152 : index
    %c0_44 = arith.constant 0 : index
    %62 = vector.load %arg2[%c1152, %c0_44] : memref<3840x128xbf16, #tpu.memory_space<vmem>>, vector<128x128xbf16>
    %cst_45 = arith.constant dense<0.000000e+00> : vector<8x128xf32>
    %63 = tpu.matmul %61, %62, %cst_45 {dimension_numbers = #tpu.dot_dimension_numbers<[1], [0], [0], [1], [0, 0, 1, 1], [], []>} : vector<8x128xbf16>, vector<128x128xbf16>, vector<8x128xf32> -> vector<8x128xf32>
    %c2 = arith.constant 2 : index
    %c0_46 = arith.constant 0 : index
    %64 = vector.load %arg3[%c2, %c0_46] : memref<24x128xf32, #tpu.memory_space<vmem>>, vector<1x128xf32>
    %65 = vector.broadcast %64 : vector<1x128xf32> to vector<8x128xf32>
    %66 = arith.addf %63, %65 : vector<8x128xf32>
    %c8_47 = arith.constant 8 : index
    %c0_48 = arith.constant 0 : index
    %67 = vector.load %arg5[%c8_47, %c0_48] : memref<48x128xf32, #tpu.memory_space<vmem>>, vector<8x128xf32>
    %c9_49 = arith.constant 9 : index
    %c0_50 = arith.constant 0 : index
    %68 = vector.load %arg5[%c9_49, %c0_50] : memref<48x128xf32, #tpu.memory_space<vmem>>, vector<8x128xf32>
    %c32_i32_51 = arith.constant 32 : i32
    %69 = tpu.dynamic_rotate %68 by %c32_i32_51 dim 1 : vector<8x128xf32>, i32 -> vector<8x128xf32>
    %70 = arith.addf %67, %69 : vector<8x128xf32>
    %71 = arith.truncf %70 : vector<8x128xf32> to vector<8x128xbf16>
    %c1280 = arith.constant 1280 : index
    %c0_52 = arith.constant 0 : index
    %72 = vector.load %arg2[%c1280, %c0_52] : memref<3840x128xbf16, #tpu.memory_space<vmem>>, vector<128x128xbf16>
    %cst_53 = arith.constant dense<0.000000e+00> : vector<8x128xf32>
    %73 = tpu.matmul %71, %72, %cst_53 {dimension_numbers = #tpu.dot_dimension_numbers<[1], [0], [0], [1], [0, 0, 1, 1], [], []>} : vector<8x128xbf16>, vector<128x128xbf16>, vector<8x128xf32> -> vector<8x128xf32>
    %c2_54 = arith.constant 2 : index
    %c0_55 = arith.constant 0 : index
    %74 = vector.load %arg3[%c2_54, %c0_55] : memref<24x128xf32, #tpu.memory_space<vmem>>, vector<1x128xf32>
    %75 = vector.broadcast %74 : vector<1x128xf32> to vector<8x128xf32>
    %76 = arith.addf %73, %75 : vector<8x128xf32>
    %c8_56 = arith.constant 8 : index
    %c0_57 = arith.constant 0 : index
    %77 = tpu.strided_load %arg5[%c8_56, %c0_57] {strides = array<i32: 2, 1>} : memref<48x128xf32, #tpu.memory_space<vmem>>, vector<8x128xf32>
    tpu.strided_store %arg5[%c8_56, %c0_57], %66 {strides = array<i32: 2, 1>} : memref<48x128xf32, #tpu.memory_space<vmem>>, vector<8x128xf32>
    %c9_58 = arith.constant 9 : index
    %c0_59 = arith.constant 0 : index
    %78 = tpu.strided_load %arg5[%c9_58, %c0_59] {strides = array<i32: 2, 1>} : memref<48x128xf32, #tpu.memory_space<vmem>>, vector<8x128xf32>
    tpu.strided_store %arg5[%c9_58, %c0_59], %76 {strides = array<i32: 2, 1>} : memref<48x128xf32, #tpu.memory_space<vmem>>, vector<8x128xf32>
    %c8_60 = arith.constant 8 : index
    %c0_61 = arith.constant 0 : index
    %79 = vector.load %arg5[%c8_60, %c0_61] : memref<48x128xf32, #tpu.memory_space<vmem>>, vector<16x128xf32>
    %cst_62 = arith.constant 0.000000e+00 : f32
    %80 = vector.broadcast %cst_62 : f32 to vector<16x128xf32>
    %81 = arith.cmpf oge, %79, %80 : vector<16x128xf32>
    %cst_63 = arith.constant 1.000000e-01 : f32
    %82 = vector.broadcast %cst_63 : f32 to vector<16x128xf32>
    %83 = arith.mulf %82, %79 : vector<16x128xf32>
    %84 = arith.select %81, %79, %83 : vector<16x128xi1>, vector<16x128xf32>
    %c8_64 = arith.constant 8 : index
    %c0_65 = arith.constant 0 : index
    %85 = vector.load %arg5[%c8_64, %c0_65] : memref<48x128xf32, #tpu.memory_space<vmem>>, vector<16x128xf32>
    tpu.vector_store %arg5[%c8_64, %c0_65], %84 {strides = array<i32>} : memref<48x128xf32, #tpu.memory_space<vmem>>, vector<16x128xf32>,
    %c7_66 = arith.constant 7 : index
    %c0_67 = arith.constant 0 : index
    %86 = vector.load %arg5[%c7_66, %c0_67] : memref<48x128xf32, #tpu.memory_space<vmem>>, vector<16x128xf32>
    %c8_68 = arith.constant 8 : index
    %c0_69 = arith.constant 0 : index
    %87 = vector.load %arg5[%c8_68, %c0_69] : memref<48x128xf32, #tpu.memory_space<vmem>>, vector<16x128xf32>
    %c16_i32 = arith.constant 16 : i32
    %88 = tpu.dynamic_rotate %87 by %c16_i32 dim 1 : vector<16x128xf32>, i32 -> vector<16x128xf32>
    %89 = arith.addf %86, %88 : vector<16x128xf32>
    %c9_70 = arith.constant 9 : index
    %c0_71 = arith.constant 0 : index
    %90 = vector.load %arg5[%c9_70, %c0_71] : memref<48x128xf32, #tpu.memory_space<vmem>>, vector<16x128xf32>
    %c32_i32_72 = arith.constant 32 : i32
    %91 = tpu.dynamic_rotate %90 by %c32_i32_72 dim 1 : vector<16x128xf32>, i32 -> vector<16x128xf32>
    %92 = arith.addf %89, %91 : vector<16x128xf32>
    %93 = arith.truncf %92 : vector<16x128xf32> to vector<16x128xbf16>
    %c1408 = arith.constant 1408 : index
    %c0_73 = arith.constant 0 : index
    %94 = vector.load %arg2[%c1408, %c0_73] : memref<3840x128xbf16, #tpu.memory_space<vmem>>, vector<128x128xbf16>
    %cst_74 = arith.constant dense<0.000000e+00> : vector<16x128xf32>
    %95 = tpu.matmul %93, %94, %cst_74 {dimension_numbers = #tpu.dot_dimension_numbers<[1], [0], [0], [1], [0, 0, 1, 1], [], []>} : vector<16x128xbf16>, vector<128x128xbf16>, vector<16x128xf32> -> vector<16x128xf32>
    %c3 = arith.constant 3 : index
    %c0_75 = arith.constant 0 : index
    %96 = vector.load %arg3[%c3, %c0_75] : memref<24x128xf32, #tpu.memory_space<vmem>>, vector<1x128xf32>
    %97 = vector.broadcast %96 : vector<1x128xf32> to vector<16x128xf32>
    %98 = arith.addf %95, %97 : vector<16x128xf32>
    %cst_76 = arith.constant 0.000000e+00 : f32
    %99 = vector.broadcast %cst_76 : f32 to vector<16x128xf32>
    %100 = arith.cmpf oge, %98, %99 : vector<16x128xf32>
    %cst_77 = arith.constant 1.000000e-01 : f32
    %101 = vector.broadcast %cst_77 : f32 to vector<16x128xf32>
    %102 = arith.mulf %101, %98 : vector<16x128xf32>
    %103 = arith.select %100, %98, %102 : vector<16x128xi1>, vector<16x128xf32>
    %c8_78 = arith.constant 8 : index
    %c0_79 = arith.constant 0 : index
    %104 = vector.load %arg5[%c8_78, %c0_79] : memref<48x128xf32, #tpu.memory_space<vmem>>, vector<16x128xf32>
    tpu.vector_store %arg5[%c8_78, %c0_79], %103 {strides = array<i32>} : memref<48x128xf32, #tpu.memory_space<vmem>>, vector<16x128xf32>,
    %c7_80 = arith.constant 7 : index
    %c0_81 = arith.constant 0 : index
    %105 = vector.load %arg5[%c7_80, %c0_81] : memref<48x128xf32, #tpu.memory_space<vmem>>, vector<16x128xf32>
    %c8_82 = arith.constant 8 : index
    %c0_83 = arith.constant 0 : index
    %106 = vector.load %arg5[%c8_82, %c0_83] : memref<48x128xf32, #tpu.memory_space<vmem>>, vector<16x128xf32>
    %c16_i32_84 = arith.constant 16 : i32
    %107 = tpu.dynamic_rotate %106 by %c16_i32_84 dim 1 : vector<16x128xf32>, i32 -> vector<16x128xf32>
    %108 = arith.addf %105, %107 : vector<16x128xf32>
    %c9_85 = arith.constant 9 : index
    %c0_86 = arith.constant 0 : index
    %109 = vector.load %arg5[%c9_85, %c0_86] : memref<48x128xf32, #tpu.memory_space<vmem>>, vector<16x128xf32>
    %c32_i32_87 = arith.constant 32 : i32
    %110 = tpu.dynamic_rotate %109 by %c32_i32_87 dim 1 : vector<16x128xf32>, i32 -> vector<16x128xf32>
    %111 = arith.addf %108, %110 : vector<16x128xf32>
    %112 = arith.truncf %111 : vector<16x128xf32> to vector<16x128xbf16>
    %c1536 = arith.constant 1536 : index
    %c0_88 = arith.constant 0 : index
    %113 = vector.load %arg2[%c1536, %c0_88] : memref<3840x128xbf16, #tpu.memory_space<vmem>>, vector<128x128xbf16>
    %cst_89 = arith.constant dense<0.000000e+00> : vector<16x128xf32>
    %114 = tpu.matmul %112, %113, %cst_89 {dimension_numbers = #tpu.dot_dimension_numbers<[1], [0], [0], [1], [0, 0, 1, 1], [], []>} : vector<16x128xbf16>, vector<128x128xbf16>, vector<16x128xf32> -> vector<16x128xf32>
    %c4 = arith.constant 4 : index
    %c0_90 = arith.constant 0 : index
    %115 = vector.load %arg3[%c4, %c0_90] : memref<24x128xf32, #tpu.memory_space<vmem>>, vector<1x128xf32>
    %116 = vector.broadcast %115 : vector<1x128xf32> to vector<16x128xf32>
    %117 = arith.addf %114, %116 : vector<16x128xf32>
    %118 = arith.addf %79, %117 : vector<16x128xf32>
    %cst_91 = arith.constant 0.000000e+00 : f32
    %119 = vector.broadcast %cst_91 : f32 to vector<16x128xf32>
    %120 = arith.cmpf oge, %118, %119 : vector<16x128xf32>
    %cst_92 = arith.constant 1.000000e-01 : f32
    %121 = vector.broadcast %cst_92 : f32 to vector<16x128xf32>
    %122 = arith.mulf %121, %118 : vector<16x128xf32>
    %123 = arith.select %120, %118, %122 : vector<16x128xi1>, vector<16x128xf32>
    %c8_93 = arith.constant 8 : index
    %c0_94 = arith.constant 0 : index
    %124 = vector.load %arg5[%c8_93, %c0_94] : memref<48x128xf32, #tpu.memory_space<vmem>>, vector<16x128xf32>
    tpu.vector_store %arg5[%c8_93, %c0_94], %123 {strides = array<i32>} : memref<48x128xf32, #tpu.memory_space<vmem>>, vector<16x128xf32>,
    %c5_95 = arith.constant 5 : index
    %c0_96 = arith.constant 0 : index
    %125 = vector.load %arg5[%c5_95, %c0_96] : memref<48x128xf32, #tpu.memory_space<vmem>>, vector<16x128xf32>
    %c8_97 = arith.constant 8 : index
    %c0_98 = arith.constant 0 : index
    %126 = vector.load %arg5[%c8_97, %c0_98] : memref<48x128xf32, #tpu.memory_space<vmem>>, vector<16x128xf32>
    %c16_i32_99 = arith.constant 16 : i32
    %127 = tpu.dynamic_rotate %126 by %c16_i32_99 dim 1 : vector<16x128xf32>, i32 -> vector<16x128xf32>
    %128 = arith.addf %125, %127 : vector<16x128xf32>
    %c11_100 = arith.constant 11 : index
    %c0_101 = arith.constant 0 : index
    %129 = vector.load %arg5[%c11_100, %c0_101] : memref<48x128xf32, #tpu.memory_space<vmem>>, vector<16x128xf32>
    %c32_i32_102 = arith.constant 32 : i32
    %130 = tpu.dynamic_rotate %129 by %c32_i32_102 dim 1 : vector<16x128xf32>, i32 -> vector<16x128xf32>
    %131 = arith.addf %128, %130 : vector<16x128xf32>
    %132 = arith.truncf %131 : vector<16x128xf32> to vector<16x128xbf16>
    %c1664 = arith.constant 1664 : index
    %c0_103 = arith.constant 0 : index
    %133 = vector.load %arg2[%c1664, %c0_103] : memref<3840x128xbf16, #tpu.memory_space<vmem>>, vector<128x128xbf16>
    %cst_104 = arith.constant dense<0.000000e+00> : vector<16x128xf32>
    %134 = tpu.matmul %132, %133, %cst_104 {dimension_numbers = #tpu.dot_dimension_numbers<[1], [0], [0], [1], [0, 0, 1, 1], [], []>} : vector<16x128xbf16>, vector<128x128xbf16>, vector<16x128xf32> -> vector<16x128xf32>
    %c5_105 = arith.constant 5 : index
    %c0_106 = arith.constant 0 : index
    %135 = vector.load %arg3[%c5_105, %c0_106] : memref<24x128xf32, #tpu.memory_space<vmem>>, vector<1x128xf32>
    %136 = vector.broadcast %135 : vector<1x128xf32> to vector<16x128xf32>
    %137 = arith.addf %134, %136 : vector<16x128xf32>
    %cst_107 = arith.constant 0.000000e+00 : f32
    %138 = vector.broadcast %cst_107 : f32 to vector<16x128xf32>
    %139 = arith.cmpf oge, %137, %138 : vector<16x128xf32>
    %cst_108 = arith.constant 1.000000e-01 : f32
    %140 = vector.broadcast %cst_108 : f32 to vector<16x128xf32>
    %141 = arith.mulf %140, %137 : vector<16x128xf32>
    %142 = arith.select %139, %137, %141 : vector<16x128xi1>, vector<16x128xf32>
    %c8_109 = arith.constant 8 : index
    %c0_110 = arith.constant 0 : index
    %143 = vector.load %arg5[%c8_109, %c0_110] : memref<48x128xf32, #tpu.memory_space<vmem>>, vector<16x128xf32>
    tpu.vector_store %arg5[%c8_109, %c0_110], %142 {strides = array<i32>} : memref<48x128xf32, #tpu.memory_space<vmem>>, vector<16x128xf32>,
    %c7_111 = arith.constant 7 : index
    %c0_112 = arith.constant 0 : index
    %144 = vector.load %arg5[%c7_111, %c0_112] : memref<48x128xf32, #tpu.memory_space<vmem>>, vector<16x128xf32>
    %c8_113 = arith.constant 8 : index
    %c0_114 = arith.constant 0 : index
    %145 = vector.load %arg5[%c8_113, %c0_114] : memref<48x128xf32, #tpu.memory_space<vmem>>, vector<16x128xf32>
    %c16_i32_115 = arith.constant 16 : i32
    %146 = tpu.dynamic_rotate %145 by %c16_i32_115 dim 1 : vector<16x128xf32>, i32 -> vector<16x128xf32>
    %147 = arith.addf %144, %146 : vector<16x128xf32>
    %c9_116 = arith.constant 9 : index
    %c0_117 = arith.constant 0 : index
    %148 = vector.load %arg5[%c9_116, %c0_117] : memref<48x128xf32, #tpu.memory_space<vmem>>, vector<16x128xf32>
    %c32_i32_118 = arith.constant 32 : i32
    %149 = tpu.dynamic_rotate %148 by %c32_i32_118 dim 1 : vector<16x128xf32>, i32 -> vector<16x128xf32>
    %150 = arith.addf %147, %149 : vector<16x128xf32>
    %151 = arith.truncf %150 : vector<16x128xf32> to vector<16x128xbf16>
    %c1792 = arith.constant 1792 : index
    %c0_119 = arith.constant 0 : index
    %152 = vector.load %arg2[%c1792, %c0_119] : memref<3840x128xbf16, #tpu.memory_space<vmem>>, vector<128x128xbf16>
    %cst_120 = arith.constant dense<0.000000e+00> : vector<16x128xf32>
    %153 = tpu.matmul %151, %152, %cst_120 {dimension_numbers = #tpu.dot_dimension_numbers<[1], [0], [0], [1], [0, 0, 1, 1], [], []>} : vector<16x128xbf16>, vector<128x128xbf16>, vector<16x128xf32> -> vector<16x128xf32>
    %c6_121 = arith.constant 6 : index
    %c0_122 = arith.constant 0 : index
    %154 = vector.load %arg3[%c6_121, %c0_122] : memref<24x128xf32, #tpu.memory_space<vmem>>, vector<1x128xf32>
    %155 = vector.broadcast %154 : vector<1x128xf32> to vector<16x128xf32>
    %156 = arith.addf %153, %155 : vector<16x128xf32>
    %157 = arith.addf %118, %156 : vector<16x128xf32>
    %cst_123 = arith.constant 0.000000e+00 : f32
    %158 = vector.broadcast %cst_123 : f32 to vector<16x128xf32>
    %159 = arith.cmpf oge, %79, %158 : vector<16x128xf32>
    %cst_124 = arith.constant 1.000000e-01 : f32
    %160 = vector.broadcast %cst_124 : f32 to vector<16x128xf32>
    %161 = arith.mulf %160, %79 : vector<16x128xf32>
    %162 = arith.select %159, %79, %161 : vector<16x128xi1>, vector<16x128xf32>
    %c8_125 = arith.constant 8 : index
    %c0_126 = arith.constant 0 : index
    %163 = vector.load %arg5[%c8_125, %c0_126] : memref<48x128xf32, #tpu.memory_space<vmem>>, vector<16x128xf32>
    tpu.vector_store %arg5[%c8_125, %c0_126], %162 {strides = array<i32>} : memref<48x128xf32, #tpu.memory_space<vmem>>, vector<16x128xf32>,
    %c6_127 = arith.constant 6 : index
    %c0_128 = arith.constant 0 : index
    %164 = vector.load %arg5[%c6_127, %c0_128] : memref<48x128xf32, #tpu.memory_space<vmem>>, vector<16x128xf32>
    %c7_129 = arith.constant 7 : index
    %c0_130 = arith.constant 0 : index
    %165 = vector.load %arg5[%c7_129, %c0_130] : memref<48x128xf32, #tpu.memory_space<vmem>>, vector<16x128xf32>
    %c16_i32_131 = arith.constant 16 : i32
    %166 = tpu.dynamic_rotate %165 by %c16_i32_131 dim 1 : vector<16x128xf32>, i32 -> vector<16x128xf32>
    %167 = arith.addf %164, %166 : vector<16x128xf32>
    %c8_132 = arith.constant 8 : index
    %c0_133 = arith.constant 0 : index
    %168 = vector.load %arg5[%c8_132, %c0_133] : memref<48x128xf32, #tpu.memory_space<vmem>>, vector<16x128xf32>
    %c32_i32_134 = arith.constant 32 : i32
    %169 = tpu.dynamic_rotate %168 by %c32_i32_134 dim 1 : vector<16x128xf32>, i32 -> vector<16x128xf32>
    %170 = arith.addf %167, %169 : vector<16x128xf32>
    %c9_135 = arith.constant 9 : index
    %c0_136 = arith.constant 0 : index
    %171 = vector.load %arg5[%c9_135, %c0_136] : memref<48x128xf32, #tpu.memory_space<vmem>>, vector<16x128xf32>
    %c48_i32 = arith.constant 48 : i32
    %172 = tpu.dynamic_rotate %171 by %c48_i32 dim 1 : vector<16x128xf32>, i32 -> vector<16x128xf32>
    %173 = arith.addf %170, %172 : vector<16x128xf32>
    %c10_137 = arith.constant 10 : index
    %c0_138 = arith.constant 0 : index
    %174 = vector.load %arg5[%c10_137, %c0_138] : memref<48x128xf32, #tpu.memory_space<vmem>>, vector<16x128xf32>
    %c64_i32 = arith.constant 64 : i32
    %175 = tpu.dynamic_rotate %174 by %c64_i32 dim 1 : vector<16x128xf32>, i32 -> vector<16x128xf32>
    %176 = arith.addf %173, %175 : vector<16x128xf32>
    %177 = arith.truncf %176 : vector<16x128xf32> to vector<16x128xbf16>
    %c1920 = arith.constant 1920 : index
    %c0_139 = arith.constant 0 : index
    %178 = vector.load %arg2[%c1920, %c0_139] : memref<3840x128xbf16, #tpu.memory_space<vmem>>, vector<128x128xbf16>
    %cst_140 = arith.constant dense<0.000000e+00> : vector<16x128xf32>
    %179 = tpu.matmul %177, %178, %cst_140 {dimension_numbers = #tpu.dot_dimension_numbers<[1], [0], [0], [1], [0, 0, 1, 1], [], []>} : vector<16x128xbf16>, vector<128x128xbf16>, vector<16x128xf32> -> vector<16x128xf32>
    %c7_141 = arith.constant 7 : index
    %c0_142 = arith.constant 0 : index
    %180 = vector.load %arg3[%c7_141, %c0_142] : memref<24x128xf32, #tpu.memory_space<vmem>>, vector<1x128xf32>
    %181 = vector.broadcast %180 : vector<1x128xf32> to vector<16x128xf32>
    %182 = arith.addf %179, %181 : vector<16x128xf32>
    %cst_143 = arith.constant 0.000000e+00 : f32
    %183 = vector.broadcast %cst_143 : f32 to vector<16x128xf32>
    %184 = arith.cmpf oge, %182, %183 : vector<16x128xf32>
    %cst_144 = arith.constant 1.000000e-01 : f32
    %185 = vector.broadcast %cst_144 : f32 to vector<16x128xf32>
    %186 = arith.mulf %185, %182 : vector<16x128xf32>
    %187 = arith.select %184, %182, %186 : vector<16x128xi1>, vector<16x128xf32>
    %c8_145 = arith.constant 8 : index
    %c0_146 = arith.constant 0 : index
    %188 = vector.load %arg5[%c8_145, %c0_146] : memref<48x128xf32, #tpu.memory_space<vmem>>, vector<16x128xf32>
    tpu.vector_store %arg5[%c8_145, %c0_146], %187 {strides = array<i32>} : memref<48x128xf32, #tpu.memory_space<vmem>>, vector<16x128xf32>,
    %c6_147 = arith.constant 6 : index
    %c0_148 = arith.constant 0 : index
    %189 = vector.load %arg5[%c6_147, %c0_148] : memref<48x128xf32, #tpu.memory_space<vmem>>, vector<16x128xf32>
    %c7_149 = arith.constant 7 : index
    %c0_150 = arith.constant 0 : index
    %190 = vector.load %arg5[%c7_149, %c0_150] : memref<48x128xf32, #tpu.memory_space<vmem>>, vector<16x128xf32>
    %c16_i32_151 = arith.constant 16 : i32
    %191 = tpu.dynamic_rotate %190 by %c16_i32_151 dim 1 : vector<16x128xf32>, i32 -> vector<16x128xf32>
    %192 = arith.addf %189, %191 : vector<16x128xf32>
    %c8_152 = arith.constant 8 : index
    %c0_153 = arith.constant 0 : index
    %193 = vector.load %arg5[%c8_152, %c0_153] : memref<48x128xf32, #tpu.memory_space<vmem>>, vector<16x128xf32>
    %c32_i32_154 = arith.constant 32 : i32
    %194 = tpu.dynamic_rotate %193 by %c32_i32_154 dim 1 : vector<16x128xf32>, i32 -> vector<16x128xf32>
    %195 = arith.addf %192, %194 : vector<16x128xf32>
    %c9_155 = arith.constant 9 : index
    %c0_156 = arith.constant 0 : index
    %196 = vector.load %arg5[%c9_155, %c0_156] : memref<48x128xf32, #tpu.memory_space<vmem>>, vector<16x128xf32>
    %c48_i32_157 = arith.constant 48 : i32
    %197 = tpu.dynamic_rotate %196 by %c48_i32_157 dim 1 : vector<16x128xf32>, i32 -> vector<16x128xf32>
    %198 = arith.addf %195, %197 : vector<16x128xf32>
    %c10_158 = arith.constant 10 : index
    %c0_159 = arith.constant 0 : index
    %199 = vector.load %arg5[%c10_158, %c0_159] : memref<48x128xf32, #tpu.memory_space<vmem>>, vector<16x128xf32>
    %c64_i32_160 = arith.constant 64 : i32
    %200 = tpu.dynamic_rotate %199 by %c64_i32_160 dim 1 : vector<16x128xf32>, i32 -> vector<16x128xf32>
    %201 = arith.addf %198, %200 : vector<16x128xf32>
    %202 = arith.truncf %201 : vector<16x128xf32> to vector<16x128xbf16>
    %c2048 = arith.constant 2048 : index
    %c0_161 = arith.constant 0 : index
    %203 = vector.load %arg2[%c2048, %c0_161] : memref<3840x128xbf16, #tpu.memory_space<vmem>>, vector<128x128xbf16>
    %cst_162 = arith.constant dense<0.000000e+00> : vector<16x128xf32>
    %204 = tpu.matmul %202, %203, %cst_162 {dimension_numbers = #tpu.dot_dimension_numbers<[1], [0], [0], [1], [0, 0, 1, 1], [], []>} : vector<16x128xbf16>, vector<128x128xbf16>, vector<16x128xf32> -> vector<16x128xf32>
    %c8_163 = arith.constant 8 : index
    %c0_164 = arith.constant 0 : index
    %205 = vector.load %arg3[%c8_163, %c0_164] : memref<24x128xf32, #tpu.memory_space<vmem>>, vector<1x128xf32>
    %206 = vector.broadcast %205 : vector<1x128xf32> to vector<16x128xf32>
    %207 = arith.addf %204, %206 : vector<16x128xf32>
    %208 = arith.addf %79, %207 : vector<16x128xf32>
    %cst_165 = arith.constant 0.000000e+00 : f32
    %209 = vector.broadcast %cst_165 : f32 to vector<16x128xf32>
    %210 = arith.cmpf oge, %208, %209 : vector<16x128xf32>
    %cst_166 = arith.constant 1.000000e-01 : f32
    %211 = vector.broadcast %cst_166 : f32 to vector<16x128xf32>
    %212 = arith.mulf %211, %208 : vector<16x128xf32>
    %213 = arith.select %210, %208, %212 : vector<16x128xi1>, vector<16x128xf32>
    %c8_167 = arith.constant 8 : index
    %c0_168 = arith.constant 0 : index
    %214 = vector.load %arg5[%c8_167, %c0_168] : memref<48x128xf32, #tpu.memory_space<vmem>>, vector<16x128xf32>
    tpu.vector_store %arg5[%c8_167, %c0_168], %213 {strides = array<i32>} : memref<48x128xf32, #tpu.memory_space<vmem>>, vector<16x128xf32>,
    %c2_169 = arith.constant 2 : index
    %c0_170 = arith.constant 0 : index
    %215 = vector.load %arg5[%c2_169, %c0_170] : memref<48x128xf32, #tpu.memory_space<vmem>>, vector<16x128xf32>
    %c5_171 = arith.constant 5 : index
    %c0_172 = arith.constant 0 : index
    %216 = vector.load %arg5[%c5_171, %c0_172] : memref<48x128xf32, #tpu.memory_space<vmem>>, vector<16x128xf32>
    %c16_i32_173 = arith.constant 16 : i32
    %217 = tpu.dynamic_rotate %216 by %c16_i32_173 dim 1 : vector<16x128xf32>, i32 -> vector<16x128xf32>
    %218 = arith.addf %215, %217 : vector<16x128xf32>
    %c8_174 = arith.constant 8 : index
    %c0_175 = arith.constant 0 : index
    %219 = vector.load %arg5[%c8_174, %c0_175] : memref<48x128xf32, #tpu.memory_space<vmem>>, vector<16x128xf32>
    %c32_i32_176 = arith.constant 32 : i32
    %220 = tpu.dynamic_rotate %219 by %c32_i32_176 dim 1 : vector<16x128xf32>, i32 -> vector<16x128xf32>
    %221 = arith.addf %218, %220 : vector<16x128xf32>
    %c11_177 = arith.constant 11 : index
    %c0_178 = arith.constant 0 : index
    %222 = vector.load %arg5[%c11_177, %c0_178] : memref<48x128xf32, #tpu.memory_space<vmem>>, vector<16x128xf32>
    %c48_i32_179 = arith.constant 48 : i32
    %223 = tpu.dynamic_rotate %222 by %c48_i32_179 dim 1 : vector<16x128xf32>, i32 -> vector<16x128xf32>
    %224 = arith.addf %221, %223 : vector<16x128xf32>
    %c14 = arith.constant 14 : index
    %c0_180 = arith.constant 0 : index
    %225 = vector.load %arg5[%c14, %c0_180] : memref<48x128xf32, #tpu.memory_space<vmem>>, vector<16x128xf32>
    %c64_i32_181 = arith.constant 64 : i32
    %226 = tpu.dynamic_rotate %225 by %c64_i32_181 dim 1 : vector<16x128xf32>, i32 -> vector<16x128xf32>
    %227 = arith.addf %224, %226 : vector<16x128xf32>
    %228 = arith.truncf %227 : vector<16x128xf32> to vector<16x128xbf16>
    %c2176 = arith.constant 2176 : index
    %c0_182 = arith.constant 0 : index
    %229 = vector.load %arg2[%c2176, %c0_182] : memref<3840x128xbf16, #tpu.memory_space<vmem>>, vector<128x128xbf16>
    %cst_183 = arith.constant dense<0.000000e+00> : vector<16x128xf32>
    %230 = tpu.matmul %228, %229, %cst_183 {dimension_numbers = #tpu.dot_dimension_numbers<[1], [0], [0], [1], [0, 0, 1, 1], [], []>} : vector<16x128xbf16>, vector<128x128xbf16>, vector<16x128xf32> -> vector<16x128xf32>
    %c9_184 = arith.constant 9 : index
    %c0_185 = arith.constant 0 : index
    %231 = vector.load %arg3[%c9_184, %c0_185] : memref<24x128xf32, #tpu.memory_space<vmem>>, vector<1x128xf32>
    %232 = vector.broadcast %231 : vector<1x128xf32> to vector<16x128xf32>
    %233 = arith.addf %230, %232 : vector<16x128xf32>
    %cst_186 = arith.constant 0.000000e+00 : f32
    %234 = vector.broadcast %cst_186 : f32 to vector<16x128xf32>
    %235 = arith.cmpf oge, %233, %234 : vector<16x128xf32>
    %cst_187 = arith.constant 1.000000e-01 : f32
    %236 = vector.broadcast %cst_187 : f32 to vector<16x128xf32>
    %237 = arith.mulf %236, %233 : vector<16x128xf32>
    %238 = arith.select %235, %233, %237 : vector<16x128xi1>, vector<16x128xf32>
    %c8_188 = arith.constant 8 : index
    %c0_189 = arith.constant 0 : index
    %239 = vector.load %arg5[%c8_188, %c0_189] : memref<48x128xf32, #tpu.memory_space<vmem>>, vector<16x128xf32>
    tpu.vector_store %arg5[%c8_188, %c0_189], %238 {strides = array<i32>} : memref<48x128xf32, #tpu.memory_space<vmem>>, vector<16x128xf32>,
    %c6_190 = arith.constant 6 : index
    %c0_191 = arith.constant 0 : index
    %240 = vector.load %arg5[%c6_190, %c0_191] : memref<48x128xf32, #tpu.memory_space<vmem>>, vector<16x128xf32>
    %c7_192 = arith.constant 7 : index
    %c0_193 = arith.constant 0 : index
    %241 = vector.load %arg5[%c7_192, %c0_193] : memref<48x128xf32, #tpu.memory_space<vmem>>, vector<16x128xf32>
    %c16_i32_194 = arith.constant 16 : i32
    %242 = tpu.dynamic_rotate %241 by %c16_i32_194 dim 1 : vector<16x128xf32>, i32 -> vector<16x128xf32>
    %243 = arith.addf %240, %242 : vector<16x128xf32>
    %c8_195 = arith.constant 8 : index
    %c0_196 = arith.constant 0 : index
    %244 = vector.load %arg5[%c8_195, %c0_196] : memref<48x128xf32, #tpu.memory_space<vmem>>, vector<16x128xf32>
    %c32_i32_197 = arith.constant 32 : i32
    %245 = tpu.dynamic_rotate %244 by %c32_i32_197 dim 1 : vector<16x128xf32>, i32 -> vector<16x128xf32>
    %246 = arith.addf %243, %245 : vector<16x128xf32>
    %c9_198 = arith.constant 9 : index
    %c0_199 = arith.constant 0 : index
    %247 = vector.load %arg5[%c9_198, %c0_199] : memref<48x128xf32, #tpu.memory_space<vmem>>, vector<16x128xf32>
    %c48_i32_200 = arith.constant 48 : i32
    %248 = tpu.dynamic_rotate %247 by %c48_i32_200 dim 1 : vector<16x128xf32>, i32 -> vector<16x128xf32>
    %249 = arith.addf %246, %248 : vector<16x128xf32>
    %c10_201 = arith.constant 10 : index
    %c0_202 = arith.constant 0 : index
    %250 = vector.load %arg5[%c10_201, %c0_202] : memref<48x128xf32, #tpu.memory_space<vmem>>, vector<16x128xf32>
    %c64_i32_203 = arith.constant 64 : i32
    %251 = tpu.dynamic_rotate %250 by %c64_i32_203 dim 1 : vector<16x128xf32>, i32 -> vector<16x128xf32>
    %252 = arith.addf %249, %251 : vector<16x128xf32>
    %253 = arith.truncf %252 : vector<16x128xf32> to vector<16x128xbf16>
    %c2304 = arith.constant 2304 : index
    %c0_204 = arith.constant 0 : index
    %254 = vector.load %arg2[%c2304, %c0_204] : memref<3840x128xbf16, #tpu.memory_space<vmem>>, vector<128x128xbf16>
    %cst_205 = arith.constant dense<0.000000e+00> : vector<16x128xf32>
    %255 = tpu.matmul %253, %254, %cst_205 {dimension_numbers = #tpu.dot_dimension_numbers<[1], [0], [0], [1], [0, 0, 1, 1], [], []>} : vector<16x128xbf16>, vector<128x128xbf16>, vector<16x128xf32> -> vector<16x128xf32>
    %c10_206 = arith.constant 10 : index
    %c0_207 = arith.constant 0 : index
    %256 = vector.load %arg3[%c10_206, %c0_207] : memref<24x128xf32, #tpu.memory_space<vmem>>, vector<1x128xf32>
    %257 = vector.broadcast %256 : vector<1x128xf32> to vector<16x128xf32>
    %258 = arith.addf %255, %257 : vector<16x128xf32>
    %259 = arith.addf %208, %258 : vector<16x128xf32>
    %260 = arith.addf %157, %259 : vector<16x128xf32>
    %cst_208 = arith.constant 5.000000e-01 : f32
    %261 = vector.broadcast %cst_208 : f32 to vector<16x128xf32>
    %262 = arith.mulf %260, %261 : vector<16x128xf32>
    %cst_209 = arith.constant 0.000000e+00 : f32
    %263 = vector.broadcast %cst_209 : f32 to vector<16x128xf32>
    %264 = arith.cmpf oge, %262, %263 : vector<16x128xf32>
    %cst_210 = arith.constant 1.000000e-01 : f32
    %265 = vector.broadcast %cst_210 : f32 to vector<16x128xf32>
    %266 = arith.mulf %265, %262 : vector<16x128xf32>
    %267 = arith.select %264, %262, %266 : vector<16x128xi1>, vector<16x128xf32>
    %c8_211 = arith.constant 8 : index
    %c0_212 = arith.constant 0 : index
    %268 = vector.load %arg5[%c8_211, %c0_212] : memref<48x128xf32, #tpu.memory_space<vmem>>, vector<16x128xf32>
    tpu.vector_store %arg5[%c8_211, %c0_212], %267 {strides = array<i32>} : memref<48x128xf32, #tpu.memory_space<vmem>>, vector<16x128xf32>,
    %c7_213 = arith.constant 7 : index
    %c0_214 = arith.constant 0 : index
    %269 = vector.load %arg5[%c7_213, %c0_214] : memref<48x128xf32, #tpu.memory_space<vmem>>, vector<16x128xf32>
    %c8_215 = arith.constant 8 : index
    %c0_216 = arith.constant 0 : index
    %270 = vector.load %arg5[%c8_215, %c0_216] : memref<48x128xf32, #tpu.memory_space<vmem>>, vector<16x128xf32>
    %c16_i32_217 = arith.constant 16 : i32
    %271 = tpu.dynamic_rotate %270 by %c16_i32_217 dim 1 : vector<16x128xf32>, i32 -> vector<16x128xf32>
    %272 = arith.addf %269, %271 : vector<16x128xf32>
    %273 = arith.truncf %272 : vector<16x128xf32> to vector<16x128xbf16>
    %c2432 = arith.constant 2432 : index
    %c0_218 = arith.constant 0 : index
    %274 = vector.load %arg2[%c2432, %c0_218] : memref<3840x128xbf16, #tpu.memory_space<vmem>>, vector<128x128xbf16>
    %cst_219 = arith.constant dense<0.000000e+00> : vector<16x128xf32>
    %275 = tpu.matmul %273, %274, %cst_219 {dimension_numbers = #tpu.dot_dimension_numbers<[1], [0], [0], [1], [0, 0, 1, 1], [], []>} : vector<16x128xbf16>, vector<128x128xbf16>, vector<16x128xf32> -> vector<16x128xf32>
    %c11_220 = arith.constant 11 : index
    %c0_221 = arith.constant 0 : index
    %276 = vector.load %arg3[%c11_220, %c0_221] : memref<24x128xf32, #tpu.memory_space<vmem>>, vector<1x128xf32>
    %277 = vector.broadcast %276 : vector<1x128xf32> to vector<16x128xf32>
    %278 = arith.addf %275, %277 : vector<16x128xf32>
    %c8_222 = arith.constant 8 : index
    %c0_223 = arith.constant 0 : index
    %279 = vector.load %arg5[%c8_222, %c0_223] : memref<48x128xf32, #tpu.memory_space<vmem>>, vector<16x128xf32>
    %c9_224 = arith.constant 9 : index
    %c0_225 = arith.constant 0 : index
    %280 = vector.load %arg5[%c9_224, %c0_225] : memref<48x128xf32, #tpu.memory_space<vmem>>, vector<16x128xf32>
    %c16_i32_226 = arith.constant 16 : i32
    %281 = tpu.dynamic_rotate %280 by %c16_i32_226 dim 1 : vector<16x128xf32>, i32 -> vector<16x128xf32>
    %282 = arith.addf %279, %281 : vector<16x128xf32>
    %283 = arith.truncf %282 : vector<16x128xf32> to vector<16x128xbf16>
    %c2560 = arith.constant 2560 : index
    %c0_227 = arith.constant 0 : index
    %284 = vector.load %arg2[%c2560, %c0_227] : memref<3840x128xbf16, #tpu.memory_space<vmem>>, vector<128x128xbf16>
    %cst_228 = arith.constant dense<0.000000e+00> : vector<16x128xf32>
    %285 = tpu.matmul %283, %284, %cst_228 {dimension_numbers = #tpu.dot_dimension_numbers<[1], [0], [0], [1], [0, 0, 1, 1], [], []>} : vector<16x128xbf16>, vector<128x128xbf16>, vector<16x128xf32> -> vector<16x128xf32>
    %c11_229 = arith.constant 11 : index
    %c0_230 = arith.constant 0 : index
    %286 = vector.load %arg3[%c11_229, %c0_230] : memref<24x128xf32, #tpu.memory_space<vmem>>, vector<1x128xf32>
    %287 = vector.broadcast %286 : vector<1x128xf32> to vector<16x128xf32>
    %288 = arith.addf %285, %287 : vector<16x128xf32>
    %c8_231 = arith.constant 8 : index
    %c0_232 = arith.constant 0 : index
    %289 = tpu.strided_load %arg5[%c8_231, %c0_232] {strides = array<i32: 2, 1>} : memref<48x128xf32, #tpu.memory_space<vmem>>, vector<16x128xf32>
    tpu.strided_store %arg5[%c8_231, %c0_232], %278 {strides = array<i32: 2, 1>} : memref<48x128xf32, #tpu.memory_space<vmem>>, vector<16x128xf32>
    %c9_233 = arith.constant 9 : index
    %c0_234 = arith.constant 0 : index
    %290 = tpu.strided_load %arg5[%c9_233, %c0_234] {strides = array<i32: 2, 1>} : memref<48x128xf32, #tpu.memory_space<vmem>>, vector<16x128xf32>
    tpu.strided_store %arg5[%c9_233, %c0_234], %288 {strides = array<i32: 2, 1>} : memref<48x128xf32, #tpu.memory_space<vmem>>, vector<16x128xf32>
    %c8_235 = arith.constant 8 : index
    %c0_236 = arith.constant 0 : index
    %291 = vector.load %arg5[%c8_235, %c0_236] : memref<48x128xf32, #tpu.memory_space<vmem>>, vector<32x128xf32>
    %cst_237 = arith.constant 0.000000e+00 : f32
    %292 = vector.broadcast %cst_237 : f32 to vector<32x128xf32>
    %293 = arith.cmpf oge, %291, %292 : vector<32x128xf32>
    %cst_238 = arith.constant 1.000000e-01 : f32
    %294 = vector.broadcast %cst_238 : f32 to vector<32x128xf32>
    %295 = arith.mulf %294, %291 : vector<32x128xf32>
    %296 = arith.select %293, %291, %295 : vector<32x128xi1>, vector<32x128xf32>
    %c8_239 = arith.constant 8 : index
    %c0_240 = arith.constant 0 : index
    %297 = vector.load %arg5[%c8_239, %c0_240] : memref<48x128xf32, #tpu.memory_space<vmem>>, vector<32x128xf32>
    tpu.vector_store %arg5[%c8_239, %c0_240], %296 {strides = array<i32>} : memref<48x128xf32, #tpu.memory_space<vmem>>, vector<32x128xf32>,
    %c7_241 = arith.constant 7 : index
    %c0_242 = arith.constant 0 : index
    %298 = vector.load %arg5[%c7_241, %c0_242] : memref<48x128xf32, #tpu.memory_space<vmem>>, vector<32x128xf32>
    %c8_243 = arith.constant 8 : index
    %c0_244 = arith.constant 0 : index
    %299 = vector.load %arg5[%c8_243, %c0_244] : memref<48x128xf32, #tpu.memory_space<vmem>>, vector<32x128xf32>
    %c8_i32 = arith.constant 8 : i32
    %300 = tpu.dynamic_rotate %299 by %c8_i32 dim 1 : vector<32x128xf32>, i32 -> vector<32x128xf32>
    %301 = arith.addf %298, %300 : vector<32x128xf32>
    %c9_245 = arith.constant 9 : index
    %c0_246 = arith.constant 0 : index
    %302 = vector.load %arg5[%c9_245, %c0_246] : memref<48x128xf32, #tpu.memory_space<vmem>>, vector<32x128xf32>
    %c16_i32_247 = arith.constant 16 : i32
    %303 = tpu.dynamic_rotate %302 by %c16_i32_247 dim 1 : vector<32x128xf32>, i32 -> vector<32x128xf32>
    %304 = arith.addf %301, %303 : vector<32x128xf32>
    %305 = arith.truncf %304 : vector<32x128xf32> to vector<32x128xbf16>
    %c2688 = arith.constant 2688 : index
    %c0_248 = arith.constant 0 : index
    %306 = vector.load %arg2[%c2688, %c0_248] : memref<3840x128xbf16, #tpu.memory_space<vmem>>, vector<128x128xbf16>
    %cst_249 = arith.constant dense<0.000000e+00> : vector<32x128xf32>
    %307 = tpu.matmul %305, %306, %cst_249 {dimension_numbers = #tpu.dot_dimension_numbers<[1], [0], [0], [1], [0, 0, 1, 1], [], []>} : vector<32x128xbf16>, vector<128x128xbf16>, vector<32x128xf32> -> vector<32x128xf32>
    %c12 = arith.constant 12 : index
    %c0_250 = arith.constant 0 : index
    %308 = vector.load %arg3[%c12, %c0_250] : memref<24x128xf32, #tpu.memory_space<vmem>>, vector<1x128xf32>
    %309 = vector.broadcast %308 : vector<1x128xf32> to vector<32x128xf32>
    %310 = arith.addf %307, %309 : vector<32x128xf32>
    %cst_251 = arith.constant 0.000000e+00 : f32
    %311 = vector.broadcast %cst_251 : f32 to vector<32x128xf32>
    %312 = arith.cmpf oge, %310, %311 : vector<32x128xf32>
    %cst_252 = arith.constant 1.000000e-01 : f32
    %313 = vector.broadcast %cst_252 : f32 to vector<32x128xf32>
    %314 = arith.mulf %313, %310 : vector<32x128xf32>
    %315 = arith.select %312, %310, %314 : vector<32x128xi1>, vector<32x128xf32>
    %c8_253 = arith.constant 8 : index
    %c0_254 = arith.constant 0 : index
    %316 = vector.load %arg5[%c8_253, %c0_254] : memref<48x128xf32, #tpu.memory_space<vmem>>, vector<32x128xf32>
    tpu.vector_store %arg5[%c8_253, %c0_254], %315 {strides = array<i32>} : memref<48x128xf32, #tpu.memory_space<vmem>>, vector<32x128xf32>,
    %c7_255 = arith.constant 7 : index
    %c0_256 = arith.constant 0 : index
    %317 = vector.load %arg5[%c7_255, %c0_256] : memref<48x128xf32, #tpu.memory_space<vmem>>, vector<32x128xf32>
    %c8_257 = arith.constant 8 : index
    %c0_258 = arith.constant 0 : index
    %318 = vector.load %arg5[%c8_257, %c0_258] : memref<48x128xf32, #tpu.memory_space<vmem>>, vector<32x128xf32>
    %c8_i32_259 = arith.constant 8 : i32
    %319 = tpu.dynamic_rotate %318 by %c8_i32_259 dim 1 : vector<32x128xf32>, i32 -> vector<32x128xf32>
    %320 = arith.addf %317, %319 : vector<32x128xf32>
    %c9_260 = arith.constant 9 : index
    %c0_261 = arith.constant 0 : index
    %321 = vector.load %arg5[%c9_260, %c0_261] : memref<48x128xf32, #tpu.memory_space<vmem>>, vector<32x128xf32>
    %c16_i32_262 = arith.constant 16 : i32
    %322 = tpu.dynamic_rotate %321 by %c16_i32_262 dim 1 : vector<32x128xf32>, i32 -> vector<32x128xf32>
    %323 = arith.addf %320, %322 : vector<32x128xf32>
    %324 = arith.truncf %323 : vector<32x128xf32> to vector<32x128xbf16>
    %c2816 = arith.constant 2816 : index
    %c0_263 = arith.constant 0 : index
    %325 = vector.load %arg2[%c2816, %c0_263] : memref<3840x128xbf16, #tpu.memory_space<vmem>>, vector<128x128xbf16>
    %cst_264 = arith.constant dense<0.000000e+00> : vector<32x128xf32>
    %326 = tpu.matmul %324, %325, %cst_264 {dimension_numbers = #tpu.dot_dimension_numbers<[1], [0], [0], [1], [0, 0, 1, 1], [], []>} : vector<32x128xbf16>, vector<128x128xbf16>, vector<32x128xf32> -> vector<32x128xf32>
    %c13 = arith.constant 13 : index
    %c0_265 = arith.constant 0 : index
    %327 = vector.load %arg3[%c13, %c0_265] : memref<24x128xf32, #tpu.memory_space<vmem>>, vector<1x128xf32>
    %328 = vector.broadcast %327 : vector<1x128xf32> to vector<32x128xf32>
    %329 = arith.addf %326, %328 : vector<32x128xf32>
    %330 = arith.addf %291, %329 : vector<32x128xf32>
    %cst_266 = arith.constant 0.000000e+00 : f32
    %331 = vector.broadcast %cst_266 : f32 to vector<32x128xf32>
    %332 = arith.cmpf oge, %330, %331 : vector<32x128xf32>
    %cst_267 = arith.constant 1.000000e-01 : f32
    %333 = vector.broadcast %cst_267 : f32 to vector<32x128xf32>
    %334 = arith.mulf %333, %330 : vector<32x128xf32>
    %335 = arith.select %332, %330, %334 : vector<32x128xi1>, vector<32x128xf32>
    %c8_268 = arith.constant 8 : index
    %c0_269 = arith.constant 0 : index
    %336 = vector.load %arg5[%c8_268, %c0_269] : memref<48x128xf32, #tpu.memory_space<vmem>>, vector<32x128xf32>
    tpu.vector_store %arg5[%c8_268, %c0_269], %335 {strides = array<i32>} : memref<48x128xf32, #tpu.memory_space<vmem>>, vector<32x128xf32>,
    %c5_270 = arith.constant 5 : index
    %c0_271 = arith.constant 0 : index
    %337 = vector.load %arg5[%c5_270, %c0_271] : memref<48x128xf32, #tpu.memory_space<vmem>>, vector<32x128xf32>
    %c8_272 = arith.constant 8 : index
    %c0_273 = arith.constant 0 : index
    %338 = vector.load %arg5[%c8_272, %c0_273] : memref<48x128xf32, #tpu.memory_space<vmem>>, vector<32x128xf32>
    %c8_i32_274 = arith.constant 8 : i32
    %339 = tpu.dynamic_rotate %338 by %c8_i32_274 dim 1 : vector<32x128xf32>, i32 -> vector<32x128xf32>
    %340 = arith.addf %337, %339 : vector<32x128xf32>
    %c11_275 = arith.constant 11 : index
    %c0_276 = arith.constant 0 : index
    %341 = vector.load %arg5[%c11_275, %c0_276] : memref<48x128xf32, #tpu.memory_space<vmem>>, vector<32x128xf32>
    %c16_i32_277 = arith.constant 16 : i32
    %342 = tpu.dynamic_rotate %341 by %c16_i32_277 dim 1 : vector<32x128xf32>, i32 -> vector<32x128xf32>
    %343 = arith.addf %340, %342 : vector<32x128xf32>
    %344 = arith.truncf %343 : vector<32x128xf32> to vector<32x128xbf16>
    %c2944 = arith.constant 2944 : index
    %c0_278 = arith.constant 0 : index
    %345 = vector.load %arg2[%c2944, %c0_278] : memref<3840x128xbf16, #tpu.memory_space<vmem>>, vector<128x128xbf16>
    %cst_279 = arith.constant dense<0.000000e+00> : vector<32x128xf32>
    %346 = tpu.matmul %344, %345, %cst_279 {dimension_numbers = #tpu.dot_dimension_numbers<[1], [0], [0], [1], [0, 0, 1, 1], [], []>} : vector<32x128xbf16>, vector<128x128xbf16>, vector<32x128xf32> -> vector<32x128xf32>
    %c14_280 = arith.constant 14 : index
    %c0_281 = arith.constant 0 : index
    %347 = vector.load %arg3[%c14_280, %c0_281] : memref<24x128xf32, #tpu.memory_space<vmem>>, vector<1x128xf32>
    %348 = vector.broadcast %347 : vector<1x128xf32> to vector<32x128xf32>
    %349 = arith.addf %346, %348 : vector<32x128xf32>
    %cst_282 = arith.constant 0.000000e+00 : f32
    %350 = vector.broadcast %cst_282 : f32 to vector<32x128xf32>
    %351 = arith.cmpf oge, %349, %350 : vector<32x128xf32>
    %cst_283 = arith.constant 1.000000e-01 : f32
    %352 = vector.broadcast %cst_283 : f32 to vector<32x128xf32>
    %353 = arith.mulf %352, %349 : vector<32x128xf32>
    %354 = arith.select %351, %349, %353 : vector<32x128xi1>, vector<32x128xf32>
    %c8_284 = arith.constant 8 : index
    %c0_285 = arith.constant 0 : index
    %355 = vector.load %arg5[%c8_284, %c0_285] : memref<48x128xf32, #tpu.memory_space<vmem>>, vector<32x128xf32>
    tpu.vector_store %arg5[%c8_284, %c0_285], %354 {strides = array<i32>} : memref<48x128xf32, #tpu.memory_space<vmem>>, vector<32x128xf32>,
    %c7_286 = arith.constant 7 : index
    %c0_287 = arith.constant 0 : index
    %356 = vector.load %arg5[%c7_286, %c0_287] : memref<48x128xf32, #tpu.memory_space<vmem>>, vector<32x128xf32>
    %c8_288 = arith.constant 8 : index
    %c0_289 = arith.constant 0 : index
    %357 = vector.load %arg5[%c8_288, %c0_289] : memref<48x128xf32, #tpu.memory_space<vmem>>, vector<32x128xf32>
    %c8_i32_290 = arith.constant 8 : i32
    %358 = tpu.dynamic_rotate %357 by %c8_i32_290 dim 1 : vector<32x128xf32>, i32 -> vector<32x128xf32>
    %359 = arith.addf %356, %358 : vector<32x128xf32>
    %c9_291 = arith.constant 9 : index
    %c0_292 = arith.constant 0 : index
    %360 = vector.load %arg5[%c9_291, %c0_292] : memref<48x128xf32, #tpu.memory_space<vmem>>, vector<32x128xf32>
    %c16_i32_293 = arith.constant 16 : i32
    %361 = tpu.dynamic_rotate %360 by %c16_i32_293 dim 1 : vector<32x128xf32>, i32 -> vector<32x128xf32>
    %362 = arith.addf %359, %361 : vector<32x128xf32>
    %363 = arith.truncf %362 : vector<32x128xf32> to vector<32x128xbf16>
    %c3072 = arith.constant 3072 : index
    %c0_294 = arith.constant 0 : index
    %364 = vector.load %arg2[%c3072, %c0_294] : memref<3840x128xbf16, #tpu.memory_space<vmem>>, vector<128x128xbf16>
    %cst_295 = arith.constant dense<0.000000e+00> : vector<32x128xf32>
    %365 = tpu.matmul %363, %364, %cst_295 {dimension_numbers = #tpu.dot_dimension_numbers<[1], [0], [0], [1], [0, 0, 1, 1], [], []>} : vector<32x128xbf16>, vector<128x128xbf16>, vector<32x128xf32> -> vector<32x128xf32>
    %c15 = arith.constant 15 : index
    %c0_296 = arith.constant 0 : index
    %366 = vector.load %arg3[%c15, %c0_296] : memref<24x128xf32, #tpu.memory_space<vmem>>, vector<1x128xf32>
    %367 = vector.broadcast %366 : vector<1x128xf32> to vector<32x128xf32>
    %368 = arith.addf %365, %367 : vector<32x128xf32>
    %369 = arith.addf %330, %368 : vector<32x128xf32>
    %cst_297 = arith.constant 0.000000e+00 : f32
    %370 = vector.broadcast %cst_297 : f32 to vector<32x128xf32>
    %371 = arith.cmpf oge, %291, %370 : vector<32x128xf32>
    %cst_298 = arith.constant 1.000000e-01 : f32
    %372 = vector.broadcast %cst_298 : f32 to vector<32x128xf32>
    %373 = arith.mulf %372, %291 : vector<32x128xf32>
    %374 = arith.select %371, %291, %373 : vector<32x128xi1>, vector<32x128xf32>
    %c8_299 = arith.constant 8 : index
    %c0_300 = arith.constant 0 : index
    %375 = vector.load %arg5[%c8_299, %c0_300] : memref<48x128xf32, #tpu.memory_space<vmem>>, vector<32x128xf32>
    tpu.vector_store %arg5[%c8_299, %c0_300], %374 {strides = array<i32>} : memref<48x128xf32, #tpu.memory_space<vmem>>, vector<32x128xf32>,
    %c6_301 = arith.constant 6 : index
    %c0_302 = arith.constant 0 : index
    %376 = vector.load %arg5[%c6_301, %c0_302] : memref<48x128xf32, #tpu.memory_space<vmem>>, vector<32x128xf32>
    %c7_303 = arith.constant 7 : index
    %c0_304 = arith.constant 0 : index
    %377 = vector.load %arg5[%c7_303, %c0_304] : memref<48x128xf32, #tpu.memory_space<vmem>>, vector<32x128xf32>
    %c8_i32_305 = arith.constant 8 : i32
    %378 = tpu.dynamic_rotate %377 by %c8_i32_305 dim 1 : vector<32x128xf32>, i32 -> vector<32x128xf32>
    %379 = arith.addf %376, %378 : vector<32x128xf32>
    %c8_306 = arith.constant 8 : index
    %c0_307 = arith.constant 0 : index
    %380 = vector.load %arg5[%c8_306, %c0_307] : memref<48x128xf32, #tpu.memory_space<vmem>>, vector<32x128xf32>
    %c16_i32_308 = arith.constant 16 : i32
    %381 = tpu.dynamic_rotate %380 by %c16_i32_308 dim 1 : vector<32x128xf32>, i32 -> vector<32x128xf32>
    %382 = arith.addf %379, %381 : vector<32x128xf32>
    %c9_309 = arith.constant 9 : index
    %c0_310 = arith.constant 0 : index
    %383 = vector.load %arg5[%c9_309, %c0_310] : memref<48x128xf32, #tpu.memory_space<vmem>>, vector<32x128xf32>
    %c24_i32 = arith.constant 24 : i32
    %384 = tpu.dynamic_rotate %383 by %c24_i32 dim 1 : vector<32x128xf32>, i32 -> vector<32x128xf32>
    %385 = arith.addf %382, %384 : vector<32x128xf32>
    %c10_311 = arith.constant 10 : index
    %c0_312 = arith.constant 0 : index
    %386 = vector.load %arg5[%c10_311, %c0_312] : memref<48x128xf32, #tpu.memory_space<vmem>>, vector<32x128xf32>
    %c32_i32_313 = arith.constant 32 : i32
    %387 = tpu.dynamic_rotate %386 by %c32_i32_313 dim 1 : vector<32x128xf32>, i32 -> vector<32x128xf32>
    %388 = arith.addf %385, %387 : vector<32x128xf32>
    %389 = arith.truncf %388 : vector<32x128xf32> to vector<32x128xbf16>
    %c3200 = arith.constant 3200 : index
    %c0_314 = arith.constant 0 : index
    %390 = vector.load %arg2[%c3200, %c0_314] : memref<3840x128xbf16, #tpu.memory_space<vmem>>, vector<128x128xbf16>
    %cst_315 = arith.constant dense<0.000000e+00> : vector<32x128xf32>
    %391 = tpu.matmul %389, %390, %cst_315 {dimension_numbers = #tpu.dot_dimension_numbers<[1], [0], [0], [1], [0, 0, 1, 1], [], []>} : vector<32x128xbf16>, vector<128x128xbf16>, vector<32x128xf32> -> vector<32x128xf32>
    %c16_316 = arith.constant 16 : index
    %c0_317 = arith.constant 0 : index
    %392 = vector.load %arg3[%c16_316, %c0_317] : memref<24x128xf32, #tpu.memory_space<vmem>>, vector<1x128xf32>
    %393 = vector.broadcast %392 : vector<1x128xf32> to vector<32x128xf32>
    %394 = arith.addf %391, %393 : vector<32x128xf32>
    %cst_318 = arith.constant 0.000000e+00 : f32
    %395 = vector.broadcast %cst_318 : f32 to vector<32x128xf32>
    %396 = arith.cmpf oge, %394, %395 : vector<32x128xf32>
    %cst_319 = arith.constant 1.000000e-01 : f32
    %397 = vector.broadcast %cst_319 : f32 to vector<32x128xf32>
    %398 = arith.mulf %397, %394 : vector<32x128xf32>
    %399 = arith.select %396, %394, %398 : vector<32x128xi1>, vector<32x128xf32>
    %c8_320 = arith.constant 8 : index
    %c0_321 = arith.constant 0 : index
    %400 = vector.load %arg5[%c8_320, %c0_321] : memref<48x128xf32, #tpu.memory_space<vmem>>, vector<32x128xf32>
    tpu.vector_store %arg5[%c8_320, %c0_321], %399 {strides = array<i32>} : memref<48x128xf32, #tpu.memory_space<vmem>>, vector<32x128xf32>,
    %c6_322 = arith.constant 6 : index
    %c0_323 = arith.constant 0 : index
    %401 = vector.load %arg5[%c6_322, %c0_323] : memref<48x128xf32, #tpu.memory_space<vmem>>, vector<32x128xf32>
    %c7_324 = arith.constant 7 : index
    %c0_325 = arith.constant 0 : index
    %402 = vector.load %arg5[%c7_324, %c0_325] : memref<48x128xf32, #tpu.memory_space<vmem>>, vector<32x128xf32>
    %c8_i32_326 = arith.constant 8 : i32
    %403 = tpu.dynamic_rotate %402 by %c8_i32_326 dim 1 : vector<32x128xf32>, i32 -> vector<32x128xf32>
    %404 = arith.addf %401, %403 : vector<32x128xf32>
    %c8_327 = arith.constant 8 : index
    %c0_328 = arith.constant 0 : index
    %405 = vector.load %arg5[%c8_327, %c0_328] : memref<48x128xf32, #tpu.memory_space<vmem>>, vector<32x128xf32>
    %c16_i32_329 = arith.constant 16 : i32
    %406 = tpu.dynamic_rotate %405 by %c16_i32_329 dim 1 : vector<32x128xf32>, i32 -> vector<32x128xf32>
    %407 = arith.addf %404, %406 : vector<32x128xf32>
    %c9_330 = arith.constant 9 : index
    %c0_331 = arith.constant 0 : index
    %408 = vector.load %arg5[%c9_330, %c0_331] : memref<48x128xf32, #tpu.memory_space<vmem>>, vector<32x128xf32>
    %c24_i32_332 = arith.constant 24 : i32
    %409 = tpu.dynamic_rotate %408 by %c24_i32_332 dim 1 : vector<32x128xf32>, i32 -> vector<32x128xf32>
    %410 = arith.addf %407, %409 : vector<32x128xf32>
    %c10_333 = arith.constant 10 : index
    %c0_334 = arith.constant 0 : index
    %411 = vector.load %arg5[%c10_333, %c0_334] : memref<48x128xf32, #tpu.memory_space<vmem>>, vector<32x128xf32>
    %c32_i32_335 = arith.constant 32 : i32
    %412 = tpu.dynamic_rotate %411 by %c32_i32_335 dim 1 : vector<32x128xf32>, i32 -> vector<32x128xf32>
    %413 = arith.addf %410, %412 : vector<32x128xf32>
    %414 = arith.truncf %413 : vector<32x128xf32> to vector<32x128xbf16>
    %c3328 = arith.constant 3328 : index
    %c0_336 = arith.constant 0 : index
    %415 = vector.load %arg2[%c3328, %c0_336] : memref<3840x128xbf16, #tpu.memory_space<vmem>>, vector<128x128xbf16>
    %cst_337 = arith.constant dense<0.000000e+00> : vector<32x128xf32>
    %416 = tpu.matmul %414, %415, %cst_337 {dimension_numbers = #tpu.dot_dimension_numbers<[1], [0], [0], [1], [0, 0, 1, 1], [], []>} : vector<32x128xbf16>, vector<128x128xbf16>, vector<32x128xf32> -> vector<32x128xf32>
    %c17 = arith.constant 17 : index
    %c0_338 = arith.constant 0 : index
    %417 = vector.load %arg3[%c17, %c0_338] : memref<24x128xf32, #tpu.memory_space<vmem>>, vector<1x128xf32>
    %418 = vector.broadcast %417 : vector<1x128xf32> to vector<32x128xf32>
    %419 = arith.addf %416, %418 : vector<32x128xf32>
    %420 = arith.addf %291, %419 : vector<32x128xf32>
    %cst_339 = arith.constant 0.000000e+00 : f32
    %421 = vector.broadcast %cst_339 : f32 to vector<32x128xf32>
    %422 = arith.cmpf oge, %420, %421 : vector<32x128xf32>
    %cst_340 = arith.constant 1.000000e-01 : f32
    %423 = vector.broadcast %cst_340 : f32 to vector<32x128xf32>
    %424 = arith.mulf %423, %420 : vector<32x128xf32>
    %425 = arith.select %422, %420, %424 : vector<32x128xi1>, vector<32x128xf32>
    %c8_341 = arith.constant 8 : index
    %c0_342 = arith.constant 0 : index
    %426 = vector.load %arg5[%c8_341, %c0_342] : memref<48x128xf32, #tpu.memory_space<vmem>>, vector<32x128xf32>
    tpu.vector_store %arg5[%c8_341, %c0_342], %425 {strides = array<i32>} : memref<48x128xf32, #tpu.memory_space<vmem>>, vector<32x128xf32>,
    %c2_343 = arith.constant 2 : index
    %c0_344 = arith.constant 0 : index
    %427 = vector.load %arg5[%c2_343, %c0_344] : memref<48x128xf32, #tpu.memory_space<vmem>>, vector<32x128xf32>
    %c5_345 = arith.constant 5 : index
    %c0_346 = arith.constant 0 : index
    %428 = vector.load %arg5[%c5_345, %c0_346] : memref<48x128xf32, #tpu.memory_space<vmem>>, vector<32x128xf32>
    %c8_i32_347 = arith.constant 8 : i32
    %429 = tpu.dynamic_rotate %428 by %c8_i32_347 dim 1 : vector<32x128xf32>, i32 -> vector<32x128xf32>
    %430 = arith.addf %427, %429 : vector<32x128xf32>
    %c8_348 = arith.constant 8 : index
    %c0_349 = arith.constant 0 : index
    %431 = vector.load %arg5[%c8_348, %c0_349] : memref<48x128xf32, #tpu.memory_space<vmem>>, vector<32x128xf32>
    %c16_i32_350 = arith.constant 16 : i32
    %432 = tpu.dynamic_rotate %431 by %c16_i32_350 dim 1 : vector<32x128xf32>, i32 -> vector<32x128xf32>
    %433 = arith.addf %430, %432 : vector<32x128xf32>
    %c11_351 = arith.constant 11 : index
    %c0_352 = arith.constant 0 : index
    %434 = vector.load %arg5[%c11_351, %c0_352] : memref<48x128xf32, #tpu.memory_space<vmem>>, vector<32x128xf32>
    %c24_i32_353 = arith.constant 24 : i32
    %435 = tpu.dynamic_rotate %434 by %c24_i32_353 dim 1 : vector<32x128xf32>, i32 -> vector<32x128xf32>
    %436 = arith.addf %433, %435 : vector<32x128xf32>
    %c14_354 = arith.constant 14 : index
    %c0_355 = arith.constant 0 : index
    %437 = vector.load %arg5[%c14_354, %c0_355] : memref<48x128xf32, #tpu.memory_space<vmem>>, vector<32x128xf32>
    %c32_i32_356 = arith.constant 32 : i32
    %438 = tpu.dynamic_rotate %437 by %c32_i32_356 dim 1 : vector<32x128xf32>, i32 -> vector<32x128xf32>
    %439 = arith.addf %436, %438 : vector<32x128xf32>
    %440 = arith.truncf %439 : vector<32x128xf32> to vector<32x128xbf16>
    %c3456 = arith.constant 3456 : index
    %c0_357 = arith.constant 0 : index
    %441 = vector.load %arg2[%c3456, %c0_357] : memref<3840x128xbf16, #tpu.memory_space<vmem>>, vector<128x128xbf16>
    %cst_358 = arith.constant dense<0.000000e+00> : vector<32x128xf32>
    %442 = tpu.matmul %440, %441, %cst_358 {dimension_numbers = #tpu.dot_dimension_numbers<[1], [0], [0], [1], [0, 0, 1, 1], [], []>} : vector<32x128xbf16>, vector<128x128xbf16>, vector<32x128xf32> -> vector<32x128xf32>
    %c18 = arith.constant 18 : index
    %c0_359 = arith.constant 0 : index
    %443 = vector.load %arg3[%c18, %c0_359] : memref<24x128xf32, #tpu.memory_space<vmem>>, vector<1x128xf32>
    %444 = vector.broadcast %443 : vector<1x128xf32> to vector<32x128xf32>
    %445 = arith.addf %442, %444 : vector<32x128xf32>
    %cst_360 = arith.constant 0.000000e+00 : f32
    %446 = vector.broadcast %cst_360 : f32 to vector<32x128xf32>
    %447 = arith.cmpf oge, %445, %446 : vector<32x128xf32>
    %cst_361 = arith.constant 1.000000e-01 : f32
    %448 = vector.broadcast %cst_361 : f32 to vector<32x128xf32>
    %449 = arith.mulf %448, %445 : vector<32x128xf32>
    %450 = arith.select %447, %445, %449 : vector<32x128xi1>, vector<32x128xf32>
    %c8_362 = arith.constant 8 : index
    %c0_363 = arith.constant 0 : index
    %451 = vector.load %arg5[%c8_362, %c0_363] : memref<48x128xf32, #tpu.memory_space<vmem>>, vector<32x128xf32>
    tpu.vector_store %arg5[%c8_362, %c0_363], %450 {strides = array<i32>} : memref<48x128xf32, #tpu.memory_space<vmem>>, vector<32x128xf32>,
    %c6_364 = arith.constant 6 : index
    %c0_365 = arith.constant 0 : index
    %452 = vector.load %arg5[%c6_364, %c0_365] : memref<48x128xf32, #tpu.memory_space<vmem>>, vector<32x128xf32>
    %c7_366 = arith.constant 7 : index
    %c0_367 = arith.constant 0 : index
    %453 = vector.load %arg5[%c7_366, %c0_367] : memref<48x128xf32, #tpu.memory_space<vmem>>, vector<32x128xf32>
    %c8_i32_368 = arith.constant 8 : i32
    %454 = tpu.dynamic_rotate %453 by %c8_i32_368 dim 1 : vector<32x128xf32>, i32 -> vector<32x128xf32>
    %455 = arith.addf %452, %454 : vector<32x128xf32>
    %c8_369 = arith.constant 8 : index
    %c0_370 = arith.constant 0 : index
    %456 = vector.load %arg5[%c8_369, %c0_370] : memref<48x128xf32, #tpu.memory_space<vmem>>, vector<32x128xf32>
    %c16_i32_371 = arith.constant 16 : i32
    %457 = tpu.dynamic_rotate %456 by %c16_i32_371 dim 1 : vector<32x128xf32>, i32 -> vector<32x128xf32>
    %458 = arith.addf %455, %457 : vector<32x128xf32>
    %c9_372 = arith.constant 9 : index
    %c0_373 = arith.constant 0 : index
    %459 = vector.load %arg5[%c9_372, %c0_373] : memref<48x128xf32, #tpu.memory_space<vmem>>, vector<32x128xf32>
    %c24_i32_374 = arith.constant 24 : i32
    %460 = tpu.dynamic_rotate %459 by %c24_i32_374 dim 1 : vector<32x128xf32>, i32 -> vector<32x128xf32>
    %461 = arith.addf %458, %460 : vector<32x128xf32>
    %c10_375 = arith.constant 10 : index
    %c0_376 = arith.constant 0 : index
    %462 = vector.load %arg5[%c10_375, %c0_376] : memref<48x128xf32, #tpu.memory_space<vmem>>, vector<32x128xf32>
    %c32_i32_377 = arith.constant 32 : i32
    %463 = tpu.dynamic_rotate %462 by %c32_i32_377 dim 1 : vector<32x128xf32>, i32 -> vector<32x128xf32>
    %464 = arith.addf %461, %463 : vector<32x128xf32>
    %465 = arith.truncf %464 : vector<32x128xf32> to vector<32x128xbf16>
    %c3584 = arith.constant 3584 : index
    %c0_378 = arith.constant 0 : index
    %466 = vector.load %arg2[%c3584, %c0_378] : memref<3840x128xbf16, #tpu.memory_space<vmem>>, vector<128x128xbf16>
    %cst_379 = arith.constant dense<0.000000e+00> : vector<32x128xf32>
    %467 = tpu.matmul %465, %466, %cst_379 {dimension_numbers = #tpu.dot_dimension_numbers<[1], [0], [0], [1], [0, 0, 1, 1], [], []>} : vector<32x128xbf16>, vector<128x128xbf16>, vector<32x128xf32> -> vector<32x128xf32>
    %c19 = arith.constant 19 : index
    %c0_380 = arith.constant 0 : index
    %468 = vector.load %arg3[%c19, %c0_380] : memref<24x128xf32, #tpu.memory_space<vmem>>, vector<1x128xf32>
    %469 = vector.broadcast %468 : vector<1x128xf32> to vector<32x128xf32>
    %470 = arith.addf %467, %469 : vector<32x128xf32>
    %471 = arith.addf %420, %470 : vector<32x128xf32>
    %472 = arith.addf %369, %471 : vector<32x128xf32>
    %cst_381 = arith.constant 5.000000e-01 : f32
    %473 = vector.broadcast %cst_381 : f32 to vector<32x128xf32>
    %474 = arith.mulf %472, %473 : vector<32x128xf32>
    %cst_382 = arith.constant 0.000000e+00 : f32
    %475 = vector.broadcast %cst_382 : f32 to vector<32x128xf32>
    %476 = arith.cmpf oge, %474, %475 : vector<32x128xf32>
    %cst_383 = arith.constant 1.000000e-01 : f32
    %477 = vector.broadcast %cst_383 : f32 to vector<32x128xf32>
    %478 = arith.mulf %477, %474 : vector<32x128xf32>
    %479 = arith.select %476, %474, %478 : vector<32x128xi1>, vector<32x128xf32>
    %c8_384 = arith.constant 8 : index
    %c0_385 = arith.constant 0 : index
    %480 = vector.load %arg5[%c8_384, %c0_385] : memref<48x128xf32, #tpu.memory_space<vmem>>, vector<32x128xf32>
    tpu.vector_store %arg5[%c8_384, %c0_385], %479 {strides = array<i32>} : memref<48x128xf32, #tpu.memory_space<vmem>>, vector<32x128xf32>,
    %c5_386 = arith.constant 5 : index
    %c0_387 = arith.constant 0 : index
    %481 = vector.load %arg5[%c5_386, %c0_387] : memref<48x128xf32, #tpu.memory_space<vmem>>, vector<32x128xf32>
    %c6_388 = arith.constant 6 : index
    %c0_389 = arith.constant 0 : index
    %482 = vector.load %arg5[%c6_388, %c0_389] : memref<48x128xf32, #tpu.memory_space<vmem>>, vector<32x128xf32>
    %c8_i32_390 = arith.constant 8 : i32
    %483 = tpu.dynamic_rotate %482 by %c8_i32_390 dim 1 : vector<32x128xf32>, i32 -> vector<32x128xf32>
    %484 = arith.addf %481, %483 : vector<32x128xf32>
    %c7_391 = arith.constant 7 : index
    %c0_392 = arith.constant 0 : index
    %485 = vector.load %arg5[%c7_391, %c0_392] : memref<48x128xf32, #tpu.memory_space<vmem>>, vector<32x128xf32>
    %c16_i32_393 = arith.constant 16 : i32
    %486 = tpu.dynamic_rotate %485 by %c16_i32_393 dim 1 : vector<32x128xf32>, i32 -> vector<32x128xf32>
    %487 = arith.addf %484, %486 : vector<32x128xf32>
    %c8_394 = arith.constant 8 : index
    %c0_395 = arith.constant 0 : index
    %488 = vector.load %arg5[%c8_394, %c0_395] : memref<48x128xf32, #tpu.memory_space<vmem>>, vector<32x128xf32>
    %c24_i32_396 = arith.constant 24 : i32
    %489 = tpu.dynamic_rotate %488 by %c24_i32_396 dim 1 : vector<32x128xf32>, i32 -> vector<32x128xf32>
    %490 = arith.addf %487, %489 : vector<32x128xf32>
    %c9_397 = arith.constant 9 : index
    %c0_398 = arith.constant 0 : index
    %491 = vector.load %arg5[%c9_397, %c0_398] : memref<48x128xf32, #tpu.memory_space<vmem>>, vector<32x128xf32>
    %c32_i32_399 = arith.constant 32 : i32
    %492 = tpu.dynamic_rotate %491 by %c32_i32_399 dim 1 : vector<32x128xf32>, i32 -> vector<32x128xf32>
    %493 = arith.addf %490, %492 : vector<32x128xf32>
    %c10_400 = arith.constant 10 : index
    %c0_401 = arith.constant 0 : index
    %494 = vector.load %arg5[%c10_400, %c0_401] : memref<48x128xf32, #tpu.memory_space<vmem>>, vector<32x128xf32>
    %c40_i32 = arith.constant 40 : i32
    %495 = tpu.dynamic_rotate %494 by %c40_i32 dim 1 : vector<32x128xf32>, i32 -> vector<32x128xf32>
    %496 = arith.addf %493, %495 : vector<32x128xf32>
    %c11_402 = arith.constant 11 : index
    %c0_403 = arith.constant 0 : index
    %497 = vector.load %arg5[%c11_402, %c0_403] : memref<48x128xf32, #tpu.memory_space<vmem>>, vector<32x128xf32>
    %c48_i32_404 = arith.constant 48 : i32
    %498 = tpu.dynamic_rotate %497 by %c48_i32_404 dim 1 : vector<32x128xf32>, i32 -> vector<32x128xf32>
    %499 = arith.addf %496, %498 : vector<32x128xf32>
    %500 = arith.truncf %499 : vector<32x128xf32> to vector<32x128xbf16>
    %c3712 = arith.constant 3712 : index
    %c0_405 = arith.constant 0 : index
    %501 = vector.load %arg2[%c3712, %c0_405] : memref<3840x128xbf16, #tpu.memory_space<vmem>>, vector<128x128xbf16>
    %cst_406 = arith.constant dense<0.000000e+00> : vector<32x128xf32>
    %502 = tpu.matmul %500, %501, %cst_406 {dimension_numbers = #tpu.dot_dimension_numbers<[1], [0], [0], [1], [0, 0, 1, 1], [], []>} : vector<32x128xbf16>, vector<128x128xbf16>, vector<32x128xf32> -> vector<32x128xf32>
    %c20 = arith.constant 20 : index
    %c0_407 = arith.constant 0 : index
    %503 = vector.load %arg3[%c20, %c0_407] : memref<24x128xf32, #tpu.memory_space<vmem>>, vector<1x128xf32>
    %504 = vector.broadcast %503 : vector<1x128xf32> to vector<32x128xf32>
    %505 = arith.addf %502, %504 : vector<32x128xf32>
    %506 = math.tanh %505 : vector<32x128xf32>
    %c0_408 = arith.constant 0 : index
    %c0_409 = arith.constant 0 : index
    %c0_410 = arith.constant 0 : index
    %507 = vector.load %arg4[%c0_408, %c0_409, %c0_410] : memref<1x32x128xf32, #tpu.memory_space<vmem>>, vector<1x32x128xf32>
    %508 = vector.shape_cast %507 : vector<1x32x128xf32> to vector<32x128xf32>
    %509 = vector.shape_cast %506 : vector<32x128xf32> to vector<1x32x128xf32>
    tpu.vector_store %arg4[%c0_408, %c0_409, %c0_410], %509 {strides = array<i32>} : memref<1x32x128xf32, #tpu.memory_space<vmem>>, vector<1x32x128xf32>,
    return
  }
  func.func @transform_0(%arg0: i32) -> (i32, i32, i32) {
    %c0_i32 = arith.constant 0 : i32
    %c0_i32_0 = arith.constant 0 : i32
    %c0_i32_1 = arith.constant 0 : i32
    return %arg0, %c0_i32, %c0_i32_0 : i32, i32, i32
  }
  func.func @transform_1(%arg0: i32) -> (i32, i32) {
    %c0_i32 = arith.constant 0 : i32
    %c0_i32_0 = arith.constant 0 : i32
    %c0_i32_1 = arith.constant 0 : i32
    return %c0_i32, %c0_i32_0 : i32, i32
  }
  func.func @transform_2(%arg0: i32) -> (i32, i32) {
    %c0_i32 = arith.constant 0 : i32
    %c0_i32_0 = arith.constant 0 : i32
    %c0_i32_1 = arith.constant 0 : i32
    return %c0_i32, %c0_i32_0 : i32, i32
  }
  func.func @transform_3(%arg0: i32) -> (i32, i32, i32) {
    %c0_i32 = arith.constant 0 : i32
    %c0_i32_0 = arith.constant 0 : i32
    %c0_i32_1 = arith.constant 0 : i32
    return %arg0, %c0_i32, %c0_i32_0 : i32, i32, i32
  }
}

</mosaic_0001>

<llo_original>
// kernel: hifigan_vocoder_forward.1
$region0: #{hifigan_vocoder_forward.1}
  #allocation0 [shape = 'u32[]', space=smem, size = 0x4, offset = 0x4, fixed_abs, tag = 'smem constant byte address 0x4 - core index']
  #allocation1 [shape = 'u32[144,128]{1,0:T(1,128)}', space=vmem, size = 0x12000, scoped, tag = 'internal scratch']
  #allocation2 [shape = 'f32[48,128]{1,0:T(8,128)}', space=vmem, size = 0x6000, scoped, tag = 'scratch operand']
  %s0 = inlined_call_operand.vmem [shape: f32[2,8,256], index: 0, kind: input, shape index: {}]
  %s1 = inlined_call_operand.vmem [shape: bf16[3840,128], index: 1, kind: input, shape index: {}]
  %s2 = inlined_call_operand.vmem [shape: f32[24,128], index: 2, kind: input, shape index: {}]
  %s3 = inlined_call_operand.vmem [shape: f32[2,32,128], index: 3, kind: output, shape index: {}]
  %s4 = sld [smem:[#allocation0]]
  $region45: #{hifigan_vocoder_forward.1} parent=0
    _
  %s6 = ssub.s32 1, %s4
  %s7 = scalar_select 0, %s6, %s4
  loop: start=0, step=1, limit=4
  $region2: #{hifigan_vocoder_forward.1} parent=0 // loop_pre_header
    _
  $region3: #{hifigan_vocoder_forward.1} parent=0 // loop_header
    %s9 = sphi 0, %s13
    %p10 = scmp.ge.s32.totalorder %s9, 4
    %s19 = sphi 0, %s21
    %s22 = sphi 0, %s19
    %s23 = sphi 0, %s22
    %s39 = sphi 0, %s23
    %s43 = sphi 0, %s43
    %s45 = sphi 0, %s43
    %s46 = sphi 0, %s45
    %s60 = sphi 0, %s46
    %s64 = sphi 0, %s64
    %s66 = sphi 0, %s64
    %s67 = sphi 0, %s66
    %s81 = sphi 0, %s67
    %s87 = sphi 0, %s89
    %s90 = sphi 0, %s87
    %s91 = sphi 0, %s90
    %s107 = sphi 0, %s91
  $region4: #{hifigan_vocoder_forward.1} parent=0 // loop_header_branch
    %12 = sbr.rel (%p10) target = $region8
  $region5: #{hifigan_vocoder_forward.1} parent=0 // loop_body
    %s14 = ssub.s32 %s9, 1
    %s15 = ssub.s32 %s9, 2
    %s16 = sadd.s32 %s9, 1
    %s17 = ssub.s32 %s9, %s16
    %p18 = scmp.eq.s32.totalorder %s17, 0
    %s20 = sadd.s32 %s19, 1
    %s21 = scalar_select %p18, %s19, %s20
    %p24 = pneg %p18
    %p25 = scmp.eq.s32.totalorder %s9, 1
    %p26 = por %p24, %p25
    %p27 = scmp.ne.s32.totalorder %s19, %s22
    %p28 = scmp.eq.s32.totalorder %s9, 0
    %p29 = por %p27, %p28
    %p30 = scmp.ne.s32.totalorder %s19, %s22
    %p31 = scmp.eq.s32.totalorder %s14, 1
    %p32 = por %p30, %p31
    %p33 = scmp.ne.s32.totalorder %s22, %s23
    %p34 = scmp.eq.s32.totalorder %s14, 0
    %p35 = por %p33, %p34
    %p36 = scmp.ne.s32.totalorder %s22, %s23
    %p37 = scmp.eq.s32.totalorder %s15, 1
    %p38 = por %p36, %p37
    %p40 = scmp.ne.s32.totalorder %s23, %s39
    %p41 = scmp.eq.s32.totalorder %s15, 0
    %p42 = por %p40, %p41
    %s44 = sadd.s32 %s43, 1
    %p47 = scmp.eq.s32.totalorder %s9, 1
    %p48 = scmp.ne.s32.totalorder %s43, %s45
    %p49 = scmp.eq.s32.totalorder %s9, 0
    %p50 = por %p48, %p49
    %p51 = scmp.ne.s32.totalorder %s43, %s45
    %p52 = scmp.eq.s32.totalorder %s14, 1
    %p53 = por %p51, %p52
    %p54 = scmp.ne.s32.totalorder %s45, %s46
    %p55 = scmp.eq.s32.totalorder %s14, 0
    %p56 = por %p54, %p55
    %p57 = scmp.ne.s32.totalorder %s45, %s46
    %p58 = scmp.eq.s32.totalorder %s15, 1
    %p59 = por %p57, %p58
    %p61 = scmp.ne.s32.totalorder %s46, %s60
    %p62 = scmp.eq.s32.totalorder %s15, 0
    %p63 = por %p61, %p62
    %s65 = sadd.s32 %s64, 1
    %p68 = scmp.eq.s32.totalorder %s9, 1
    %p69 = scmp.ne.s32.totalorder %s64, %s66
    %p70 = scmp.eq.s32.totalorder %s9, 0
    %p71 = por %p69, %p70
    %p72 = scmp.ne.s32.totalorder %s64, %s66
    %p73 = scmp.eq.s32.totalorder %s14, 1
    %p74 = por %p72, %p73
    %p75 = scmp.ne.s32.totalorder %s66, %s67
    %p76 = scmp.eq.s32.totalorder %s14, 0
    %p77 = por %p75, %p76
    %p78 = scmp.ne.s32.totalorder %s66, %s67
    %p79 = scmp.eq.s32.totalorder %s15, 1
    %p80 = por %p78, %p79
    %p82 = scmp.ne.s32.totalorder %s67, %s81
    %p83 = scmp.eq.s32.totalorder %s15, 0
    %p84 = por %p82, %p83
    %s85 = ssub.s32 %s9, %s16
    %p86 = scmp.eq.s32.totalorder %s85, 0
    %s88 = sadd.s32 %s87, 1
    %s89 = scalar_select %p86, %s87, %s88
    %p92 = pneg %p86
    %p93 = scmp.eq.s32.totalorder %s9, 1
    %p94 = por %p92, %p93
    %p95 = scmp.ne.s32.totalorder %s87, %s90
    %p96 = scmp.eq.s32.totalorder %s9, 0
    %p97 = por %p95, %p96
    %p98 = scmp.ne.s32.totalorder %s87, %s90
    %p99 = scmp.eq.s32.totalorder %s14, 1
    %p100 = por %p98, %p99
    %p101 = scmp.ne.s32.totalorder %s90, %s91
    %p102 = scmp.eq.s32.totalorder %s14, 0
    %p103 = por %p101, %p102
    %p104 = scmp.ne.s32.totalorder %s90, %s91
    %p105 = scmp.eq.s32.totalorder %s15, 1
    %p106 = por %p104, %p105
    %p108 = scmp.ne.s32.totalorder %s91, %s107
    %p109 = scmp.eq.s32.totalorder %s15, 0
    %p110 = por %p108, %p109
    %p111 = scmp.le.s32.totalorder 1, %s9
    %p112 = scmp.lt.s32.totalorder %s9, 3
    %p113 = pnand %p111, %p112
    %p114 = pneg %p113
    // Predicated region
    $region9: #{hifigan_vocoder_forward.1} parent=5 // pred_check
      _
    $region10: #{hifigan_vocoder_forward.1} parent=5 // pred_check_branch
      %116 = sbr.rel (%p113) target = $region12
    $region11: #{hifigan_vocoder_forward.1} parent=5 // pred_region
      %s117 = ssub.s32 %s9, 1
      // Predicated region
      $region13: #{hifigan_vocoder_forward.1} parent=11 // pred_check
        %p118 = pneg %p56
      $region14: #{hifigan_vocoder_forward.1} parent=11 // pred_check_branch
        %120 = sbr.rel (%p118) target = $region16
      $region15: #{hifigan_vocoder_forward.1} parent=11 // pred_region
        _
      $region16: #{hifigan_vocoder_forward.1} parent=11 // pred_fallthru
        _
      // Predicated region
      $region17: #{hifigan_vocoder_forward.1} parent=11 // pred_check
        %p121 = pneg %p77
      $region18: #{hifigan_vocoder_forward.1} parent=11 // pred_check_branch
        %123 = sbr.rel (%p121) target = $region20
      $region19: #{hifigan_vocoder_forward.1} parent=11 // pred_region
        _
      $region20: #{hifigan_vocoder_forward.1} parent=11 // pred_fallthru
        _
    $region12: #{hifigan_vocoder_forward.1} parent=5 // pred_fallthru
      _
    %p124 = scmp.lt.s32.totalorder %s9, 2
    // Predicated region
    $region21: #{hifigan_vocoder_forward.1} parent=5 // pred_check
      %p125 = pneg %p124
    $region22: #{hifigan_vocoder_forward.1} parent=5 // pred_check_branch
      %127 = sbr.rel (%p125) target = $region24
    $region23: #{hifigan_vocoder_forward.1} parent=5 // pred_region
      // Predicated region
      $region25: #{hifigan_vocoder_forward.1} parent=23 // pred_check
        %p128 = pneg %p29
      $region26: #{hifigan_vocoder_forward.1} parent=23 // pred_check_branch
        %130 = sbr.rel (%p128) target = $region28
      $region27: #{hifigan_vocoder_forward.1} parent=23 // pred_region
        %p131 = scmp.lt.s32.totalorder %s9, 1
        %s132 = scalar_select %p131, %s9, 1
        %s133 = smul.addr %s132, 2
        %s134 = smul.addr %s133, 8
        %s135 = scalar_lea.vmem %s0, %s134
      $region28: #{hifigan_vocoder_forward.1} parent=23 // pred_fallthru
        _
    $region24: #{hifigan_vocoder_forward.1} parent=5 // pred_fallthru
      _
    %p136 = scmp.le.s32.totalorder 1, %s9
    %p137 = scmp.lt.s32.totalorder %s9, 3
    %p138 = pnand %p136, %p137
    %p139 = pneg %p138
    // Predicated region
    $region29: #{hifigan_vocoder_forward.1} parent=5 // pred_check
      _
    $region30: #{hifigan_vocoder_forward.1} parent=5 // pred_check_branch
      %141 = sbr.rel (%p138) target = $region32
    $region31: #{hifigan_vocoder_forward.1} parent=5 // pred_region
      %s142 = ssub.s32 %s9, 1
      %p143 = scmp.lt.s32.totalorder %s14, 1
      %s144 = scalar_select %p143, %s14, 1
      %s145 = smul.addr %s144, 2
      %s146 = smul.addr %s145, 8
      %s147 = scalar_lea.vmem %s0, %s146
      %p148 = pneg %p35
      %p149 = pneg %p32
      %p150 = pneg %p56
      %p151 = pneg %p53
      %p152 = pneg %p77
      %p153 = pneg %p74
      %p154 = pneg %p103
      %p155 = pneg %p100
      %p156 = scmp.lt.s32.totalorder %s14, 1
      %s157 = scalar_select %p156, %s14, 1
      %s158 = smul.addr %s157, 4
      %s159 = smul.addr %s158, 8
      %s160 = scalar_lea.vmem %s3, %s159
      %p161 = scmp.lt.s32.totalorder %s14, 1
      %s162 = scalar_select %p161, %s14, 1
      %s163 = smul.addr %s162, 2
      %s164 = smul.addr %s163, 8
      %s165 = scalar_lea.vmem %s0, %s164
      %p166 = scmp.lt.s32.totalorder %s14, 1
      %s167 = scalar_select %p166, %s14, 1
      %s168 = smul.addr %s167, 4
      %s169 = smul.addr %s168, 8
      %s170 = scalar_lea.vmem %s3, %s169
      %172 = vst [vmem:[#allocation2] sm:$0xff] 0.0
      %173 = vst [vmem:[#allocation2 + $0x10] sm:$0xff] 0.0
      %174 = vst [vmem:[#allocation2 + $0x18] sm:$0xff] 0.0
      %175 = vst [vmem:[#allocation2 + $0x28] sm:$0xff] 0.0
      %v176 = vld [vmem:[%s165] sm:$0xff]
      %v177 = vld [vmem:[%s165 + $0x8] sm:$0xff]
      %v178 = vpack.c.bf16 %v176, %v176
      %v179 = vpack.c.bf16 %v177, %v177
      %v180 = vld [vmem:[%s1] sm:$0xf]
      %v181 = vld [vmem:[%s1 + $0x4] sm:$0xf]
      %v182 = vld [vmem:[%s1 + $0x8] sm:$0xf]
      %v183 = vld [vmem:[%s1 + $0xc] sm:$0xf]
      %v184 = vld [vmem:[%s1 + $0x10] sm:$0xf]
      %v185 = vld [vmem:[%s1 + $0x14] sm:$0xf]
      %v186 = vld [vmem:[%s1 + $0x18] sm:$0xf]
      %v187 = vld [vmem:[%s1 + $0x1c] sm:$0xf]
      %v188 = vld [vmem:[%s1 + $0x20] sm:$0xf]
      %v189 = vld [vmem:[%s1 + $0x24] sm:$0xf]
      %v190 = vld [vmem:[%s1 + $0x28] sm:$0xf]
      %v191 = vld [vmem:[%s1 + $0x2c] sm:$0xf]
      %v192 = vld [vmem:[%s1 + $0x30] sm:$0xf]
      %v193 = vld [vmem:[%s1 + $0x34] sm:$0xf]
      %v194 = vld [vmem:[%s1 + $0x38] sm:$0xf]
      %v195 = vld [vmem:[%s1 + $0x3c] sm:$0xf]
      %v196 = vld [vmem:[%s1 + $0x40] sm:$0xf]
      %v197 = vld [vmem:[%s1 + $0x44] sm:$0xf]
      %v198 = vld [vmem:[%s1 + $0x48] sm:$0xf]
      %v199 = vld [vmem:[%s1 + $0x4c] sm:$0xf]
      %v200 = vld [vmem:[%s1 + $0x50] sm:$0xf]
      %v201 = vld [vmem:[%s1 + $0x54] sm:$0xf]
      %v202 = vld [vmem:[%s1 + $0x58] sm:$0xf]
      %v203 = vld [vmem:[%s1 + $0x5c] sm:$0xf]
      %v204 = vld [vmem:[%s1 + $0x60] sm:$0xf]
      %v205 = vld [vmem:[%s1 + $0x64] sm:$0xf]
      %v206 = vld [vmem:[%s1 + $0x68] sm:$0xf]
      %v207 = vld [vmem:[%s1 + $0x6c] sm:$0xf]
      %v208 = vld [vmem:[%s1 + $0x70] sm:$0xf]
      %v209 = vld [vmem:[%s1 + $0x74] sm:$0xf]
      %v210 = vld [vmem:[%s1 + $0x78] sm:$0xf]
      %v211 = vld [vmem:[%s1 + $0x7c] sm:$0xf]
      %v212 = vld [vmem:[%s2] sm:$0x1]
      %v213 = vlaneseq
      %v214 = vshrl.u32 %v213, 7
      %v215 = vsub.s32 0, %v214
      %v216 = vrot.slane %v212, %v215
      %v249 = vunpack.c.l.b16 %v180
      %v250 = vunpack.c.l.b16 %v181
      %v251 = vunpack.c.l.b16 %v182
      %v252 = vunpack.c.l.b16 %v183
      %v253 = vunpack.c.l.b16 %v184
      %v254 = vunpack.c.l.b16 %v185
      %v255 = vunpack.c.l.b16 %v186
      %v256 = vunpack.c.l.b16 %v187
      %v257 = vunpack.c.l.b16 %v188
      %v258 = vunpack.c.l.b16 %v189
      %v259 = vunpack.c.l.b16 %v190
      %v260 = vunpack.c.l.b16 %v191
      %v261 = vunpack.c.l.b16 %v192
      %v262 = vunpack.c.l.b16 %v193
      %v263 = vunpack.c.l.b16 %v194
      %v264 = vunpack.c.l.b16 %v195
      %v265 = vunpack.c.l.b16 %v196
      %v266 = vunpack.c.l.b16 %v197
      %v267 = vunpack.c.l.b16 %v198
      %v268 = vunpack.c.l.b16 %v199
      %v269 = vunpack.c.l.b16 %v200
      %v270 = vunpack.c.l.b16 %v201
      %v271 = vunpack.c.l.b16 %v202
      %v272 = vunpack.c.l.b16 %v203
      %v273 = vunpack.c.l.b16 %v204
      %v274 = vunpack.c.l.b16 %v205
      %v275 = vunpack.c.l.b16 %v206
      %v276 = vunpack.c.l.b16 %v207
      %v277 = vunpack.c.l.b16 %v208
      %v278 = vunpack.c.l.b16 %v209
      %v279 = vunpack.c.l.b16 %v210
      %v280 = vunpack.c.l.b16 %v211
      %v281 = vpack.c.b16 %v250, %v249
      %v282 = vpack.c.b16 %v252, %v251
      %v283 = vpack.c.b16 %v254, %v253
      %v284 = vpack.c.b16 %v256, %v255
      %v285 = vpack.c.b16 %v258, %v257
      %v286 = vpack.c.b16 %v260, %v259
      %v287 = vpack.c.b16 %v262, %v261
      %v288 = vpack.c.b16 %v264, %v263
      %v289 = vpack.c.b16 %v266, %v265
      %v290 = vpack.c.b16 %v268, %v267
      %v291 = vpack.c.b16 %v270, %v269
      %v292 = vpack.c.b16 %v272, %v271
      %v293 = vpack.c.b16 %v274, %v273
      %v294 = vpack.c.b16 %v276, %v275
      %v295 = vpack.c.b16 %v278, %v277
      %v296 = vpack.c.b16 %v280, %v279
      %313 = vmatprep.subr.bf16.mxu0 0
      %314 = vmatpush1.bf16.msra.mxu0 %v288
      %315 = vmatprep.subr.bf16.mxu0 0
      %316 = vmatpush1.bf16.msra.mxu0 %v287
      %317 = vmatprep.subr.bf16.mxu0 0
      %318 = vmatpush1.bf16.msra.mxu0 %v286
      %319 = vmatprep.subr.bf16.mxu0 0
      %320 = vmatpush1.bf16.msra.mxu0 %v285
      %321 = vmatprep.subr.bf16.mxu0 0
      %322 = vmatpush1.bf16.msra.mxu0 %v284
      %323 = vmatprep.subr.bf16.mxu0 0
      %324 = vmatpush1.bf16.msra.mxu0 %v283
      %325 = vmatprep.subr.bf16.mxu0 0
      %326 = vmatpush1.bf16.msra.mxu0 %v282
      %327 = vmatprep.subr.bf16.mxu0 0
      %328 = vmatpush1.bf16.msra.mxu0 %v281
      %329 = vmatprep.subr.bf16.mxu0 0
      %330 = vmatpush2.bf16.msra.mxu0 %v296
      %331 = vmatprep.subr.bf16.mxu0 0
      %332 = vmatpush2.bf16.msra.mxu0 %v295
      %333 = vmatprep.subr.bf16.mxu0 0
      %334 = vmatpush2.bf16.msra.mxu0 %v294
      %335 = vmatprep.subr.bf16.mxu0 0
      %336 = vmatpush2.bf16.msra.mxu0 %v293
      %337 = vmatprep.subr.bf16.mxu0 0
      %338 = vmatpush2.bf16.msra.mxu0 %v292
      %339 = vmatprep.subr.bf16.mxu0 0
      %340 = vmatpush2.bf16.msra.mxu0 %v291
      %341 = vmatprep.subr.bf16.mxu0 0
      %342 = vmatpush2.bf16.msra.mxu0 %v290
      %343 = vmatprep.subr.bf16.mxu0 0
      %344 = vmatpush2.bf16.msra.mxu0 %v289
      %345 = vmatprep.mubr.bf16.mxu0 %v179
      %346 = vmatmul.mubr.bf16.gmra.mxu0 %v178
      %v347 = vpop.f32.mrf.mxu0
      %v348 = vadd.f32 %v216, %v347
      %v349 = vpop.f32.mrf.mxu0
      %v350 = vpop.f32.mrf.mxu0
      %v351 = vpop.f32.mrf.mxu0
      %352 = vdwg.mxu0
      %353 = vst [vmem:[#allocation2 + $0x8] sm:$0xff] %v348
      %v354 = vld [vmem:[#allocation2 + $0x5] sm:$0xff]
      %v355 = vpack.c.bf16 %v354, %v354
      %v356 = vld [vmem:[%s1 + $0x80] sm:$0xf]
      %v357 = vld [vmem:[%s1 + $0x84] sm:$0xf]
      %v358 = vld [vmem:[%s1 + $0x88] sm:$0xf]
      %v359 = vld [vmem:[%s1 + $0x8c] sm:$0xf]
      %v360 = vld [vmem:[%s1 + $0x90] sm:$0xf]
      %v361 = vld [vmem:[%s1 + $0x94] sm:$0xf]
      %v362 = vld [vmem:[%s1 + $0x98] sm:$0xf]
      %v363 = vld [vmem:[%s1 + $0x9c] sm:$0xf]
      %v364 = vld [vmem:[%s1 + $0xa0] sm:$0xf]
      %v365 = vld [vmem:[%s1 + $0xa4] sm:$0xf]
      %v366 = vld [vmem:[%s1 + $0xa8] sm:$0xf]
      %v367 = vld [vmem:[%s1 + $0xac] sm:$0xf]
      %v368 = vld [vmem:[%s1 + $0xb0] sm:$0xf]
      %v369 = vld [vmem:[%s1 + $0xb4] sm:$0xf]
      %v370 = vld [vmem:[%s1 + $0xb8] sm:$0xf]
      %v371 = vld [vmem:[%s1 + $0xbc] sm:$0xf]
      %v372 = vld [vmem:[#allocation2 + $0x6] sm:$0xff]
      %v373 = vpack.c.bf16 %v372, %v372
      %v374 = vld [vmem:[%s1 + $0xc0] sm:$0xf]
      %v375 = vld [vmem:[%s1 + $0xc4] sm:$0xf]
      %v376 = vld [vmem:[%s1 + $0xc8] sm:$0xf]
      %v377 = vld [vmem:[%s1 + $0xcc] sm:$0xf]
      %v378 = vld [vmem:[%s1 + $0xd0] sm:$0xf]
      %v379 = vld [vmem:[%s1 + $0xd4] sm:$0xf]
      %v380 = vld [vmem:[%s1 + $0xd8] sm:$0xf]
      %v381 = vld [vmem:[%s1 + $0xdc] sm:$0xf]
      %v382 = vld [vmem:[%s1 + $0xe0] sm:$0xf]
      %v383 = vld [vmem:[%s1 + $0xe4] sm:$0xf]
      %v384 = vld [vmem:[%s1 + $0xe8] sm:$0xf]
      %v385 = vld [vmem:[%s1 + $0xec] sm:$0xf]
      %v386 = vld [vmem:[%s1 + $0xf0] sm:$0xf]
      %v387 = vld [vmem:[%s1 + $0xf4] sm:$0xf]
      %v388 = vld [vmem:[%s1 + $0xf8] sm:$0xf]
      %v389 = vld [vmem:[%s1 + $0xfc] sm:$0xf]
      %v406 = vunpack.c.l.b16 %v374
      %v407 = vunpack.c.l.b16 %v375
      %v408 = vunpack.c.l.b16 %v376
      %v409 = vunpack.c.l.b16 %v377
      %v410 = vunpack.c.l.b16 %v378
      %v411 = vunpack.c.l.b16 %v379
      %v412 = vunpack.c.l.b16 %v380
      %v413 = vunpack.c.l.b16 %v381
      %v414 = vunpack.c.l.b16 %v382
      %v415 = vunpack.c.l.b16 %v383
      %v416 = vunpack.c.l.b16 %v384
      %v417 = vunpack.c.l.b16 %v385
      %v418 = vunpack.c.l.b16 %v386
      %v419 = vunpack.c.l.b16 %v387
      %v420 = vunpack.c.l.b16 %v388
      %v421 = vunpack.c.l.b16 %v389
      %v422 = vpack.c.b16 %v407, %v406
      %v423 = vpack.c.b16 %v409, %v408
      %v424 = vpack.c.b16 %v411, %v410
      %v425 = vpack.c.b16 %v413, %v412
      %v426 = vpack.c.b16 %v415, %v414
      %v427 = vpack.c.b16 %v417, %v416
      %v428 = vpack.c.b16 %v419, %v418
      %v429 = vpack.c.b16 %v421, %v420
      %438 = vmatprep.subr.bf16.mxu0 0
      %439 = vmatpush1.bf16.msra.mxu0 %v429
      %440 = vmatprep.subr.bf16.mxu0 0
      %441 = vmatpush1.bf16.msra.mxu0 %v428
      %442 = vmatprep.subr.bf16.mxu0 0
      %443 = vmatpush1.bf16.msra.mxu0 %v427
      %444 = vmatprep.subr.bf16.mxu0 0
      %445 = vmatpush1.bf16.msra.mxu0 %v426
      %446 = vmatprep.subr.bf16.mxu0 0
      %447 = vmatpush1.bf16.msra.mxu0 %v425
      %448 = vmatprep.subr.bf16.mxu0 0
      %449 = vmatpush1.bf16.msra.mxu0 %v424
      %450 = vmatprep.subr.bf16.mxu0 0
      %451 = vmatpush1.bf16.msra.mxu0 %v423
      %452 = vmatprep.subr.bf16.mxu0 0
      %453 = vmatpush1.bf16.msra.mxu0 %v422
      %454 = vmatprep.subr.bf16.mxu0 0
      %455 = vmatpush2.bf16.msra.mxu0 0
      %456 = vmatprep.subr.bf16.mxu0 0
      %457 = vmatpush2.bf16.msra.mxu0 0
      %458 = vmatprep.subr.bf16.mxu0 0
      %459 = vmatpush2.bf16.msra.mxu0 0
      %460 = vmatprep.subr.bf16.mxu0 0
      %461 = vmatpush2.bf16.msra.mxu0 0
      %462 = vmatprep.subr.bf16.mxu0 0
      %463 = vmatpush2.bf16.msra.mxu0 0
      %464 = vmatprep.subr.bf16.mxu0 0
      %465 = vmatpush2.bf16.msra.mxu0 0
      %466 = vmatprep.subr.bf16.mxu0 0
      %467 = vmatpush2.bf16.msra.mxu0 0
      %468 = vmatprep.subr.bf16.mxu0 0
      %469 = vmatpush2.bf16.msra.mxu0 0
      %470 = vmatprep.mubr.bf16.mxu0 0
      %471 = vmatmul.mubr.bf16.gmra.mxu0 %v373
      %v472 = vpop.f32.mrf.mxu0
      %v473 = vadd.f32 0.0, %v472
      %v474 = vpop.f32.mrf.mxu0
      %v475 = vpop.f32.mrf.mxu0
      %v476 = vpop.f32.mrf.mxu0
      %477 = vdwg.mxu0
      %v494 = vunpack.c.l.b16 %v356
      %v495 = vunpack.c.l.b16 %v357
      %v496 = vunpack.c.l.b16 %v358
      %v497 = vunpack.c.l.b16 %v359
      %v498 = vunpack.c.l.b16 %v360
      %v499 = vunpack.c.l.b16 %v361
      %v500 = vunpack.c.l.b16 %v362
      %v501 = vunpack.c.l.b16 %v363
      %v502 = vunpack.c.l.b16 %v364
      %v503 = vunpack.c.l.b16 %v365
      %v504 = vunpack.c.l.b16 %v366
      %v505 = vunpack.c.l.b16 %v367
      %v506 = vunpack.c.l.b16 %v368
      %v507 = vunpack.c.l.b16 %v369
      %v508 = vunpack.c.l.b16 %v370
      %v509 = vunpack.c.l.b16 %v371
      %v510 = vpack.c.b16 %v495, %v494
      %v511 = vpack.c.b16 %v497, %v496
      %v512 = vpack.c.b16 %v499, %v498
      %v513 = vpack.c.b16 %v501, %v500
      %v514 = vpack.c.b16 %v503, %v502
      %v515 = vpack.c.b16 %v505, %v504
      %v516 = vpack.c.b16 %v507, %v506
      %v517 = vpack.c.b16 %v509, %v508
      %526 = vmatprep.subr.bf16.mxu0 0
      %527 = vmatpush1.bf16.msra.mxu0 %v517
      %528 = vmatprep.subr.bf16.mxu0 0
      %529 = vmatpush1.bf16.msra.mxu0 %v516
      %530 = vmatprep.subr.bf16.mxu0 0
      %531 = vmatpush1.bf16.msra.mxu0 %v515
      %532 = vmatprep.subr.bf16.mxu0 0
      %533 = vmatpush1.bf16.msra.mxu0 %v514
      %534 = vmatprep.subr.bf16.mxu0 0
      %535 = vmatpush1.bf16.msra.mxu0 %v513
      %536 = vmatprep.subr.bf16.mxu0 0
      %537 = vmatpush1.bf16.msra.mxu0 %v512
      %538 = vmatprep.subr.bf16.mxu0 0
      %539 = vmatpush1.bf16.msra.mxu0 %v511
      %540 = vmatprep.subr.bf16.mxu0 0
      %541 = vmatpush1.bf16.msra.mxu0 %v510
      %542 = vmatprep.subr.bf16.mxu0 0
      %543 = vmatpush2.bf16.msra.mxu0 0
      %544 = vmatprep.subr.bf16.mxu0 0
      %545 = vmatpush2.bf16.msra.mxu0 0
      %546 = vmatprep.subr.bf16.mxu0 0
      %547 = vmatpush2.bf16.msra.mxu0 0
      %548 = vmatprep.subr.bf16.mxu0 0
      %549 = vmatpush2.bf16.msra.mxu0 0
      %550 = vmatprep.subr.bf16.mxu0 0
      %551 = vmatpush2.bf16.msra.mxu0 0
      %552 = vmatprep.subr.bf16.mxu0 0
      %553 = vmatpush2.bf16.msra.mxu0 0
      %554 = vmatprep.subr.bf16.mxu0 0
      %555 = vmatpush2.bf16.msra.mxu0 0
      %556 = vmatprep.subr.bf16.mxu0 0
      %557 = vmatpush2.bf16.msra.mxu0 0
      %558 = vmatprep.mubr.bf16.mxu0 0
      %559 = vmatmul.mubr.bf16.gmra.mxu0 %v355
      %v560 = vpop.f32.mrf.mxu0
      %v561 = vadd.f32 %v473, %v560
      %v562 = vpop.f32.mrf.mxu0
      %v563 = vpop.f32.mrf.mxu0
      %v564 = vpop.f32.mrf.mxu0
      %565 = vdwg.mxu0
      %v566 = vld [vmem:[#allocation2 + $0x7] sm:$0xff]
      %v567 = vpack.c.bf16 %v566, %v566
      %v568 = vld [vmem:[%s1 + $0x100] sm:$0xf]
      %v569 = vld [vmem:[%s1 + $0x104] sm:$0xf]
      %v570 = vld [vmem:[%s1 + $0x108] sm:$0xf]
      %v571 = vld [vmem:[%s1 + $0x10c] sm:$0xf]
      %v572 = vld [vmem:[%s1 + $0x110] sm:$0xf]
      %v573 = vld [vmem:[%s1 + $0x114] sm:$0xf]
      %v574 = vld [vmem:[%s1 + $0x118] sm:$0xf]
      %v575 = vld [vmem:[%s1 + $0x11c] sm:$0xf]
      %v576 = vld [vmem:[%s1 + $0x120] sm:$0xf]
      %v577 = vld [vmem:[%s1 + $0x124] sm:$0xf]
      %v578 = vld [vmem:[%s1 + $0x128] sm:$0xf]
      %v579 = vld [vmem:[%s1 + $0x12c] sm:$0xf]
      %v580 = vld [vmem:[%s1 + $0x130] sm:$0xf]
      %v581 = vld [vmem:[%s1 + $0x134] sm:$0xf]
      %v582 = vld [vmem:[%s1 + $0x138] sm:$0xf]
      %v583 = vld [vmem:[%s1 + $0x13c] sm:$0xf]
      %v600 = vunpack.c.l.b16 %v568
      %v601 = vunpack.c.l.b16 %v569
      %v602 = vunpack.c.l.b16 %v570
      %v603 = vunpack.c.l.b16 %v571
      %v604 = vunpack.c.l.b16 %v572
      %v605 = vunpack.c.l.b16 %v573
      %v606 = vunpack.c.l.b16 %v574
      %v607 = vunpack.c.l.b16 %v575
      %v608 = vunpack.c.l.b16 %v576
      %v609 = vunpack.c.l.b16 %v577
      %v610 = vunpack.c.l.b16 %v578
      %v611 = vunpack.c.l.b16 %v579
      %v612 = vunpack.c.l.b16 %v580
      %v613 = vunpack.c.l.b16 %v581
      %v614 = vunpack.c.l.b16 %v582
      %v615 = vunpack.c.l.b16 %v583
      %v616 = vpack.c.b16 %v601, %v600
      %v617 = vpack.c.b16 %v603, %v602
      %v618 = vpack.c.b16 %v605, %v604
      %v619 = vpack.c.b16 %v607, %v606
      %v620 = vpack.c.b16 %v609, %v608
      %v621 = vpack.c.b16 %v611, %v610
      %v622 = vpack.c.b16 %v613, %v612
      %v623 = vpack.c.b16 %v615, %v614
      %632 = vmatprep.subr.bf16.mxu0 0
      %633 = vmatpush1.bf16.msra.mxu0 %v623
      %634 = vmatprep.subr.bf16.mxu0 0
      %635 = vmatpush1.bf16.msra.mxu0 %v622
      %636 = vmatprep.subr.bf16.mxu0 0
      %637 = vmatpush1.bf16.msra.mxu0 %v621
      %638 = vmatprep.subr.bf16.mxu0 0
      %639 = vmatpush1.bf16.msra.mxu0 %v620
      %640 = vmatprep.subr.bf16.mxu0 0
      %641 = vmatpush1.bf16.msra.mxu0 %v619
      %642 = vmatprep.subr.bf16.mxu0 0
      %643 = vmatpush1.bf16.msra.mxu0 %v618
      %644 = vmatprep.subr.bf16.mxu0 0
      %645 = vmatpush1.bf16.msra.mxu0 %v617
      %646 = vmatprep.subr.bf16.mxu0 0
      %647 = vmatpush1.bf16.msra.mxu0 %v616
      %648 = vmatprep.subr.bf16.mxu0 0
      %649 = vmatpush2.bf16.msra.mxu0 0
      %650 = vmatprep.subr.bf16.mxu0 0
      %651 = vmatpush2.bf16.msra.mxu0 0
      %652 = vmatprep.subr.bf16.mxu0 0
      %653 = vmatpush2.bf16.msra.mxu0 0
      %654 = vmatprep.subr.bf16.mxu0 0
      %655 = vmatpush2.bf16.msra.mxu0 0
      %656 = vmatprep.subr.bf16.mxu0 0
      %657 = vmatpush2.bf16.msra.mxu0 0
      %658 = vmatprep.subr.bf16.mxu0 0
      %659 = vmatpush2.bf16.msra.mxu0 0
      %660 = vmatprep.subr.bf16.mxu0 0
      %661 = vmatpush2.bf16.msra.mxu0 0
      %662 = vmatprep.subr.bf16.mxu0 0
      %663 = vmatpush2.bf16.msra.mxu0 0
      %664 = vmatprep.mubr.bf16.mxu0 0
      %665 = vmatmul.mubr.bf16.gmra.mxu0 %v567
      %v666 = vpop.f32.mrf.mxu0
      %v667 = vadd.f32 0.0, %v666
      %v668 = vpop.f32.mrf.mxu0
      %v669 = vpop.f32.mrf.mxu0
      %v670 = vpop.f32.mrf.mxu0
      %671 = vdwg.mxu0
      %v672 = vadd.f32 %v561, %v667
      %v673 = vld [vmem:[#allocation2 + $0x8] sm:$0xff]
      %v674 = vpack.c.bf16 %v673, %v673
      %v675 = vld [vmem:[%s1 + $0x140] sm:$0xf]
      %v676 = vld [vmem:[%s1 + $0x144] sm:$0xf]
      %v677 = vld [vmem:[%s1 + $0x148] sm:$0xf]
      %v678 = vld [vmem:[%s1 + $0x14c] sm:$0xf]
      %v679 = vld [vmem:[%s1 + $0x150] sm:$0xf]
      %v680 = vld [vmem:[%s1 + $0x154] sm:$0xf]
      %v681 = vld [vmem:[%s1 + $0x158] sm:$0xf]
      %v682 = vld [vmem:[%s1 + $0x15c] sm:$0xf]
      %v683 = vld [vmem:[%s1 + $0x160] sm:$0xf]
      %v684 = vld [vmem:[%s1 + $0x164] sm:$0xf]
      %v685 = vld [vmem:[%s1 + $0x168] sm:$0xf]
      %v686 = vld [vmem:[%s1 + $0x16c] sm:$0xf]
      %v687 = vld [vmem:[%s1 + $0x170] sm:$0xf]
      %v688 = vld [vmem:[%s1 + $0x174] sm:$0xf]
      %v689 = vld [vmem:[%s1 + $0x178] sm:$0xf]
      %v690 = vld [vmem:[%s1 + $0x17c] sm:$0xf]
      %v707 = vunpack.c.l.b16 %v675
      %v708 = vunpack.c.l.b16 %v676
      %v709 = vunpack.c.l.b16 %v677
      %v710 = vunpack.c.l.b16 %v678
      %v711 = vunpack.c.l.b16 %v679
      %v712 = vunpack.c.l.b16 %v680
      %v713 = vunpack.c.l.b16 %v681
      %v714 = vunpack.c.l.b16 %v682
      %v715 = vunpack.c.l.b16 %v683
      %v716 = vunpack.c.l.b16 %v684
      %v717 = vunpack.c.l.b16 %v685
      %v718 = vunpack.c.l.b16 %v686
      %v719 = vunpack.c.l.b16 %v687
      %v720 = vunpack.c.l.b16 %v688
      %v721 = vunpack.c.l.b16 %v689
      %v722 = vunpack.c.l.b16 %v690
      %v723 = vpack.c.b16 %v708, %v707
      %v724 = vpack.c.b16 %v710, %v709
      %v725 = vpack.c.b16 %v712, %v711
      %v726 = vpack.c.b16 %v714, %v713
      %v727 = vpack.c.b16 %v716, %v715
      %v728 = vpack.c.b16 %v718, %v717
      %v729 = vpack.c.b16 %v720, %v719
      %v730 = vpack.c.b16 %v722, %v721
      %739 = vmatprep.subr.bf16.mxu0 0
      %740 = vmatpush1.bf16.msra.mxu0 %v730
      %741 = vmatprep.subr.bf16.mxu0 0
      %742 = vmatpush1.bf16.msra.mxu0 %v729
      %743 = vmatprep.subr.bf16.mxu0 0
      %744 = vmatpush1.bf16.msra.mxu0 %v728
      %745 = vmatprep.subr.bf16.mxu0 0
      %746 = vmatpush1.bf16.msra.mxu0 %v727
      %747 = vmatprep.subr.bf16.mxu0 0
      %748 = vmatpush1.bf16.msra.mxu0 %v726
      %749 = vmatprep.subr.bf16.mxu0 0
      %750 = vmatpush1.bf16.msra.mxu0 %v725
      %751 = vmatprep.subr.bf16.mxu0 0
      %752 = vmatpush1.bf16.msra.mxu0 %v724
      %753 = vmatprep.subr.bf16.mxu0 0
      %754 = vmatpush1.bf16.msra.mxu0 %v723
      %755 = vmatprep.subr.bf16.mxu0 0
      %756 = vmatpush2.bf16.msra.mxu0 0
      %757 = vmatprep.subr.bf16.mxu0 0
      %758 = vmatpush2.bf16.msra.mxu0 0
      %759 = vmatprep.subr.bf16.mxu0 0
      %760 = vmatpush2.bf16.msra.mxu0 0
      %761 = vmatprep.subr.bf16.mxu0 0
      %762 = vmatpush2.bf16.msra.mxu0 0
      %763 = vmatprep.subr.bf16.mxu0 0
      %764 = vmatpush2.bf16.msra.mxu0 0
      %765 = vmatprep.subr.bf16.mxu0 0
      %766 = vmatpush2.bf16.msra.mxu0 0
      %767 = vmatprep.subr.bf16.mxu0 0
      %768 = vmatpush2.bf16.msra.mxu0 0
      %769 = vmatprep.subr.bf16.mxu0 0
      %770 = vmatpush2.bf16.msra.mxu0 0
      %771 = vmatprep.mubr.bf16.mxu0 0
      %772 = vmatmul.mubr.bf16.gmra.mxu0 %v674
      %v773 = vpop.f32.mrf.mxu0
      %v774 = vadd.f32 0.0, %v773
      %v775 = vpop.f32.mrf.mxu0
      %v776 = vpop.f32.mrf.mxu0
      %v777 = vpop.f32.mrf.mxu0
      %778 = vdwg.mxu0
      %v779 = vadd.f32 %v672, %v774
      %v780 = vld [vmem:[#allocation2 + $0x9] sm:$0xff]
      %v781 = vpack.c.bf16 %v780, %v780
      %v782 = vld [vmem:[%s1 + $0x180] sm:$0xf]
      %v783 = vld [vmem:[%s1 + $0x184] sm:$0xf]
      %v784 = vld [vmem:[%s1 + $0x188] sm:$0xf]
      %v785 = vld [vmem:[%s1 + $0x18c] sm:$0xf]
      %v786 = vld [vmem:[%s1 + $0x190] sm:$0xf]
      %v787 = vld [vmem:[%s1 + $0x194] sm:$0xf]
      %v788 = vld [vmem:[%s1 + $0x198] sm:$0xf]
      %v789 = vld [vmem:[%s1 + $0x19c] sm:$0xf]
      %v790 = vld [vmem:[%s1 + $0x1a0] sm:$0xf]
      %v791 = vld [vmem:[%s1 + $0x1a4] sm:$0xf]
      %v792 = vld [vmem:[%s1 + $0x1a8] sm:$0xf]
      %v793 = vld [vmem:[%s1 + $0x1ac] sm:$0xf]
      %v794 = vld [vmem:[%s1 + $0x1b0] sm:$0xf]
      %v795 = vld [vmem:[%s1 + $0x1b4] sm:$0xf]
      %v796 = vld [vmem:[%s1 + $0x1b8] sm:$0xf]
      %v797 = vld [vmem:[%s1 + $0x1bc] sm:$0xf]
      %v814 = vunpack.c.l.b16 %v782
      %v815 = vunpack.c.l.b16 %v783
      %v816 = vunpack.c.l.b16 %v784
      %v817 = vunpack.c.l.b16 %v785
      %v818 = vunpack.c.l.b16 %v786
      %v819 = vunpack.c.l.b16 %v787
      %v820 = vunpack.c.l.b16 %v788
      %v821 = vunpack.c.l.b16 %v789
      %v822 = vunpack.c.l.b16 %v790
      %v823 = vunpack.c.l.b16 %v791
      %v824 = vunpack.c.l.b16 %v792
      %v825 = vunpack.c.l.b16 %v793
      %v826 = vunpack.c.l.b16 %v794
      %v827 = vunpack.c.l.b16 %v795
      %v828 = vunpack.c.l.b16 %v796
      %v829 = vunpack.c.l.b16 %v797
      %v830 = vpack.c.b16 %v815, %v814
      %v831 = vpack.c.b16 %v817, %v816
      %v832 = vpack.c.b16 %v819, %v818
      %v833 = vpack.c.b16 %v821, %v820
      %v834 = vpack.c.b16 %v823, %v822
      %v835 = vpack.c.b16 %v825, %v824
      %v836 = vpack.c.b16 %v827, %v826
      %v837 = vpack.c.b16 %v829, %v828
      %846 = vmatprep.subr.bf16.mxu0 0
      %847 = vmatpush1.bf16.msra.mxu0 %v837
      %848 = vmatprep.subr.bf16.mxu0 0
      %849 = vmatpush1.bf16.msra.mxu0 %v836
      %850 = vmatprep.subr.bf16.mxu0 0
      %851 = vmatpush1.bf16.msra.mxu0 %v835
      %852 = vmatprep.subr.bf16.mxu0 0
      %853 = vmatpush1.bf16.msra.mxu0 %v834
      %854 = vmatprep.subr.bf16.mxu0 0
      %855 = vmatpush1.bf16.msra.mxu0 %v833
      %856 = vmatprep.subr.bf16.mxu0 0
      %857 = vmatpush1.bf16.msra.mxu0 %v832
      %858 = vmatprep.subr.bf16.mxu0 0
      %859 = vmatpush1.bf16.msra.mxu0 %v831
      %860 = vmatprep.subr.bf16.mxu0 0
      %861 = vmatpush1.bf16.msra.mxu0 %v830
      %862 = vmatprep.subr.bf16.mxu0 0
      %863 = vmatpush2.bf16.msra.mxu0 0
      %864 = vmatprep.subr.bf16.mxu0 0
      %865 = vmatpush2.bf16.msra.mxu0 0
      %866 = vmatprep.subr.bf16.mxu0 0
      %867 = vmatpush2.bf16.msra.mxu0 0
      %868 = vmatprep.subr.bf16.mxu0 0
      %869 = vmatpush2.bf16.msra.mxu0 0
      %870 = vmatprep.subr.bf16.mxu0 0
      %871 = vmatpush2.bf16.msra.mxu0 0
      %872 = vmatprep.subr.bf16.mxu0 0
      %873 = vmatpush2.bf16.msra.mxu0 0
      %874 = vmatprep.subr.bf16.mxu0 0
      %875 = vmatpush2.bf16.msra.mxu0 0
      %876 = vmatprep.subr.bf16.mxu0 0
      %877 = vmatpush2.bf16.msra.mxu0 0
      %878 = vmatprep.mubr.bf16.mxu0 0
      %879 = vmatmul.mubr.bf16.gmra.mxu0 %v781
      %v880 = vpop.f32.mrf.mxu0
      %v881 = vadd.f32 0.0, %v880
      %v882 = vpop.f32.mrf.mxu0
      %v883 = vpop.f32.mrf.mxu0
      %v884 = vpop.f32.mrf.mxu0
      %885 = vdwg.mxu0
      %v886 = vadd.f32 %v779, %v881
      %v887 = vld [vmem:[#allocation2 + $0xa] sm:$0xff]
      %v888 = vpack.c.bf16 %v887, %v887
      %v889 = vld [vmem:[%s1 + $0x1c0] sm:$0xf]
      %v890 = vld [vmem:[%s1 + $0x1c4] sm:$0xf]
      %v891 = vld [vmem:[%s1 + $0x1c8] sm:$0xf]
      %v892 = vld [vmem:[%s1 + $0x1cc] sm:$0xf]
      %v893 = vld [vmem:[%s1 + $0x1d0] sm:$0xf]
      %v894 = vld [vmem:[%s1 + $0x1d4] sm:$0xf]
      %v895 = vld [vmem:[%s1 + $0x1d8] sm:$0xf]
      %v896 = vld [vmem:[%s1 + $0x1dc] sm:$0xf]
      %v897 = vld [vmem:[%s1 + $0x1e0] sm:$0xf]
      %v898 = vld [vmem:[%s1 + $0x1e4] sm:$0xf]
      %v899 = vld [vmem:[%s1 + $0x1e8] sm:$0xf]
      %v900 = vld [vmem:[%s1 + $0x1ec] sm:$0xf]
      %v901 = vld [vmem:[%s1 + $0x1f0] sm:$0xf]
      %v902 = vld [vmem:[%s1 + $0x1f4] sm:$0xf]
      %v903 = vld [vmem:[%s1 + $0x1f8] sm:$0xf]
      %v904 = vld [vmem:[%s1 + $0x1fc] sm:$0xf]
      %v921 = vunpack.c.l.b16 %v889
      %v922 = vunpack.c.l.b16 %v890
      %v923 = vunpack.c.l.b16 %v891
      %v924 = vunpack.c.l.b16 %v892
      %v925 = vunpack.c.l.b16 %v893
      %v926 = vunpack.c.l.b16 %v894
      %v927 = vunpack.c.l.b16 %v895
      %v928 = vunpack.c.l.b16 %v896
      %v929 = vunpack.c.l.b16 %v897
      %v930 = vunpack.c.l.b16 %v898
      %v931 = vunpack.c.l.b16 %v899
      %v932 = vunpack.c.l.b16 %v900
      %v933 = vunpack.c.l.b16 %v901
      %v934 = vunpack.c.l.b16 %v902
      %v935 = vunpack.c.l.b16 %v903
      %v936 = vunpack.c.l.b16 %v904
      %v937 = vpack.c.b16 %v922, %v921
      %v938 = vpack.c.b16 %v924, %v923
      %v939 = vpack.c.b16 %v926, %v925
      %v940 = vpack.c.b16 %v928, %v927
      %v941 = vpack.c.b16 %v930, %v929
      %v942 = vpack.c.b16 %v932, %v931
      %v943 = vpack.c.b16 %v934, %v933
      %v944 = vpack.c.b16 %v936, %v935
      %953 = vmatprep.subr.bf16.mxu0 0
      %954 = vmatpush1.bf16.msra.mxu0 %v944
      %955 = vmatprep.subr.bf16.mxu0 0
      %956 = vmatpush1.bf16.msra.mxu0 %v943
      %957 = vmatprep.subr.bf16.mxu0 0
      %958 = vmatpush1.bf16.msra.mxu0 %v942
      %959 = vmatprep.subr.bf16.mxu0 0
      %960 = vmatpush1.bf16.msra.mxu0 %v941
      %961 = vmatprep.subr.bf16.mxu0 0
      %962 = vmatpush1.bf16.msra.mxu0 %v940
      %963 = vmatprep.subr.bf16.mxu0 0
      %964 = vmatpush1.bf16.msra.mxu0 %v939
      %965 = vmatprep.subr.bf16.mxu0 0
      %966 = vmatpush1.bf16.msra.mxu0 %v938
      %967 = vmatprep.subr.bf16.mxu0 0
      %968 = vmatpush1.bf16.msra.mxu0 %v937
      %969 = vmatprep.subr.bf16.mxu0 0
      %970 = vmatpush2.bf16.msra.mxu0 0
      %971 = vmatprep.subr.bf16.mxu0 0
      %972 = vmatpush2.bf16.msra.mxu0 0
      %973 = vmatprep.subr.bf16.mxu0 0
      %974 = vmatpush2.bf16.msra.mxu0 0
      %975 = vmatprep.subr.bf16.mxu0 0
      %976 = vmatpush2.bf16.msra.mxu0 0
      %977 = vmatprep.subr.bf16.mxu0 0
      %978 = vmatpush2.bf16.msra.mxu0 0
      %979 = vmatprep.subr.bf16.mxu0 0
      %980 = vmatpush2.bf16.msra.mxu0 0
      %981 = vmatprep.subr.bf16.mxu0 0
      %982 = vmatpush2.bf16.msra.mxu0 0
      %983 = vmatprep.subr.bf16.mxu0 0
      %984 = vmatpush2.bf16.msra.mxu0 0
      %985 = vmatprep.mubr.bf16.mxu0 0
      %986 = vmatmul.mubr.bf16.gmra.mxu0 %v888
      %v987 = vpop.f32.mrf.mxu0
      %v988 = vadd.f32 0.0, %v987
      %v989 = vpop.f32.mrf.mxu0
      %v990 = vpop.f32.mrf.mxu0
      %v991 = vpop.f32.mrf.mxu0
      %992 = vdwg.mxu0
      %v993 = vadd.f32 %v886, %v988
      %v994 = vld [vmem:[#allocation2 + $0xb] sm:$0xff]
      %v995 = vpack.c.bf16 %v994, %v994
      %v996 = vld [vmem:[%s1 + $0x200] sm:$0xf]
      %v997 = vld [vmem:[%s1 + $0x204] sm:$0xf]
      %v998 = vld [vmem:[%s1 + $0x208] sm:$0xf]
      %v999 = vld [vmem:[%s1 + $0x20c] sm:$0xf]
      %v1000 = vld [vmem:[%s1 + $0x210] sm:$0xf]
      %v1001 = vld [vmem:[%s1 + $0x214] sm:$0xf]
      %v1002 = vld [vmem:[%s1 + $0x218] sm:$0xf]
      %v1003 = vld [vmem:[%s1 + $0x21c] sm:$0xf]
      %v1004 = vld [vmem:[%s1 + $0x220] sm:$0xf]
      %v1005 = vld [vmem:[%s1 + $0x224] sm:$0xf]
      %v1006 = vld [vmem:[%s1 + $0x228] sm:$0xf]
      %v1007 = vld [vmem:[%s1 + $0x22c] sm:$0xf]
      %v1008 = vld [vmem:[%s1 + $0x230] sm:$0xf]
      %v1009 = vld [vmem:[%s1 + $0x234] sm:$0xf]
      %v1010 = vld [vmem:[%s1 + $0x238] sm:$0xf]
      %v1011 = vld [vmem:[%s1 + $0x23c] sm:$0xf]
      %v1028 = vunpack.c.l.b16 %v996
      %v1029 = vunpack.c.l.b16 %v997
      %v1030 = vunpack.c.l.b16 %v998
      %v1031 = vunpack.c.l.b16 %v999
      %v1032 = vunpack.c.l.b16 %v1000
      %v1033 = vunpack.c.l.b16 %v1001
      %v1034 = vunpack.c.l.b16 %v1002
      %v1035 = vunpack.c.l.b16 %v1003
      %v1036 = vunpack.c.l.b16 %v1004
      %v1037 = vunpack.c.l.b16 %v1005
      %v1038 = vunpack.c.l.b16 %v1006
      %v1039 = vunpack.c.l.b16 %v1007
      %v1040 = vunpack.c.l.b16 %v1008
      %v1041 = vunpack.c.l.b16 %v1009
      %v1042 = vunpack.c.l.b16 %v1010
      %v1043 = vunpack.c.l.b16 %v1011
      %v1044 = vpack.c.b16 %v1029, %v1028
      %v1045 = vpack.c.b16 %v1031, %v1030
      %v1046 = vpack.c.b16 %v1033, %v1032
      %v1047 = vpack.c.b16 %v1035, %v1034
      %v1048 = vpack.c.b16 %v1037, %v1036
      %v1049 = vpack.c.b16 %v1039, %v1038
      %v1050 = vpack.c.b16 %v1041, %v1040
      %v1051 = vpack.c.b16 %v1043, %v1042
      %1060 = vmatprep.subr.bf16.mxu0 0
      %1061 = vmatpush1.bf16.msra.mxu0 %v1051
      %1062 = vmatprep.subr.bf16.mxu0 0
      %1063 = vmatpush1.bf16.msra.mxu0 %v1050
      %1064 = vmatprep.subr.bf16.mxu0 0
      %1065 = vmatpush1.bf16.msra.mxu0 %v1049
      %1066 = vmatprep.subr.bf16.mxu0 0
      %1067 = vmatpush1.bf16.msra.mxu0 %v1048
      %1068 = vmatprep.subr.bf16.mxu0 0
      %1069 = vmatpush1.bf16.msra.mxu0 %v1047
      %1070 = vmatprep.subr.bf16.mxu0 0
      %1071 = vmatpush1.bf16.msra.mxu0 %v1046
      %1072 = vmatprep.subr.bf16.mxu0 0
      %1073 = vmatpush1.bf16.msra.mxu0 %v1045
      %1074 = vmatprep.subr.bf16.mxu0 0
      %1075 = vmatpush1.bf16.msra.mxu0 %v1044
      %1076 = vmatprep.subr.bf16.mxu0 0
      %1077 = vmatpush2.bf16.msra.mxu0 0
      %1078 = vmatprep.subr.bf16.mxu0 0
      %1079 = vmatpush2.bf16.msra.mxu0 0
      %1080 = vmatprep.subr.bf16.mxu0 0
      %1081 = vmatpush2.bf16.msra.mxu0 0
      %1082 = vmatprep.subr.bf16.mxu0 0
      %1083 = vmatpush2.bf16.msra.mxu0 0
      %1084 = vmatprep.subr.bf16.mxu0 0
      %1085 = vmatpush2.bf16.msra.mxu0 0
      %1086 = vmatprep.subr.bf16.mxu0 0
      %1087 = vmatpush2.bf16.msra.mxu0 0
      %1088 = vmatprep.subr.bf16.mxu0 0
      %1089 = vmatpush2.bf16.msra.mxu0 0
      %1090 = vmatprep.subr.bf16.mxu0 0
      %1091 = vmatpush2.bf16.msra.mxu0 0
      %1092 = vmatprep.mubr.bf16.mxu0 0
      %1093 = vmatmul.mubr.bf16.gmra.mxu0 %v995
      %v1094 = vpop.f32.mrf.mxu0
      %v1095 = vadd.f32 0.0, %v1094
      %v1096 = vpop.f32.mrf.mxu0
      %v1097 = vpop.f32.mrf.mxu0
      %v1098 = vpop.f32.mrf.mxu0
      %1099 = vdwg.mxu0
      %v1100 = vadd.f32 %v993, %v1095
      %v1101 = vld [vmem:[%s2 + $0x1] sm:$0x1]
      %v1102 = vlaneseq
      %v1103 = vshrl.u32 %v1102, 7
      %v1104 = vsub.s32 0, %v1103
      %v1105 = vrot.slane %v1101, %v1104
      %v1106 = vadd.f32 %v1100, %v1105
      %vm1107 = vcmp.ge.f32.partialorder %v1106, 0.0
      %v1108 = vmul.f32 %v1106, 0.1
      %v1109 = vsel %vm1107, %v1106, %v1108
      %1110 = vst [vmem:[#allocation2 + $0x8] sm:$0xff] %v1109
      %v1111 = vld [vmem:[#allocation2 + $0x7] sm:$0xff]
      %v1112 = vld [vmem:[#allocation2 + $0x8] sm:$0xff]
      %1113 = vrot.lane.b32.xlu0 %v1112, 32
      %v1114 = vpop.permute.xlu0 %1113
      %v1115 = vadd.f32 %v1111, %v1114
      %v1116 = vpack.c.bf16 %v1115, %v1115
      %v1117 = vld [vmem:[%s1 + $0x240] sm:$0xf]
      %v1118 = vld [vmem:[%s1 + $0x244] sm:$0xf]
      %v1119 = vld [vmem:[%s1 + $0x248] sm:$0xf]
      %v1120 = vld [vmem:[%s1 + $0x24c] sm:$0xf]
      %v1121 = vld [vmem:[%s1 + $0x250] sm:$0xf]
      %v1122 = vld [vmem:[%s1 + $0x254] sm:$0xf]
      %v1123 = vld [vmem:[%s1 + $0x258] sm:$0xf]
      %v1124 = vld [vmem:[%s1 + $0x25c] sm:$0xf]
      %v1125 = vld [vmem:[%s1 + $0x260] sm:$0xf]
      %v1126 = vld [vmem:[%s1 + $0x264] sm:$0xf]
      %v1127 = vld [vmem:[%s1 + $0x268] sm:$0xf]
      %v1128 = vld [vmem:[%s1 + $0x26c] sm:$0xf]
      %v1129 = vld [vmem:[%s1 + $0x270] sm:$0xf]
      %v1130 = vld [vmem:[%s1 + $0x274] sm:$0xf]
      %v1131 = vld [vmem:[%s1 + $0x278] sm:$0xf]
      %v1132 = vld [vmem:[%s1 + $0x27c] sm:$0xf]
      %v1133 = vld [vmem:[%s2 + $0x2] sm:$0x1]
      %v1134 = vlaneseq
      %v1135 = vshrl.u32 %v1134, 7
      %v1136 = vsub.s32 0, %v1135
      %v1137 = vrot.slane %v1133, %v1136
      %v1154 = vunpack.c.l.b16 %v1117
      %v1155 = vunpack.c.l.b16 %v1118
      %v1156 = vunpack.c.l.b16 %v1119
      %v1157 = vunpack.c.l.b16 %v1120
      %v1158 = vunpack.c.l.b16 %v1121
      %v1159 = vunpack.c.l.b16 %v1122
      %v1160 = vunpack.c.l.b16 %v1123
      %v1161 = vunpack.c.l.b16 %v1124
      %v1162 = vunpack.c.l.b16 %v1125
      %v1163 = vunpack.c.l.b16 %v1126
      %v1164 = vunpack.c.l.b16 %v1127
      %v1165 = vunpack.c.l.b16 %v1128
      %v1166 = vunpack.c.l.b16 %v1129
      %v1167 = vunpack.c.l.b16 %v1130
      %v1168 = vunpack.c.l.b16 %v1131
      %v1169 = vunpack.c.l.b16 %v1132
      %v1170 = vpack.c.b16 %v1155, %v1154
      %v1171 = vpack.c.b16 %v1157, %v1156
      %v1172 = vpack.c.b16 %v1159, %v1158
      %v1173 = vpack.c.b16 %v1161, %v1160
      %v1174 = vpack.c.b16 %v1163, %v1162
      %v1175 = vpack.c.b16 %v1165, %v1164
      %v1176 = vpack.c.b16 %v1167, %v1166
      %v1177 = vpack.c.b16 %v1169, %v1168
      %1186 = vmatprep.subr.bf16.mxu0 0
      %1187 = vmatpush1.bf16.msra.mxu0 %v1177
      %1188 = vmatprep.subr.bf16.mxu0 0
      %1189 = vmatpush1.bf16.msra.mxu0 %v1176
      %1190 = vmatprep.subr.bf16.mxu0 0
      %1191 = vmatpush1.bf16.msra.mxu0 %v1175
      %1192 = vmatprep.subr.bf16.mxu0 0
      %1193 = vmatpush1.bf16.msra.mxu0 %v1174
      %1194 = vmatprep.subr.bf16.mxu0 0
      %1195 = vmatpush1.bf16.msra.mxu0 %v1173
      %1196 = vmatprep.subr.bf16.mxu0 0
      %1197 = vmatpush1.bf16.msra.mxu0 %v1172
      %1198 = vmatprep.subr.bf16.mxu0 0
      %1199 = vmatpush1.bf16.msra.mxu0 %v1171
      %1200 = vmatprep.subr.bf16.mxu0 0
      %1201 = vmatpush1.bf16.msra.mxu0 %v1170
      %1202 = vmatprep.subr.bf16.mxu0 0
      %1203 = vmatpush2.bf16.msra.mxu0 0
      %1204 = vmatprep.subr.bf16.mxu0 0
      %1205 = vmatpush2.bf16.msra.mxu0 0
      %1206 = vmatprep.subr.bf16.mxu0 0
      %1207 = vmatpush2.bf16.msra.mxu0 0
      %1208 = vmatprep.subr.bf16.mxu0 0
      %1209 = vmatpush2.bf16.msra.mxu0 0
      %1210 = vmatprep.subr.bf16.mxu0 0
      %1211 = vmatpush2.bf16.msra.mxu0 0
      %1212 = vmatprep.subr.bf16.mxu0 0
      %1213 = vmatpush2.bf16.msra.mxu0 0
      %1214 = vmatprep.subr.bf16.mxu0 0
      %1215 = vmatpush2.bf16.msra.mxu0 0
      %1216 = vmatprep.subr.bf16.mxu0 0
      %1217 = vmatpush2.bf16.msra.mxu0 0
      %1218 = vmatprep.mubr.bf16.mxu0 0
      %1219 = vmatmul.mubr.bf16.gmra.mxu0 %v1116
      %v1220 = vpop.f32.mrf.mxu0
      %v1221 = vadd.f32 %v1137, %v1220
      %v1222 = vpop.f32.mrf.mxu0
      %v1223 = vpop.f32.mrf.mxu0
      %v1224 = vpop.f32.mrf.mxu0
      %1225 = vdwg.mxu0
      %v1226 = vld [vmem:[#allocation2 + $0x9] sm:$0xff]
      %1227 = vrot.lane.b32.xlu0 %v1226, 32
      %v1228 = vpop.permute.xlu0 %1227
      %v1229 = vadd.f32 %v1112, %v1228
      %v1230 = vpack.c.bf16 %v1229, %v1229
      %v1231 = vld [vmem:[%s1 + $0x280] sm:$0xf]
      %v1232 = vld [vmem:[%s1 + $0x284] sm:$0xf]
      %v1233 = vld [vmem:[%s1 + $0x288] sm:$0xf]
      %v1234 = vld [vmem:[%s1 + $0x28c] sm:$0xf]
      %v1235 = vld [vmem:[%s1 + $0x290] sm:$0xf]
      %v1236 = vld [vmem:[%s1 + $0x294] sm:$0xf]
      %v1237 = vld [vmem:[%s1 + $0x298] sm:$0xf]
      %v1238 = vld [vmem:[%s1 + $0x29c] sm:$0xf]
      %v1239 = vld [vmem:[%s1 + $0x2a0] sm:$0xf]
      %v1240 = vld [vmem:[%s1 + $0x2a4] sm:$0xf]
      %v1241 = vld [vmem:[%s1 + $0x2a8] sm:$0xf]
      %v1242 = vld [vmem:[%s1 + $0x2ac] sm:$0xf]
      %v1243 = vld [vmem:[%s1 + $0x2b0] sm:$0xf]
      %v1244 = vld [vmem:[%s1 + $0x2b4] sm:$0xf]
      %v1245 = vld [vmem:[%s1 + $0x2b8] sm:$0xf]
      %v1246 = vld [vmem:[%s1 + $0x2bc] sm:$0xf]
      %v1263 = vunpack.c.l.b16 %v1231
      %v1264 = vunpack.c.l.b16 %v1232
      %v1265 = vunpack.c.l.b16 %v1233
      %v1266 = vunpack.c.l.b16 %v1234
      %v1267 = vunpack.c.l.b16 %v1235
      %v1268 = vunpack.c.l.b16 %v1236
      %v1269 = vunpack.c.l.b16 %v1237
      %v1270 = vunpack.c.l.b16 %v1238
      %v1271 = vunpack.c.l.b16 %v1239
      %v1272 = vunpack.c.l.b16 %v1240
      %v1273 = vunpack.c.l.b16 %v1241
      %v1274 = vunpack.c.l.b16 %v1242
      %v1275 = vunpack.c.l.b16 %v1243
      %v1276 = vunpack.c.l.b16 %v1244
      %v1277 = vunpack.c.l.b16 %v1245
      %v1278 = vunpack.c.l.b16 %v1246
      %v1279 = vpack.c.b16 %v1264, %v1263
      %v1280 = vpack.c.b16 %v1266, %v1265
      %v1281 = vpack.c.b16 %v1268, %v1267
      %v1282 = vpack.c.b16 %v1270, %v1269
      %v1283 = vpack.c.b16 %v1272, %v1271
      %v1284 = vpack.c.b16 %v1274, %v1273
      %v1285 = vpack.c.b16 %v1276, %v1275
      %v1286 = vpack.c.b16 %v1278, %v1277
      %1295 = vmatprep.subr.bf16.mxu0 0
      %1296 = vmatpush1.bf16.msra.mxu0 %v1286
      %1297 = vmatprep.subr.bf16.mxu0 0
      %1298 = vmatpush1.bf16.msra.mxu0 %v1285
      %1299 = vmatprep.subr.bf16.mxu0 0
      %1300 = vmatpush1.bf16.msra.mxu0 %v1284
      %1301 = vmatprep.subr.bf16.mxu0 0
      %1302 = vmatpush1.bf16.msra.mxu0 %v1283
      %1303 = vmatprep.subr.bf16.mxu0 0
      %1304 = vmatpush1.bf16.msra.mxu0 %v1282
      %1305 = vmatprep.subr.bf16.mxu0 0
      %1306 = vmatpush1.bf16.msra.mxu0 %v1281
      %1307 = vmatprep.subr.bf16.mxu0 0
      %1308 = vmatpush1.bf16.msra.mxu0 %v1280
      %1309 = vmatprep.subr.bf16.mxu0 0
      %1310 = vmatpush1.bf16.msra.mxu0 %v1279
      %1311 = vmatprep.subr.bf16.mxu0 0
      %1312 = vmatpush2.bf16.msra.mxu0 0
      %1313 = vmatprep.subr.bf16.mxu0 0
      %1314 = vmatpush2.bf16.msra.mxu0 0
      %1315 = vmatprep.subr.bf16.mxu0 0
      %1316 = vmatpush2.bf16.msra.mxu0 0
      %1317 = vmatprep.subr.bf16.mxu0 0
      %1318 = vmatpush2.bf16.msra.mxu0 0
      %1319 = vmatprep.subr.bf16.mxu0 0
      %1320 = vmatpush2.bf16.msra.mxu0 0
      %1321 = vmatprep.subr.bf16.mxu0 0
      %1322 = vmatpush2.bf16.msra.mxu0 0
      %1323 = vmatprep.subr.bf16.mxu0 0
      %1324 = vmatpush2.bf16.msra.mxu0 0
      %1325 = vmatprep.subr.bf16.mxu0 0
      %1326 = vmatpush2.bf16.msra.mxu0 0
      %1327 = vmatprep.mubr.bf16.mxu0 0
      %1328 = vmatmul.mubr.bf16.gmra.mxu0 %v1230
      %v1329 = vpop.f32.mrf.mxu0
      %v1330 = vadd.f32 %v1137, %v1329
      %v1331 = vpop.f32.mrf.mxu0
      %v1332 = vpop.f32.mrf.mxu0
      %v1333 = vpop.f32.mrf.mxu0
      %1334 = vdwg.mxu0
      %s1335 = scalar_lea.vmem [#allocation2], 8
      %1336 = vst [vmem:[%s1335] ss:$2 sm:$0xff] %v1221
      %s1337 = scalar_lea.vmem [#allocation2], 9
      %1338 = vst [vmem:[%s1337] ss:$2 sm:$0xff] %v1330
      %v1339 = vld [vmem:[#allocation2 + $0x8] sm:$0xff]
      %v1340 = vld [vmem:[#allocation2 + $0x10] sm:$0xff]
      %vm1341 = vcmp.ge.f32.partialorder %v1339, 0.0
      %vm1342 = vcmp.ge.f32.partialorder %v1340, 0.0
      %v1343 = vmul.f32 %v1339, 0.1
      %v1344 = vmul.f32 %v1340, 0.1
      %v1345 = vsel %vm1341, %v1339, %v1343
      %v1346 = vsel %vm1342, %v1340, %v1344
      %1347 = vst [vmem:[#allocation2 + $0x8] sm:$0xff] %v1345
      %1348 = vst [vmem:[#allocation2 + $0x10] sm:$0xff] %v1346
      %v1349 = vld [vmem:[#allocation2 + $0x7] sm:$0xff]
      %v1350 = vld [vmem:[#allocation2 + $0xf] sm:$0xff]
      %v1351 = vld [vmem:[#allocation2 + $0x8] sm:$0xff]
      %v1352 = vld [vmem:[#allocation2 + $0x10] sm:$0xff]
      %1353 = vrot.lane.b32.xlu0 %v1351, 16
      %v1354 = vpop.permute.xlu0 %1353
      %1355 = vrot.lane.b32.xlu0 %v1352, 16
      %v1356 = vpop.permute.xlu0 %1355
      %v1357 = vadd.f32 %v1349, %v1354
      %v1358 = vadd.f32 %v1350, %v1356
      %v1359 = vld [vmem:[#allocation2 + $0x9] sm:$0xff]
      %v1360 = vld [vmem:[#allocation2 + $0x11] sm:$0xff]
      %1361 = vrot.lane.b32.xlu0 %v1359, 32
      %v1362 = vpop.permute.xlu0 %1361
      %1363 = vrot.lane.b32.xlu0 %v1360, 32
      %v1364 = vpop.permute.xlu0 %1363
      %v1365 = vadd.f32 %v1357, %v1362
      %v1366 = vadd.f32 %v1358, %v1364
      %v1367 = vpack.c.bf16 %v1366, %v1365
      %v1368 = vld [vmem:[%s1 + $0x2c0] sm:$0xf]
      %v1369 = vld [vmem:[%s1 + $0x2c4] sm:$0xf]
      %v1370 = vld [vmem:[%s1 + $0x2c8] sm:$0xf]
      %v1371 = vld [vmem:[%s1 + $0x2cc] sm:$0xf]
      %v1372 = vld [vmem:[%s1 + $0x2d0] sm:$0xf]
      %v1373 = vld [vmem:[%s1 + $0x2d4] sm:$0xf]
      %v1374 = vld [vmem:[%s1 + $0x2d8] sm:$0xf]
      %v1375 = vld [vmem:[%s1 + $0x2dc] sm:$0xf]
      %v1376 = vld [vmem:[%s1 + $0x2e0] sm:$0xf]
      %v1377 = vld [vmem:[%s1 + $0x2e4] sm:$0xf]
      %v1378 = vld [vmem:[%s1 + $0x2e8] sm:$0xf]
      %v1379 = vld [vmem:[%s1 + $0x2ec] sm:$0xf]
      %v1380 = vld [vmem:[%s1 + $0x2f0] sm:$0xf]
      %v1381 = vld [vmem:[%s1 + $0x2f4] sm:$0xf]
      %v1382 = vld [vmem:[%s1 + $0x2f8] sm:$0xf]
      %v1383 = vld [vmem:[%s1 + $0x2fc] sm:$0xf]
      %v1384 = vld [vmem:[%s2 + $0x3] sm:$0x1]
      %v1385 = vlaneseq
      %v1386 = vshrl.u32 %v1385, 7
      %v1387 = vsub.s32 0, %v1386
      %v1388 = vrot.slane %v1384, %v1387
      %v1405 = vunpack.c.l.b16 %v1368
      %v1406 = vunpack.c.l.b16 %v1369
      %v1407 = vunpack.c.l.b16 %v1370
      %v1408 = vunpack.c.l.b16 %v1371
      %v1409 = vunpack.c.l.b16 %v1372
      %v1410 = vunpack.c.l.b16 %v1373
      %v1411 = vunpack.c.l.b16 %v1374
      %v1412 = vunpack.c.l.b16 %v1375
      %v1413 = vunpack.c.l.b16 %v1376
      %v1414 = vunpack.c.l.b16 %v1377
      %v1415 = vunpack.c.l.b16 %v1378
      %v1416 = vunpack.c.l.b16 %v1379
      %v1417 = vunpack.c.l.b16 %v1380
      %v1418 = vunpack.c.l.b16 %v1381
      %v1419 = vunpack.c.l.b16 %v1382
      %v1420 = vunpack.c.l.b16 %v1383
      %v1421 = vpack.c.b16 %v1406, %v1405
      %v1422 = vpack.c.b16 %v1408, %v1407
      %v1423 = vpack.c.b16 %v1410, %v1409
      %v1424 = vpack.c.b16 %v1412, %v1411
      %v1425 = vpack.c.b16 %v1414, %v1413
      %v1426 = vpack.c.b16 %v1416, %v1415
      %v1427 = vpack.c.b16 %v1418, %v1417
      %v1428 = vpack.c.b16 %v1420, %v1419
      %1437 = vmatprep.subr.bf16.mxu0 0
      %1438 = vmatpush1.bf16.msra.mxu0 %v1428
      %1439 = vmatprep.subr.bf16.mxu0 0
      %1440 = vmatpush1.bf16.msra.mxu0 %v1427
      %1441 = vmatprep.subr.bf16.mxu0 0
      %1442 = vmatpush1.bf16.msra.mxu0 %v1426
      %1443 = vmatprep.subr.bf16.mxu0 0
      %1444 = vmatpush1.bf16.msra.mxu0 %v1425
      %1445 = vmatprep.subr.bf16.mxu0 0
      %1446 = vmatpush1.bf16.msra.mxu0 %v1424
      %1447 = vmatprep.subr.bf16.mxu0 0
      %1448 = vmatpush1.bf16.msra.mxu0 %v1423
      %1449 = vmatprep.subr.bf16.mxu0 0
      %1450 = vmatpush1.bf16.msra.mxu0 %v1422
      %1451 = vmatprep.subr.bf16.mxu0 0
      %1452 = vmatpush1.bf16.msra.mxu0 %v1421
      %1453 = vmatprep.subr.bf16.mxu0 0
      %1454 = vmatpush2.bf16.msra.mxu0 0
      %1455 = vmatprep.subr.bf16.mxu0 0
      %1456 = vmatpush2.bf16.msra.mxu0 0
      %1457 = vmatprep.subr.bf16.mxu0 0
      %1458 = vmatpush2.bf16.msra.mxu0 0
      %1459 = vmatprep.subr.bf16.mxu0 0
      %1460 = vmatpush2.bf16.msra.mxu0 0
      %1461 = vmatprep.subr.bf16.mxu0 0
      %1462 = vmatpush2.bf16.msra.mxu0 0
      %1463 = vmatprep.subr.bf16.mxu0 0
      %1464 = vmatpush2.bf16.msra.mxu0 0
      %1465 = vmatprep.subr.bf16.mxu0 0
      %1466 = vmatpush2.bf16.msra.mxu0 0
      %1467 = vmatprep.subr.bf16.mxu0 0
      %1468 = vmatpush2.bf16.msra.mxu0 0
      %1469 = vmatprep.mubr.bf16.mxu0 0
      %1470 = vmatmul.mubr.bf16.gmra.mxu0 %v1367
      %v1471 = vpop.f32.mrf.mxu0
      %v1472 = vadd.f32 %v1388, %v1471
      %v1473 = vpop.f32.mrf.mxu0
      %v1474 = vpop.f32.mrf.mxu0
      %v1475 = vadd.f32 %v1388, %v1474
      %v1476 = vpop.f32.mrf.mxu0
      %1477 = vdwg.mxu0
      %vm1478 = vcmp.ge.f32.partialorder %v1472, 0.0
      %vm1479 = vcmp.ge.f32.partialorder %v1475, 0.0
      %v1480 = vmul.f32 %v1472, 0.1
      %v1481 = vmul.f32 %v1475, 0.1
      %v1482 = vsel %vm1478, %v1472, %v1480
      %v1483 = vsel %vm1479, %v1475, %v1481
      %1484 = vst [vmem:[#allocation2 + $0x8] sm:$0xff] %v1482
      %1485 = vst [vmem:[#allocation2 + $0x10] sm:$0xff] %v1483
      %v1486 = vld [vmem:[#allocation2 + $0x7] sm:$0xff]
      %v1487 = vld [vmem:[#allocation2 + $0xf] sm:$0xff]
      %v1488 = vld [vmem:[#allocation2 + $0x8] sm:$0xff]
      %v1489 = vld [vmem:[#allocation2 + $0x10] sm:$0xff]
      %1490 = vrot.lane.b32.xlu0 %v1488, 16
      %v1491 = vpop.permute.xlu0 %1490
      %1492 = vrot.lane.b32.xlu0 %v1489, 16
      %v1493 = vpop.permute.xlu0 %1492
      %v1494 = vadd.f32 %v1486, %v1491
      %v1495 = vadd.f32 %v1487, %v1493
      %v1496 = vld [vmem:[#allocation2 + $0x9] sm:$0xff]
      %v1497 = vld [vmem:[#allocation2 + $0x11] sm:$0xff]
      %1498 = vrot.lane.b32.xlu0 %v1496, 32
      %v1499 = vpop.permute.xlu0 %1498
      %1500 = vrot.lane.b32.xlu0 %v1497, 32
      %v1501 = vpop.permute.xlu0 %1500
      %v1502 = vadd.f32 %v1494, %v1499
      %v1503 = vadd.f32 %v1495, %v1501
      %v1504 = vpack.c.bf16 %v1503, %v1502
      %v1505 = vld [vmem:[%s1 + $0x300] sm:$0xf]
      %v1506 = vld [vmem:[%s1 + $0x304] sm:$0xf]
      %v1507 = vld [vmem:[%s1 + $0x308] sm:$0xf]
      %v1508 = vld [vmem:[%s1 + $0x30c] sm:$0xf]
      %v1509 = vld [vmem:[%s1 + $0x310] sm:$0xf]
      %v1510 = vld [vmem:[%s1 + $0x314] sm:$0xf]
      %v1511 = vld [vmem:[%s1 + $0x318] sm:$0xf]
      %v1512 = vld [vmem:[%s1 + $0x31c] sm:$0xf]
      %v1513 = vld [vmem:[%s1 + $0x320] sm:$0xf]
      %v1514 = vld [vmem:[%s1 + $0x324] sm:$0xf]
      %v1515 = vld [vmem:[%s1 + $0x328] sm:$0xf]
      %v1516 = vld [vmem:[%s1 + $0x32c] sm:$0xf]
      %v1517 = vld [vmem:[%s1 + $0x330] sm:$0xf]
      %v1518 = vld [vmem:[%s1 + $0x334] sm:$0xf]
      %v1519 = vld [vmem:[%s1 + $0x338] sm:$0xf]
      %v1520 = vld [vmem:[%s1 + $0x33c] sm:$0xf]
      %v1521 = vld [vmem:[%s2 + $0x4] sm:$0x1]
      %v1522 = vlaneseq
      %v1523 = vshrl.u32 %v1522, 7
      %v1524 = vsub.s32 0, %v1523
      %v1525 = vrot.slane %v1521, %v1524
      %v1542 = vunpack.c.l.b16 %v1505
      %v1543 = vunpack.c.l.b16 %v1506
      %v1544 = vunpack.c.l.b16 %v1507
      %v1545 = vunpack.c.l.b16 %v1508
      %v1546 = vunpack.c.l.b16 %v1509
      %v1547 = vunpack.c.l.b16 %v1510
      %v1548 = vunpack.c.l.b16 %v1511
      %v1549 = vunpack.c.l.b16 %v1512
      %v1550 = vunpack.c.l.b16 %v1513
      %v1551 = vunpack.c.l.b16 %v1514
      %v1552 = vunpack.c.l.b16 %v1515
      %v1553 = vunpack.c.l.b16 %v1516
      %v1554 = vunpack.c.l.b16 %v1517
      %v1555 = vunpack.c.l.b16 %v1518
      %v1556 = vunpack.c.l.b16 %v1519
      %v1557 = vunpack.c.l.b16 %v1520
      %v1558 = vpack.c.b16 %v1543, %v1542
      %v1559 = vpack.c.b16 %v1545, %v1544
      %v1560 = vpack.c.b16 %v1547, %v1546
      %v1561 = vpack.c.b16 %v1549, %v1548
      %v1562 = vpack.c.b16 %v1551, %v1550
      %v1563 = vpack.c.b16 %v1553, %v1552
      %v1564 = vpack.c.b16 %v1555, %v1554
      %v1565 = vpack.c.b16 %v1557, %v1556
      %1574 = vmatprep.subr.bf16.mxu0 0
      %1575 = vmatpush1.bf16.msra.mxu0 %v1565
      %1576 = vmatprep.subr.bf16.mxu0 0
      %1577 = vmatpush1.bf16.msra.mxu0 %v1564
      %1578 = vmatprep.subr.bf16.mxu0 0
      %1579 = vmatpush1.bf16.msra.mxu0 %v1563
      %1580 = vmatprep.subr.bf16.mxu0 0
      %1581 = vmatpush1.bf16.msra.mxu0 %v1562
      %1582 = vmatprep.subr.bf16.mxu0 0
      %1583 = vmatpush1.bf16.msra.mxu0 %v1561
      %1584 = vmatprep.subr.bf16.mxu0 0
      %1585 = vmatpush1.bf16.msra.mxu0 %v1560
      %1586 = vmatprep.subr.bf16.mxu0 0
      %1587 = vmatpush1.bf16.msra.mxu0 %v1559
      %1588 = vmatprep.subr.bf16.mxu0 0
      %1589 = vmatpush1.bf16.msra.mxu0 %v1558
      %1590 = vmatprep.subr.bf16.mxu0 0
      %1591 = vmatpush2.bf16.msra.mxu0 0
      %1592 = vmatprep.subr.bf16.mxu0 0
      %1593 = vmatpush2.bf16.msra.mxu0 0
      %1594 = vmatprep.subr.bf16.mxu0 0
      %1595 = vmatpush2.bf16.msra.mxu0 0
      %1596 = vmatprep.subr.bf16.mxu0 0
      %1597 = vmatpush2.bf16.msra.mxu0 0
      %1598 = vmatprep.subr.bf16.mxu0 0
      %1599 = vmatpush2.bf16.msra.mxu0 0
      %1600 = vmatprep.subr.bf16.mxu0 0
      %1601 = vmatpush2.bf16.msra.mxu0 0
      %1602 = vmatprep.subr.bf16.mxu0 0
      %1603 = vmatpush2.bf16.msra.mxu0 0
      %1604 = vmatprep.subr.bf16.mxu0 0
      %1605 = vmatpush2.bf16.msra.mxu0 0
      %1606 = vmatprep.mubr.bf16.mxu0 0
      %1607 = vmatmul.mubr.bf16.gmra.mxu0 %v1504
      %v1608 = vpop.f32.mrf.mxu0
      %v1609 = vadd.f32 %v1525, %v1608
      %v1610 = vpop.f32.mrf.mxu0
      %v1611 = vpop.f32.mrf.mxu0
      %v1612 = vadd.f32 %v1525, %v1611
      %v1613 = vpop.f32.mrf.mxu0
      %1614 = vdwg.mxu0
      %v1615 = vadd.f32 %v1339, %v1609
      %v1616 = vadd.f32 %v1340, %v1612
      %vm1617 = vcmp.ge.f32.partialorder %v1615, 0.0
      %vm1618 = vcmp.ge.f32.partialorder %v1616, 0.0
      %v1619 = vmul.f32 %v1615, 0.1
      %v1620 = vmul.f32 %v1616, 0.1
      %v1621 = vsel %vm1617, %v1615, %v1619
      %v1622 = vsel %vm1618, %v1616, %v1620
      %1623 = vst [vmem:[#allocation2 + $0x8] sm:$0xff] %v1621
      %1624 = vst [vmem:[#allocation2 + $0x10] sm:$0xff] %v1622
      %v1625 = vld [vmem:[#allocation2 + $0x5] sm:$0xff]
      %v1626 = vld [vmem:[#allocation2 + $0xd] sm:$0xff]
      %v1627 = vld [vmem:[#allocation2 + $0x8] sm:$0xff]
      %v1628 = vld [vmem:[#allocation2 + $0x10] sm:$0xff]
      %1629 = vrot.lane.b32.xlu0 %v1627, 16
      %v1630 = vpop.permute.xlu0 %1629
      %1631 = vrot.lane.b32.xlu0 %v1628, 16
      %v1632 = vpop.permute.xlu0 %1631
      %v1633 = vadd.f32 %v1625, %v1630
      %v1634 = vadd.f32 %v1626, %v1632
      %v1635 = vld [vmem:[#allocation2 + $0xb] sm:$0xff]
      %v1636 = vld [vmem:[#allocation2 + $0x13] sm:$0xff]
      %1637 = vrot.lane.b32.xlu0 %v1635, 32
      %v1638 = vpop.permute.xlu0 %1637
      %1639 = vrot.lane.b32.xlu0 %v1636, 32
      %v1640 = vpop.permute.xlu0 %1639
      %v1641 = vadd.f32 %v1633, %v1638
      %v1642 = vadd.f32 %v1634, %v1640
      %v1643 = vpack.c.bf16 %v1642, %v1641
      %v1644 = vld [vmem:[%s1 + $0x340] sm:$0xf]
      %v1645 = vld [vmem:[%s1 + $0x344] sm:$0xf]
      %v1646 = vld [vmem:[%s1 + $0x348] sm:$0xf]
      %v1647 = vld [vmem:[%s1 + $0x34c] sm:$0xf]
      %v1648 = vld [vmem:[%s1 + $0x350] sm:$0xf]
      %v1649 = vld [vmem:[%s1 + $0x354] sm:$0xf]
      %v1650 = vld [vmem:[%s1 + $0x358] sm:$0xf]
      %v1651 = vld [vmem:[%s1 + $0x35c] sm:$0xf]
      %v1652 = vld [vmem:[%s1 + $0x360] sm:$0xf]
      %v1653 = vld [vmem:[%s1 + $0x364] sm:$0xf]
      %v1654 = vld [vmem:[%s1 + $0x368] sm:$0xf]
      %v1655 = vld [vmem:[%s1 + $0x36c] sm:$0xf]
      %v1656 = vld [vmem:[%s1 + $0x370] sm:$0xf]
      %v1657 = vld [vmem:[%s1 + $0x374] sm:$0xf]
      %v1658 = vld [vmem:[%s1 + $0x378] sm:$0xf]
      %v1659 = vld [vmem:[%s1 + $0x37c] sm:$0xf]
      %v1660 = vld [vmem:[%s2 + $0x5] sm:$0x1]
      %v1661 = vlaneseq
      %v1662 = vshrl.u32 %v1661, 7
      %v1663 = vsub.s32 0, %v1662
      %v1664 = vrot.slane %v1660, %v1663
      %v1681 = vunpack.c.l.b16 %v1644
      %v1682 = vunpack.c.l.b16 %v1645
      %v1683 = vunpack.c.l.b16 %v1646
      %v1684 = vunpack.c.l.b16 %v1647
      %v1685 = vunpack.c.l.b16 %v1648
      %v1686 = vunpack.c.l.b16 %v1649
      %v1687 = vunpack.c.l.b16 %v1650
      %v1688 = vunpack.c.l.b16 %v1651
      %v1689 = vunpack.c.l.b16 %v1652
      %v1690 = vunpack.c.l.b16 %v1653
      %v1691 = vunpack.c.l.b16 %v1654
      %v1692 = vunpack.c.l.b16 %v1655
      %v1693 = vunpack.c.l.b16 %v1656
      %v1694 = vunpack.c.l.b16 %v1657
      %v1695 = vunpack.c.l.b16 %v1658
      %v1696 = vunpack.c.l.b16 %v1659
      %v1697 = vpack.c.b16 %v1682, %v1681
      %v1698 = vpack.c.b16 %v1684, %v1683
      %v1699 = vpack.c.b16 %v1686, %v1685
      %v1700 = vpack.c.b16 %v1688, %v1687
      %v1701 = vpack.c.b16 %v1690, %v1689
      %v1702 = vpack.c.b16 %v1692, %v1691
      %v1703 = vpack.c.b16 %v1694, %v1693
      %v1704 = vpack.c.b16 %v1696, %v1695
      %1713 = vmatprep.subr.bf16.mxu0 0
      %1714 = vmatpush1.bf16.msra.mxu0 %v1704
      %1715 = vmatprep.subr.bf16.mxu0 0
      %1716 = vmatpush1.bf16.msra.mxu0 %v1703
      %1717 = vmatprep.subr.bf16.mxu0 0
      %1718 = vmatpush1.bf16.msra.mxu0 %v1702
      %1719 = vmatprep.subr.bf16.mxu0 0
      %1720 = vmatpush1.bf16.msra.mxu0 %v1701
      %1721 = vmatprep.subr.bf16.mxu0 0
      %1722 = vmatpush1.bf16.msra.mxu0 %v1700
      %1723 = vmatprep.subr.bf16.mxu0 0
      %1724 = vmatpush1.bf16.msra.mxu0 %v1699
      %1725 = vmatprep.subr.bf16.mxu0 0
      %1726 = vmatpush1.bf16.msra.mxu0 %v1698
      %1727 = vmatprep.subr.bf16.mxu0 0
      %1728 = vmatpush1.bf16.msra.mxu0 %v1697
      %1729 = vmatprep.subr.bf16.mxu0 0
      %1730 = vmatpush2.bf16.msra.mxu0 0
      %1731 = vmatprep.subr.bf16.mxu0 0
      %1732 = vmatpush2.bf16.msra.mxu0 0
      %1733 = vmatprep.subr.bf16.mxu0 0
      %1734 = vmatpush2.bf16.msra.mxu0 0
      %1735 = vmatprep.subr.bf16.mxu0 0
      %1736 = vmatpush2.bf16.msra.mxu0 0
      %1737 = vmatprep.subr.bf16.mxu0 0
      %1738 = vmatpush2.bf16.msra.mxu0 0
      %1739 = vmatprep.subr.bf16.mxu0 0
      %1740 = vmatpush2.bf16.msra.mxu0 0
      %1741 = vmatprep.subr.bf16.mxu0 0
      %1742 = vmatpush2.bf16.msra.mxu0 0
      %1743 = vmatprep.subr.bf16.mxu0 0
      %1744 = vmatpush2.bf16.msra.mxu0 0
      %1745 = vmatprep.mubr.bf16.mxu0 0
      %1746 = vmatmul.mubr.bf16.gmra.mxu0 %v1643
      %v1747 = vpop.f32.mrf.mxu0
      %v1748 = vadd.f32 %v1664, %v1747
      %v1749 = vpop.f32.mrf.mxu0
      %v1750 = vpop.f32.mrf.mxu0
      %v1751 = vadd.f32 %v1664, %v1750
      %v1752 = vpop.f32.mrf.mxu0
      %1753 = vdwg.mxu0
      %vm1754 = vcmp.ge.f32.partialorder %v1748, 0.0
      %vm1755 = vcmp.ge.f32.partialorder %v1751, 0.0
      %v1756 = vmul.f32 %v1748, 0.1
      %v1757 = vmul.f32 %v1751, 0.1
      %v1758 = vsel %vm1754, %v1748, %v1756
      %v1759 = vsel %vm1755, %v1751, %v1757
      %1760 = vst [vmem:[#allocation2 + $0x8] sm:$0xff] %v1758
      %1761 = vst [vmem:[#allocation2 + $0x10] sm:$0xff] %v1759
      %v1762 = vld [vmem:[#allocation2 + $0x7] sm:$0xff]
      %v1763 = vld [vmem:[#allocation2 + $0xf] sm:$0xff]
      %v1764 = vld [vmem:[#allocation2 + $0x8] sm:$0xff]
      %v1765 = vld [vmem:[#allocation2 + $0x10] sm:$0xff]
      %1766 = vrot.lane.b32.xlu0 %v1764, 16
      %v1767 = vpop.permute.xlu0 %1766
      %1768 = vrot.lane.b32.xlu0 %v1765, 16
      %v1769 = vpop.permute.xlu0 %1768
      %v1770 = vadd.f32 %v1762, %v1767
      %v1771 = vadd.f32 %v1763, %v1769
      %v1772 = vld [vmem:[#allocation2 + $0x9] sm:$0xff]
      %v1773 = vld [vmem:[#allocation2 + $0x11] sm:$0xff]
      %1774 = vrot.lane.b32.xlu0 %v1772, 32
      %v1775 = vpop.permute.xlu0 %1774
      %1776 = vrot.lane.b32.xlu0 %v1773, 32
      %v1777 = vpop.permute.xlu0 %1776
      %v1778 = vadd.f32 %v1770, %v1775
      %v1779 = vadd.f32 %v1771, %v1777
      %v1780 = vpack.c.bf16 %v1779, %v1778
      %v1781 = vld [vmem:[%s1 + $0x380] sm:$0xf]
      %v1782 = vld [vmem:[%s1 + $0x384] sm:$0xf]
      %v1783 = vld [vmem:[%s1 + $0x388] sm:$0xf]
      %v1784 = vld [vmem:[%s1 + $0x38c] sm:$0xf]
      %v1785 = vld [vmem:[%s1 + $0x390] sm:$0xf]
      %v1786 = vld [vmem:[%s1 + $0x394] sm:$0xf]
      %v1787 = vld [vmem:[%s1 + $0x398] sm:$0xf]
      %v1788 = vld [vmem:[%s1 + $0x39c] sm:$0xf]
      %v1789 = vld [vmem:[%s1 + $0x3a0] sm:$0xf]
      %v1790 = vld [vmem:[%s1 + $0x3a4] sm:$0xf]
      %v1791 = vld [vmem:[%s1 + $0x3a8] sm:$0xf]
      %v1792 = vld [vmem:[%s1 + $0x3ac] sm:$0xf]
      %v1793 = vld [vmem:[%s1 + $0x3b0] sm:$0xf]
      %v1794 = vld [vmem:[%s1 + $0x3b4] sm:$0xf]
      %v1795 = vld [vmem:[%s1 + $0x3b8] sm:$0xf]
      %v1796 = vld [vmem:[%s1 + $0x3bc] sm:$0xf]
      %v1797 = vld [vmem:[%s2 + $0x6] sm:$0x1]
      %v1798 = vlaneseq
      %v1799 = vshrl.u32 %v1798, 7
      %v1800 = vsub.s32 0, %v1799
      %v1801 = vrot.slane %v1797, %v1800
      %v1818 = vunpack.c.l.b16 %v1781
      %v1819 = vunpack.c.l.b16 %v1782
      %v1820 = vunpack.c.l.b16 %v1783
      %v1821 = vunpack.c.l.b16 %v1784
      %v1822 = vunpack.c.l.b16 %v1785
      %v1823 = vunpack.c.l.b16 %v1786
      %v1824 = vunpack.c.l.b16 %v1787
      %v1825 = vunpack.c.l.b16 %v1788
      %v1826 = vunpack.c.l.b16 %v1789
      %v1827 = vunpack.c.l.b16 %v1790
      %v1828 = vunpack.c.l.b16 %v1791
      %v1829 = vunpack.c.l.b16 %v1792
      %v1830 = vunpack.c.l.b16 %v1793
      %v1831 = vunpack.c.l.b16 %v1794
      %v1832 = vunpack.c.l.b16 %v1795
      %v1833 = vunpack.c.l.b16 %v1796
      %v1834 = vpack.c.b16 %v1819, %v1818
      %v1835 = vpack.c.b16 %v1821, %v1820
      %v1836 = vpack.c.b16 %v1823, %v1822
      %v1837 = vpack.c.b16 %v1825, %v1824
      %v1838 = vpack.c.b16 %v1827, %v1826
      %v1839 = vpack.c.b16 %v1829, %v1828
      %v1840 = vpack.c.b16 %v1831, %v1830
      %v1841 = vpack.c.b16 %v1833, %v1832
      %1850 = vmatprep.subr.bf16.mxu0 0
      %1851 = vmatpush1.bf16.msra.mxu0 %v1841
      %1852 = vmatprep.subr.bf16.mxu0 0
      %1853 = vmatpush1.bf16.msra.mxu0 %v1840
      %1854 = vmatprep.subr.bf16.mxu0 0
      %1855 = vmatpush1.bf16.msra.mxu0 %v1839
      %1856 = vmatprep.subr.bf16.mxu0 0
      %1857 = vmatpush1.bf16.msra.mxu0 %v1838
      %1858 = vmatprep.subr.bf16.mxu0 0
      %1859 = vmatpush1.bf16.msra.mxu0 %v1837
      %1860 = vmatprep.subr.bf16.mxu0 0
      %1861 = vmatpush1.bf16.msra.mxu0 %v1836
      %1862 = vmatprep.subr.bf16.mxu0 0
      %1863 = vmatpush1.bf16.msra.mxu0 %v1835
      %1864 = vmatprep.subr.bf16.mxu0 0
      %1865 = vmatpush1.bf16.msra.mxu0 %v1834
      %1866 = vmatprep.subr.bf16.mxu0 0
      %1867 = vmatpush2.bf16.msra.mxu0 0
      %1868 = vmatprep.subr.bf16.mxu0 0
      %1869 = vmatpush2.bf16.msra.mxu0 0
      %1870 = vmatprep.subr.bf16.mxu0 0
      %1871 = vmatpush2.bf16.msra.mxu0 0
      %1872 = vmatprep.subr.bf16.mxu0 0
      %1873 = vmatpush2.bf16.msra.mxu0 0
      %1874 = vmatprep.subr.bf16.mxu0 0
      %1875 = vmatpush2.bf16.msra.mxu0 0
      %1876 = vmatprep.subr.bf16.mxu0 0
      %1877 = vmatpush2.bf16.msra.mxu0 0
      %1878 = vmatprep.subr.bf16.mxu0 0
      %1879 = vmatpush2.bf16.msra.mxu0 0
      %1880 = vmatprep.subr.bf16.mxu0 0
      %1881 = vmatpush2.bf16.msra.mxu0 0
      %1882 = vmatprep.mubr.bf16.mxu0 0
      %1883 = vmatmul.mubr.bf16.gmra.mxu0 %v1780
      %v1884 = vpop.f32.mrf.mxu0
      %v1885 = vadd.f32 %v1801, %v1884
      %v1886 = vpop.f32.mrf.mxu0
      %v1887 = vpop.f32.mrf.mxu0
      %v1888 = vadd.f32 %v1801, %v1887
      %v1889 = vpop.f32.mrf.mxu0
      %1890 = vdwg.mxu0
      %v1891 = vadd.f32 %v1615, %v1885
      %v1892 = vadd.f32 %v1616, %v1888
      %1893 = vst [vmem:[#allocation2 + $0x8] sm:$0xff] %v1345
      %1894 = vst [vmem:[#allocation2 + $0x10] sm:$0xff] %v1346
      %v1895 = vld [vmem:[#allocation2 + $0x6] sm:$0xff]
      %v1896 = vld [vmem:[#allocation2 + $0xe] sm:$0xff]
      %v1897 = vld [vmem:[#allocation2 + $0x7] sm:$0xff]
      %v1898 = vld [vmem:[#allocation2 + $0xf] sm:$0xff]
      %1899 = vrot.lane.b32.xlu0 %v1897, 16
      %v1900 = vpop.permute.xlu0 %1899
      %1901 = vrot.lane.b32.xlu0 %v1898, 16
      %v1902 = vpop.permute.xlu0 %1901
      %v1903 = vadd.f32 %v1895, %v1900
      %v1904 = vadd.f32 %v1896, %v1902
      %v1905 = vld [vmem:[#allocation2 + $0x8] sm:$0xff]
      %v1906 = vld [vmem:[#allocation2 + $0x10] sm:$0xff]
      %1907 = vrot.lane.b32.xlu0 %v1905, 32
      %v1908 = vpop.permute.xlu0 %1907
      %1909 = vrot.lane.b32.xlu0 %v1906, 32
      %v1910 = vpop.permute.xlu0 %1909
      %v1911 = vadd.f32 %v1903, %v1908
      %v1912 = vadd.f32 %v1904, %v1910
      %v1913 = vld [vmem:[#allocation2 + $0x9] sm:$0xff]
      %v1914 = vld [vmem:[#allocation2 + $0x11] sm:$0xff]
      %1915 = vrot.lane.b32.xlu0 %v1913, 48
      %v1916 = vpop.permute.xlu0 %1915
      %1917 = vrot.lane.b32.xlu0 %v1914, 48
      %v1918 = vpop.permute.xlu0 %1917
      %v1919 = vadd.f32 %v1911, %v1916
      %v1920 = vadd.f32 %v1912, %v1918
      %v1921 = vld [vmem:[#allocation2 + $0xa] sm:$0xff]
      %v1922 = vld [vmem:[#allocation2 + $0x12] sm:$0xff]
      %1923 = vrot.lane.b32.xlu0 %v1921, 64
      %v1924 = vpop.permute.xlu0 %1923
      %1925 = vrot.lane.b32.xlu0 %v1922, 64
      %v1926 = vpop.permute.xlu0 %1925
      %v1927 = vadd.f32 %v1919, %v1924
      %v1928 = vadd.f32 %v1920, %v1926
      %v1929 = vpack.c.bf16 %v1928, %v1927
      %v1930 = vld [vmem:[%s1 + $0x3c0] sm:$0xf]
      %v1931 = vld [vmem:[%s1 + $0x3c4] sm:$0xf]
      %v1932 = vld [vmem:[%s1 + $0x3c8] sm:$0xf]
      %v1933 = vld [vmem:[%s1 + $0x3cc] sm:$0xf]
      %v1934 = vld [vmem:[%s1 + $0x3d0] sm:$0xf]
      %v1935 = vld [vmem:[%s1 + $0x3d4] sm:$0xf]
      %v1936 = vld [vmem:[%s1 + $0x3d8] sm:$0xf]
      %v1937 = vld [vmem:[%s1 + $0x3dc] sm:$0xf]
      %v1938 = vld [vmem:[%s1 + $0x3e0] sm:$0xf]
      %v1939 = vld [vmem:[%s1 + $0x3e4] sm:$0xf]
      %v1940 = vld [vmem:[%s1 + $0x3e8] sm:$0xf]
      %v1941 = vld [vmem:[%s1 + $0x3ec] sm:$0xf]
      %v1942 = vld [vmem:[%s1 + $0x3f0] sm:$0xf]
      %v1943 = vld [vmem:[%s1 + $0x3f4] sm:$0xf]
      %v1944 = vld [vmem:[%s1 + $0x3f8] sm:$0xf]
      %v1945 = vld [vmem:[%s1 + $0x3fc] sm:$0xf]
      %v1946 = vld [vmem:[%s2 + $0x7] sm:$0x1]
      %v1947 = vlaneseq
      %v1948 = vshrl.u32 %v1947, 7
      %v1949 = vsub.s32 0, %v1948
      %v1950 = vrot.slane %v1946, %v1949
      %v1967 = vunpack.c.l.b16 %v1930
      %v1968 = vunpack.c.l.b16 %v1931
      %v1969 = vunpack.c.l.b16 %v1932
      %v1970 = vunpack.c.l.b16 %v1933
      %v1971 = vunpack.c.l.b16 %v1934
      %v1972 = vunpack.c.l.b16 %v1935
      %v1973 = vunpack.c.l.b16 %v1936
      %v1974 = vunpack.c.l.b16 %v1937
      %v1975 = vunpack.c.l.b16 %v1938
      %v1976 = vunpack.c.l.b16 %v1939
      %v1977 = vunpack.c.l.b16 %v1940
      %v1978 = vunpack.c.l.b16 %v1941
      %v1979 = vunpack.c.l.b16 %v1942
      %v1980 = vunpack.c.l.b16 %v1943
      %v1981 = vunpack.c.l.b16 %v1944
      %v1982 = vunpack.c.l.b16 %v1945
      %v1983 = vpack.c.b16 %v1968, %v1967
      %v1984 = vpack.c.b16 %v1970, %v1969
      %v1985 = vpack.c.b16 %v1972, %v1971
      %v1986 = vpack.c.b16 %v1974, %v1973
      %v1987 = vpack.c.b16 %v1976, %v1975
      %v1988 = vpack.c.b16 %v1978, %v1977
      %v1989 = vpack.c.b16 %v1980, %v1979
      %v1990 = vpack.c.b16 %v1982, %v1981
      %1999 = vmatprep.subr.bf16.mxu0 0
      %2000 = vmatpush1.bf16.msra.mxu0 %v1990
      %2001 = vmatprep.subr.bf16.mxu0 0
      %2002 = vmatpush1.bf16.msra.mxu0 %v1989
      %2003 = vmatprep.subr.bf16.mxu0 0
      %2004 = vmatpush1.bf16.msra.mxu0 %v1988
      %2005 = vmatprep.subr.bf16.mxu0 0
      %2006 = vmatpush1.bf16.msra.mxu0 %v1987
      %2007 = vmatprep.subr.bf16.mxu0 0
      %2008 = vmatpush1.bf16.msra.mxu0 %v1986
      %2009 = vmatprep.subr.bf16.mxu0 0
      %2010 = vmatpush1.bf16.msra.mxu0 %v1985
      %2011 = vmatprep.subr.bf16.mxu0 0
      %2012 = vmatpush1.bf16.msra.mxu0 %v1984
      %2013 = vmatprep.subr.bf16.mxu0 0
      %2014 = vmatpush1.bf16.msra.mxu0 %v1983
      %2015 = vmatprep.subr.bf16.mxu0 0
      %2016 = vmatpush2.bf16.msra.mxu0 0
      %2017 = vmatprep.subr.bf16.mxu0 0
      %2018 = vmatpush2.bf16.msra.mxu0 0
      %2019 = vmatprep.subr.bf16.mxu0 0
      %2020 = vmatpush2.bf16.msra.mxu0 0
      %2021 = vmatprep.subr.bf16.mxu0 0
      %2022 = vmatpush2.bf16.msra.mxu0 0
      %2023 = vmatprep.subr.bf16.mxu0 0
      %2024 = vmatpush2.bf16.msra.mxu0 0
      %2025 = vmatprep.subr.bf16.mxu0 0
      %2026 = vmatpush2.bf16.msra.mxu0 0
      %2027 = vmatprep.subr.bf16.mxu0 0
      %2028 = vmatpush2.bf16.msra.mxu0 0
      %2029 = vmatprep.subr.bf16.mxu0 0
      %2030 = vmatpush2.bf16.msra.mxu0 0
      %2031 = vmatprep.mubr.bf16.mxu0 0
      %2032 = vmatmul.mubr.bf16.gmra.mxu0 %v1929
      %v2033 = vpop.f32.mrf.mxu0
      %v2034 = vadd.f32 %v1950, %v2033
      %v2035 = vpop.f32.mrf.mxu0
      %v2036 = vpop.f32.mrf.mxu0
      %v2037 = vadd.f32 %v1950, %v2036
      %v2038 = vpop.f32.mrf.mxu0
      %2039 = vdwg.mxu0
      %vm2040 = vcmp.ge.f32.partialorder %v2034, 0.0
      %vm2041 = vcmp.ge.f32.partialorder %v2037, 0.0
      %v2042 = vmul.f32 %v2034, 0.1
      %v2043 = vmul.f32 %v2037, 0.1
      %v2044 = vsel %vm2040, %v2034, %v2042
      %v2045 = vsel %vm2041, %v2037, %v2043
      %2046 = vst [vmem:[#allocation2 + $0x8] sm:$0xff] %v2044
      %2047 = vst [vmem:[#allocation2 + $0x10] sm:$0xff] %v2045
      %v2048 = vld [vmem:[#allocation2 + $0x6] sm:$0xff]
      %v2049 = vld [vmem:[#allocation2 + $0xe] sm:$0xff]
      %v2050 = vld [vmem:[#allocation2 + $0x7] sm:$0xff]
      %v2051 = vld [vmem:[#allocation2 + $0xf] sm:$0xff]
      %2052 = vrot.lane.b32.xlu0 %v2050, 16
      %v2053 = vpop.permute.xlu0 %2052
      %2054 = vrot.lane.b32.xlu0 %v2051, 16
      %v2055 = vpop.permute.xlu0 %2054
      %v2056 = vadd.f32 %v2048, %v2053
      %v2057 = vadd.f32 %v2049, %v2055
      %v2058 = vld [vmem:[#allocation2 + $0x8] sm:$0xff]
      %v2059 = vld [vmem:[#allocation2 + $0x10] sm:$0xff]
      %2060 = vrot.lane.b32.xlu0 %v2058, 32
      %v2061 = vpop.permute.xlu0 %2060
      %2062 = vrot.lane.b32.xlu0 %v2059, 32
      %v2063 = vpop.permute.xlu0 %2062
      %v2064 = vadd.f32 %v2056, %v2061
      %v2065 = vadd.f32 %v2057, %v2063
      %v2066 = vld [vmem:[#allocation2 + $0x9] sm:$0xff]
      %v2067 = vld [vmem:[#allocation2 + $0x11] sm:$0xff]
      %2068 = vrot.lane.b32.xlu0 %v2066, 48
      %v2069 = vpop.permute.xlu0 %2068
      %2070 = vrot.lane.b32.xlu0 %v2067, 48
      %v2071 = vpop.permute.xlu0 %2070
      %v2072 = vadd.f32 %v2064, %v2069
      %v2073 = vadd.f32 %v2065, %v2071
      %v2074 = vld [vmem:[#allocation2 + $0xa] sm:$0xff]
      %v2075 = vld [vmem:[#allocation2 + $0x12] sm:$0xff]
      %2076 = vrot.lane.b32.xlu0 %v2074, 64
      %v2077 = vpop.permute.xlu0 %2076
      %2078 = vrot.lane.b32.xlu0 %v2075, 64
      %v2079 = vpop.permute.xlu0 %2078
      %v2080 = vadd.f32 %v2072, %v2077
      %v2081 = vadd.f32 %v2073, %v2079
      %v2082 = vpack.c.bf16 %v2081, %v2080
      %v2083 = vld [vmem:[%s1 + $0x400] sm:$0xf]
      %v2084 = vld [vmem:[%s1 + $0x404] sm:$0xf]
      %v2085 = vld [vmem:[%s1 + $0x408] sm:$0xf]
      %v2086 = vld [vmem:[%s1 + $0x40c] sm:$0xf]
      %v2087 = vld [vmem:[%s1 + $0x410] sm:$0xf]
      %v2088 = vld [vmem:[%s1 + $0x414] sm:$0xf]
      %v2089 = vld [vmem:[%s1 + $0x418] sm:$0xf]
      %v2090 = vld [vmem:[%s1 + $0x41c] sm:$0xf]
      %v2091 = vld [vmem:[%s1 + $0x420] sm:$0xf]
      %v2092 = vld [vmem:[%s1 + $0x424] sm:$0xf]
      %v2093 = vld [vmem:[%s1 + $0x428] sm:$0xf]
      %v2094 = vld [vmem:[%s1 + $0x42c] sm:$0xf]
      %v2095 = vld [vmem:[%s1 + $0x430] sm:$0xf]
      %v2096 = vld [vmem:[%s1 + $0x434] sm:$0xf]
      %v2097 = vld [vmem:[%s1 + $0x438] sm:$0xf]
      %v2098 = vld [vmem:[%s1 + $0x43c] sm:$0xf]
      %v2099 = vld [vmem:[%s2 + $0x8] sm:$0x1]
      %v2100 = vlaneseq
      %v2101 = vshrl.u32 %v2100, 7
      %v2102 = vsub.s32 0, %v2101
      %v2103 = vrot.slane %v2099, %v2102
      %v2120 = vunpack.c.l.b16 %v2083
      %v2121 = vunpack.c.l.b16 %v2084
      %v2122 = vunpack.c.l.b16 %v2085
      %v2123 = vunpack.c.l.b16 %v2086
      %v2124 = vunpack.c.l.b16 %v2087
      %v2125 = vunpack.c.l.b16 %v2088
      %v2126 = vunpack.c.l.b16 %v2089
      %v2127 = vunpack.c.l.b16 %v2090
      %v2128 = vunpack.c.l.b16 %v2091
      %v2129 = vunpack.c.l.b16 %v2092
      %v2130 = vunpack.c.l.b16 %v2093
      %v2131 = vunpack.c.l.b16 %v2094
      %v2132 = vunpack.c.l.b16 %v2095
      %v2133 = vunpack.c.l.b16 %v2096
      %v2134 = vunpack.c.l.b16 %v2097
      %v2135 = vunpack.c.l.b16 %v2098
      %v2136 = vpack.c.b16 %v2121, %v2120
      %v2137 = vpack.c.b16 %v2123, %v2122
      %v2138 = vpack.c.b16 %v2125, %v2124
      %v2139 = vpack.c.b16 %v2127, %v2126
      %v2140 = vpack.c.b16 %v2129, %v2128
      %v2141 = vpack.c.b16 %v2131, %v2130
      %v2142 = vpack.c.b16 %v2133, %v2132
      %v2143 = vpack.c.b16 %v2135, %v2134
      %2152 = vmatprep.subr.bf16.mxu0 0
      %2153 = vmatpush1.bf16.msra.mxu0 %v2143
      %2154 = vmatprep.subr.bf16.mxu0 0
      %2155 = vmatpush1.bf16.msra.mxu0 %v2142
      %2156 = vmatprep.subr.bf16.mxu0 0
      %2157 = vmatpush1.bf16.msra.mxu0 %v2141
      %2158 = vmatprep.subr.bf16.mxu0 0
      %2159 = vmatpush1.bf16.msra.mxu0 %v2140
      %2160 = vmatprep.subr.bf16.mxu0 0
      %2161 = vmatpush1.bf16.msra.mxu0 %v2139
      %2162 = vmatprep.subr.bf16.mxu0 0
      %2163 = vmatpush1.bf16.msra.mxu0 %v2138
      %2164 = vmatprep.subr.bf16.mxu0 0
      %2165 = vmatpush1.bf16.msra.mxu0 %v2137
      %2166 = vmatprep.subr.bf16.mxu0 0
      %2167 = vmatpush1.bf16.msra.mxu0 %v2136
      %2168 = vmatprep.subr.bf16.mxu0 0
      %2169 = vmatpush2.bf16.msra.mxu0 0
      %2170 = vmatprep.subr.bf16.mxu0 0
      %2171 = vmatpush2.bf16.msra.mxu0 0
      %2172 = vmatprep.subr.bf16.mxu0 0
      %2173 = vmatpush2.bf16.msra.mxu0 0
      %2174 = vmatprep.subr.bf16.mxu0 0
      %2175 = vmatpush2.bf16.msra.mxu0 0
      %2176 = vmatprep.subr.bf16.mxu0 0
      %2177 = vmatpush2.bf16.msra.mxu0 0
      %2178 = vmatprep.subr.bf16.mxu0 0
      %2179 = vmatpush2.bf16.msra.mxu0 0
      %2180 = vmatprep.subr.bf16.mxu0 0
      %2181 = vmatpush2.bf16.msra.mxu0 0
      %2182 = vmatprep.subr.bf16.mxu0 0
      %2183 = vmatpush2.bf16.msra.mxu0 0
      %2184 = vmatprep.mubr.bf16.mxu0 0
      %2185 = vmatmul.mubr.bf16.gmra.mxu0 %v2082
      %v2186 = vpop.f32.mrf.mxu0
      %v2187 = vadd.f32 %v2103, %v2186
      %v2188 = vpop.f32.mrf.mxu0
      %v2189 = vpop.f32.mrf.mxu0
      %v2190 = vadd.f32 %v2103, %v2189
      %v2191 = vpop.f32.mrf.mxu0
      %2192 = vdwg.mxu0
      %v2193 = vadd.f32 %v1339, %v2187
      %v2194 = vadd.f32 %v1340, %v2190
      %vm2195 = vcmp.ge.f32.partialorder %v2193, 0.0
      %vm2196 = vcmp.ge.f32.partialorder %v2194, 0.0
      %v2197 = vmul.f32 %v2193, 0.1
      %v2198 = vmul.f32 %v2194, 0.1
      %v2199 = vsel %vm2195, %v2193, %v2197
      %v2200 = vsel %vm2196, %v2194, %v2198
      %2201 = vst [vmem:[#allocation2 + $0x8] sm:$0xff] %v2199
      %2202 = vst [vmem:[#allocation2 + $0x10] sm:$0xff] %v2200
      %v2203 = vld [vmem:[#allocation2 + $0x2] sm:$0xff]
      %v2204 = vld [vmem:[#allocation2 + $0xa] sm:$0xff]
      %v2205 = vld [vmem:[#allocation2 + $0x5] sm:$0xff]
      %v2206 = vld [vmem:[#allocation2 + $0xd] sm:$0xff]
      %2207 = vrot.lane.b32.xlu0 %v2205, 16
      %v2208 = vpop.permute.xlu0 %2207
      %2209 = vrot.lane.b32.xlu0 %v2206, 16
      %v2210 = vpop.permute.xlu0 %2209
      %v2211 = vadd.f32 %v2203, %v2208
      %v2212 = vadd.f32 %v2204, %v2210
      %v2213 = vld [vmem:[#allocation2 + $0x8] sm:$0xff]
      %v2214 = vld [vmem:[#allocation2 + $0x10] sm:$0xff]
      %2215 = vrot.lane.b32.xlu0 %v2213, 32
      %v2216 = vpop.permute.xlu0 %2215
      %2217 = vrot.lane.b32.xlu0 %v2214, 32
      %v2218 = vpop.permute.xlu0 %2217
      %v2219 = vadd.f32 %v2211, %v2216
      %v2220 = vadd.f32 %v2212, %v2218
      %v2221 = vld [vmem:[#allocation2 + $0xb] sm:$0xff]
      %v2222 = vld [vmem:[#allocation2 + $0x13] sm:$0xff]
      %2223 = vrot.lane.b32.xlu0 %v2221, 48
      %v2224 = vpop.permute.xlu0 %2223
      %2225 = vrot.lane.b32.xlu0 %v2222, 48
      %v2226 = vpop.permute.xlu0 %2225
      %v2227 = vadd.f32 %v2219, %v2224
      %v2228 = vadd.f32 %v2220, %v2226
      %v2229 = vld [vmem:[#allocation2 + $0xe] sm:$0xff]
      %v2230 = vld [vmem:[#allocation2 + $0x16] sm:$0xff]
      %2231 = vrot.lane.b32.xlu0 %v2229, 64
      %v2232 = vpop.permute.xlu0 %2231
      %2233 = vrot.lane.b32.xlu0 %v2230, 64
      %v2234 = vpop.permute.xlu0 %2233
      %v2235 = vadd.f32 %v2227, %v2232
      %v2236 = vadd.f32 %v2228, %v2234
      %v2237 = vpack.c.bf16 %v2236, %v2235
      %v2238 = vld [vmem:[%s1 + $0x440] sm:$0xf]
      %v2239 = vld [vmem:[%s1 + $0x444] sm:$0xf]
      %v2240 = vld [vmem:[%s1 + $0x448] sm:$0xf]
      %v2241 = vld [vmem:[%s1 + $0x44c] sm:$0xf]
      %v2242 = vld [vmem:[%s1 + $0x450] sm:$0xf]
      %v2243 = vld [vmem:[%s1 + $0x454] sm:$0xf]
      %v2244 = vld [vmem:[%s1 + $0x458] sm:$0xf]
      %v2245 = vld [vmem:[%s1 + $0x45c] sm:$0xf]
      %v2246 = vld [vmem:[%s1 + $0x460] sm:$0xf]
      %v2247 = vld [vmem:[%s1 + $0x464] sm:$0xf]
      %v2248 = vld [vmem:[%s1 + $0x468] sm:$0xf]
      %v2249 = vld [vmem:[%s1 + $0x46c] sm:$0xf]
      %v2250 = vld [vmem:[%s1 + $0x470] sm:$0xf]
      %v2251 = vld [vmem:[%s1 + $0x474] sm:$0xf]
      %v2252 = vld [vmem:[%s1 + $0x478] sm:$0xf]
      %v2253 = vld [vmem:[%s1 + $0x47c] sm:$0xf]
      %v2254 = vld [vmem:[%s2 + $0x9] sm:$0x1]
      %v2255 = vlaneseq
      %v2256 = vshrl.u32 %v2255, 7
      %v2257 = vsub.s32 0, %v2256
      %v2258 = vrot.slane %v2254, %v2257
      %v2275 = vunpack.c.l.b16 %v2238
      %v2276 = vunpack.c.l.b16 %v2239
      %v2277 = vunpack.c.l.b16 %v2240
      %v2278 = vunpack.c.l.b16 %v2241
      %v2279 = vunpack.c.l.b16 %v2242
      %v2280 = vunpack.c.l.b16 %v2243
      %v2281 = vunpack.c.l.b16 %v2244
      %v2282 = vunpack.c.l.b16 %v2245
      %v2283 = vunpack.c.l.b16 %v2246
      %v2284 = vunpack.c.l.b16 %v2247
      %v2285 = vunpack.c.l.b16 %v2248
      %v2286 = vunpack.c.l.b16 %v2249
      %v2287 = vunpack.c.l.b16 %v2250
      %v2288 = vunpack.c.l.b16 %v2251
      %v2289 = vunpack.c.l.b16 %v2252
      %v2290 = vunpack.c.l.b16 %v2253
      %v2291 = vpack.c.b16 %v2276, %v2275
      %v2292 = vpack.c.b16 %v2278, %v2277
      %v2293 = vpack.c.b16 %v2280, %v2279
      %v2294 = vpack.c.b16 %v2282, %v2281
      %v2295 = vpack.c.b16 %v2284, %v2283
      %v2296 = vpack.c.b16 %v2286, %v2285
      %v2297 = vpack.c.b16 %v2288, %v2287
      %v2298 = vpack.c.b16 %v2290, %v2289
      %2307 = vmatprep.subr.bf16.mxu0 0
      %2308 = vmatpush1.bf16.msra.mxu0 %v2298
      %2309 = vmatprep.subr.bf16.mxu0 0
      %2310 = vmatpush1.bf16.msra.mxu0 %v2297
      %2311 = vmatprep.subr.bf16.mxu0 0
      %2312 = vmatpush1.bf16.msra.mxu0 %v2296
      %2313 = vmatprep.subr.bf16.mxu0 0
      %2314 = vmatpush1.bf16.msra.mxu0 %v2295
      %2315 = vmatprep.subr.bf16.mxu0 0
      %2316 = vmatpush1.bf16.msra.mxu0 %v2294
      %2317 = vmatprep.subr.bf16.mxu0 0
      %2318 = vmatpush1.bf16.msra.mxu0 %v2293
      %2319 = vmatprep.subr.bf16.mxu0 0
      %2320 = vmatpush1.bf16.msra.mxu0 %v2292
      %2321 = vmatprep.subr.bf16.mxu0 0
      %2322 = vmatpush1.bf16.msra.mxu0 %v2291
      %2323 = vmatprep.subr.bf16.mxu0 0
      %2324 = vmatpush2.bf16.msra.mxu0 0
      %2325 = vmatprep.subr.bf16.mxu0 0
      %2326 = vmatpush2.bf16.msra.mxu0 0
      %2327 = vmatprep.subr.bf16.mxu0 0
      %2328 = vmatpush2.bf16.msra.mxu0 0
      %2329 = vmatprep.subr.bf16.mxu0 0
      %2330 = vmatpush2.bf16.msra.mxu0 0
      %2331 = vmatprep.subr.bf16.mxu0 0
      %2332 = vmatpush2.bf16.msra.mxu0 0
      %2333 = vmatprep.subr.bf16.mxu0 0
      %2334 = vmatpush2.bf16.msra.mxu0 0
      %2335 = vmatprep.subr.bf16.mxu0 0
      %2336 = vmatpush2.bf16.msra.mxu0 0
      %2337 = vmatprep.subr.bf16.mxu0 0
      %2338 = vmatpush2.bf16.msra.mxu0 0
      %2339 = vmatprep.mubr.bf16.mxu0 0
      %2340 = vmatmul.mubr.bf16.gmra.mxu0 %v2237
      %v2341 = vpop.f32.mrf.mxu0
      %v2342 = vadd.f32 %v2258, %v2341
      %v2343 = vpop.f32.mrf.mxu0
      %v2344 = vpop.f32.mrf.mxu0
      %v2345 = vadd.f32 %v2258, %v2344
      %v2346 = vpop.f32.mrf.mxu0
      %2347 = vdwg.mxu0
      %vm2348 = vcmp.ge.f32.partialorder %v2342, 0.0
      %vm2349 = vcmp.ge.f32.partialorder %v2345, 0.0
      %v2350 = vmul.f32 %v2342, 0.1
      %v2351 = vmul.f32 %v2345, 0.1
      %v2352 = vsel %vm2348, %v2342, %v2350
      %v2353 = vsel %vm2349, %v2345, %v2351
      %2354 = vst [vmem:[#allocation2 + $0x8] sm:$0xff] %v2352
      %2355 = vst [vmem:[#allocation2 + $0x10] sm:$0xff] %v2353
      %v2356 = vld [vmem:[#allocation2 + $0x6] sm:$0xff]
      %v2357 = vld [vmem:[#allocation2 + $0xe] sm:$0xff]
      %v2358 = vld [vmem:[#allocation2 + $0x7] sm:$0xff]
      %v2359 = vld [vmem:[#allocation2 + $0xf] sm:$0xff]
      %2360 = vrot.lane.b32.xlu0 %v2358, 16
      %v2361 = vpop.permute.xlu0 %2360
      %2362 = vrot.lane.b32.xlu0 %v2359, 16
      %v2363 = vpop.permute.xlu0 %2362
      %v2364 = vadd.f32 %v2356, %v2361
      %v2365 = vadd.f32 %v2357, %v2363
      %v2366 = vld [vmem:[#allocation2 + $0x8] sm:$0xff]
      %v2367 = vld [vmem:[#allocation2 + $0x10] sm:$0xff]
      %2368 = vrot.lane.b32.xlu0 %v2366, 32
      %v2369 = vpop.permute.xlu0 %2368
      %2370 = vrot.lane.b32.xlu0 %v2367, 32
      %v2371 = vpop.permute.xlu0 %2370
      %v2372 = vadd.f32 %v2364, %v2369
      %v2373 = vadd.f32 %v2365, %v2371
      %v2374 = vld [vmem:[#allocation2 + $0x9] sm:$0xff]
      %v2375 = vld [vmem:[#allocation2 + $0x11] sm:$0xff]
      %2376 = vrot.lane.b32.xlu0 %v2374, 48
      %v2377 = vpop.permute.xlu0 %2376
      %2378 = vrot.lane.b32.xlu0 %v2375, 48
      %v2379 = vpop.permute.xlu0 %2378
      %v2380 = vadd.f32 %v2372, %v2377
      %v2381 = vadd.f32 %v2373, %v2379
      %v2382 = vld [vmem:[#allocation2 + $0xa] sm:$0xff]
      %v2383 = vld [vmem:[#allocation2 + $0x12] sm:$0xff]
      %2384 = vrot.lane.b32.xlu0 %v2382, 64
      %v2385 = vpop.permute.xlu0 %2384
      %2386 = vrot.lane.b32.xlu0 %v2383, 64
      %v2387 = vpop.permute.xlu0 %2386
      %v2388 = vadd.f32 %v2380, %v2385
      %v2389 = vadd.f32 %v2381, %v2387
      %v2390 = vpack.c.bf16 %v2389, %v2388
      %v2391 = vld [vmem:[%s1 + $0x480] sm:$0xf]
      %v2392 = vld [vmem:[%s1 + $0x484] sm:$0xf]
      %v2393 = vld [vmem:[%s1 + $0x488] sm:$0xf]
      %v2394 = vld [vmem:[%s1 + $0x48c] sm:$0xf]
      %v2395 = vld [vmem:[%s1 + $0x490] sm:$0xf]
      %v2396 = vld [vmem:[%s1 + $0x494] sm:$0xf]
      %v2397 = vld [vmem:[%s1 + $0x498] sm:$0xf]
      %v2398 = vld [vmem:[%s1 + $0x49c] sm:$0xf]
      %v2399 = vld [vmem:[%s1 + $0x4a0] sm:$0xf]
      %v2400 = vld [vmem:[%s1 + $0x4a4] sm:$0xf]
      %v2401 = vld [vmem:[%s1 + $0x4a8] sm:$0xf]
      %v2402 = vld [vmem:[%s1 + $0x4ac] sm:$0xf]
      %v2403 = vld [vmem:[%s1 + $0x4b0] sm:$0xf]
      %v2404 = vld [vmem:[%s1 + $0x4b4] sm:$0xf]
      %v2405 = vld [vmem:[%s1 + $0x4b8] sm:$0xf]
      %v2406 = vld [vmem:[%s1 + $0x4bc] sm:$0xf]
      %v2407 = vld [vmem:[%s2 + $0xa] sm:$0x1]
      %v2408 = vlaneseq
      %v2409 = vshrl.u32 %v2408, 7
      %v2410 = vsub.s32 0, %v2409
      %v2411 = vrot.slane %v2407, %v2410
      %v2428 = vunpack.c.l.b16 %v2391
      %v2429 = vunpack.c.l.b16 %v2392
      %v2430 = vunpack.c.l.b16 %v2393
      %v2431 = vunpack.c.l.b16 %v2394
      %v2432 = vunpack.c.l.b16 %v2395
      %v2433 = vunpack.c.l.b16 %v2396
      %v2434 = vunpack.c.l.b16 %v2397
      %v2435 = vunpack.c.l.b16 %v2398
      %v2436 = vunpack.c.l.b16 %v2399
      %v2437 = vunpack.c.l.b16 %v2400
      %v2438 = vunpack.c.l.b16 %v2401
      %v2439 = vunpack.c.l.b16 %v2402
      %v2440 = vunpack.c.l.b16 %v2403
      %v2441 = vunpack.c.l.b16 %v2404
      %v2442 = vunpack.c.l.b16 %v2405
      %v2443 = vunpack.c.l.b16 %v2406
      %v2444 = vpack.c.b16 %v2429, %v2428
      %v2445 = vpack.c.b16 %v2431, %v2430
      %v2446 = vpack.c.b16 %v2433, %v2432
      %v2447 = vpack.c.b16 %v2435, %v2434
      %v2448 = vpack.c.b16 %v2437, %v2436
      %v2449 = vpack.c.b16 %v2439, %v2438
      %v2450 = vpack.c.b16 %v2441, %v2440
      %v2451 = vpack.c.b16 %v2443, %v2442
      %2460 = vmatprep.subr.bf16.mxu0 0
      %2461 = vmatpush1.bf16.msra.mxu0 %v2451
      %2462 = vmatprep.subr.bf16.mxu0 0
      %2463 = vmatpush1.bf16.msra.mxu0 %v2450
      %2464 = vmatprep.subr.bf16.mxu0 0
      %2465 = vmatpush1.bf16.msra.mxu0 %v2449
      %2466 = vmatprep.subr.bf16.mxu0 0
      %2467 = vmatpush1.bf16.msra.mxu0 %v2448
      %2468 = vmatprep.subr.bf16.mxu0 0
      %2469 = vmatpush1.bf16.msra.mxu0 %v2447
      %2470 = vmatprep.subr.bf16.mxu0 0
      %2471 = vmatpush1.bf16.msra.mxu0 %v2446
      %2472 = vmatprep.subr.bf16.mxu0 0
      %2473 = vmatpush1.bf16.msra.mxu0 %v2445
      %2474 = vmatprep.subr.bf16.mxu0 0
      %2475 = vmatpush1.bf16.msra.mxu0 %v2444
      %2476 = vmatprep.subr.bf16.mxu0 0
      %2477 = vmatpush2.bf16.msra.mxu0 0
      %2478 = vmatprep.subr.bf16.mxu0 0
      %2479 = vmatpush2.bf16.msra.mxu0 0
      %2480 = vmatprep.subr.bf16.mxu0 0
      %2481 = vmatpush2.bf16.msra.mxu0 0
      %2482 = vmatprep.subr.bf16.mxu0 0
      %2483 = vmatpush2.bf16.msra.mxu0 0
      %2484 = vmatprep.subr.bf16.mxu0 0
      %2485 = vmatpush2.bf16.msra.mxu0 0
      %2486 = vmatprep.subr.bf16.mxu0 0
      %2487 = vmatpush2.bf16.msra.mxu0 0
      %2488 = vmatprep.subr.bf16.mxu0 0
      %2489 = vmatpush2.bf16.msra.mxu0 0
      %2490 = vmatprep.subr.bf16.mxu0 0
      %2491 = vmatpush2.bf16.msra.mxu0 0
      %2492 = vmatprep.mubr.bf16.mxu0 0
      %2493 = vmatmul.mubr.bf16.gmra.mxu0 %v2390
      %v2494 = vpop.f32.mrf.mxu0
      %v2495 = vadd.f32 %v2411, %v2494
      %v2496 = vpop.f32.mrf.mxu0
      %v2497 = vpop.f32.mrf.mxu0
      %v2498 = vadd.f32 %v2411, %v2497
      %v2499 = vpop.f32.mrf.mxu0
      %2500 = vdwg.mxu0
      %v2501 = vadd.f32 %v2193, %v2495
      %v2502 = vadd.f32 %v2194, %v2498
      %v2503 = vadd.f32 %v1891, %v2501
      %v2504 = vadd.f32 %v1892, %v2502
      %v2505 = vmul.f32 %v2503, 0.5
      %v2506 = vmul.f32 %v2504, 0.5
      %vm2507 = vcmp.ge.f32.partialorder %v2505, 0.0
      %vm2508 = vcmp.ge.f32.partialorder %v2506, 0.0
      %v2509 = vmul.f32 %v2505, 0.1
      %v2510 = vmul.f32 %v2506, 0.1
      %v2511 = vsel %vm2507, %v2505, %v2509
      %v2512 = vsel %vm2508, %v2506, %v2510
      %2513 = vst [vmem:[#allocation2 + $0x8] sm:$0xff] %v2511
      %2514 = vst [vmem:[#allocation2 + $0x10] sm:$0xff] %v2512
      %v2515 = vld [vmem:[#allocation2 + $0x7] sm:$0xff]
      %v2516 = vld [vmem:[#allocation2 + $0xf] sm:$0xff]
      %v2517 = vld [vmem:[#allocation2 + $0x8] sm:$0xff]
      %v2518 = vld [vmem:[#allocation2 + $0x10] sm:$0xff]
      %2519 = vrot.lane.b32.xlu0 %v2517, 16
      %v2520 = vpop.permute.xlu0 %2519
      %2521 = vrot.lane.b32.xlu0 %v2518, 16
      %v2522 = vpop.permute.xlu0 %2521
      %v2523 = vadd.f32 %v2515, %v2520
      %v2524 = vadd.f32 %v2516, %v2522
      %v2525 = vpack.c.bf16 %v2524, %v2523
      %v2526 = vld [vmem:[%s1 + $0x4c0] sm:$0xf]
      %v2527 = vld [vmem:[%s1 + $0x4c4] sm:$0xf]
      %v2528 = vld [vmem:[%s1 + $0x4c8] sm:$0xf]
      %v2529 = vld [vmem:[%s1 + $0x4cc] sm:$0xf]
      %v2530 = vld [vmem:[%s1 + $0x4d0] sm:$0xf]
      %v2531 = vld [vmem:[%s1 + $0x4d4] sm:$0xf]
      %v2532 = vld [vmem:[%s1 + $0x4d8] sm:$0xf]
      %v2533 = vld [vmem:[%s1 + $0x4dc] sm:$0xf]
      %v2534 = vld [vmem:[%s1 + $0x4e0] sm:$0xf]
      %v2535 = vld [vmem:[%s1 + $0x4e4] sm:$0xf]
      %v2536 = vld [vmem:[%s1 + $0x4e8] sm:$0xf]
      %v2537 = vld [vmem:[%s1 + $0x4ec] sm:$0xf]
      %v2538 = vld [vmem:[%s1 + $0x4f0] sm:$0xf]
      %v2539 = vld [vmem:[%s1 + $0x4f4] sm:$0xf]
      %v2540 = vld [vmem:[%s1 + $0x4f8] sm:$0xf]
      %v2541 = vld [vmem:[%s1 + $0x4fc] sm:$0xf]
      %v2542 = vld [vmem:[%s2 + $0xb] sm:$0x1]
      %v2543 = vlaneseq
      %v2544 = vshrl.u32 %v2543, 7
      %v2545 = vsub.s32 0, %v2544
      %v2546 = vrot.slane %v2542, %v2545
      %v2563 = vunpack.c.l.b16 %v2526
      %v2564 = vunpack.c.l.b16 %v2527
      %v2565 = vunpack.c.l.b16 %v2528
      %v2566 = vunpack.c.l.b16 %v2529
      %v2567 = vunpack.c.l.b16 %v2530
      %v2568 = vunpack.c.l.b16 %v2531
      %v2569 = vunpack.c.l.b16 %v2532
      %v2570 = vunpack.c.l.b16 %v2533
      %v2571 = vunpack.c.l.b16 %v2534
      %v2572 = vunpack.c.l.b16 %v2535
      %v2573 = vunpack.c.l.b16 %v2536
      %v2574 = vunpack.c.l.b16 %v2537
      %v2575 = vunpack.c.l.b16 %v2538
      %v2576 = vunpack.c.l.b16 %v2539
      %v2577 = vunpack.c.l.b16 %v2540
      %v2578 = vunpack.c.l.b16 %v2541
      %v2579 = vpack.c.b16 %v2564, %v2563
      %v2580 = vpack.c.b16 %v2566, %v2565
      %v2581 = vpack.c.b16 %v2568, %v2567
      %v2582 = vpack.c.b16 %v2570, %v2569
      %v2583 = vpack.c.b16 %v2572, %v2571
      %v2584 = vpack.c.b16 %v2574, %v2573
      %v2585 = vpack.c.b16 %v2576, %v2575
      %v2586 = vpack.c.b16 %v2578, %v2577
      %2595 = vmatprep.subr.bf16.mxu0 0
      %2596 = vmatpush1.bf16.msra.mxu0 %v2586
      %2597 = vmatprep.subr.bf16.mxu0 0
      %2598 = vmatpush1.bf16.msra.mxu0 %v2585
      %2599 = vmatprep.subr.bf16.mxu0 0
      %2600 = vmatpush1.bf16.msra.mxu0 %v2584
      %2601 = vmatprep.subr.bf16.mxu0 0
      %2602 = vmatpush1.bf16.msra.mxu0 %v2583
      %2603 = vmatprep.subr.bf16.mxu0 0
      %2604 = vmatpush1.bf16.msra.mxu0 %v2582
      %2605 = vmatprep.subr.bf16.mxu0 0
      %2606 = vmatpush1.bf16.msra.mxu0 %v2581
      %2607 = vmatprep.subr.bf16.mxu0 0
      %2608 = vmatpush1.bf16.msra.mxu0 %v2580
      %2609 = vmatprep.subr.bf16.mxu0 0
      %2610 = vmatpush1.bf16.msra.mxu0 %v2579
      %2611 = vmatprep.subr.bf16.mxu0 0
      %2612 = vmatpush2.bf16.msra.mxu0 0
      %2613 = vmatprep.subr.bf16.mxu0 0
      %2614 = vmatpush2.bf16.msra.mxu0 0
      %2615 = vmatprep.subr.bf16.mxu0 0
      %2616 = vmatpush2.bf16.msra.mxu0 0
      %2617 = vmatprep.subr.bf16.mxu0 0
      %2618 = vmatpush2.bf16.msra.mxu0 0
      %2619 = vmatprep.subr.bf16.mxu0 0
      %2620 = vmatpush2.bf16.msra.mxu0 0
      %2621 = vmatprep.subr.bf16.mxu0 0
      %2622 = vmatpush2.bf16.msra.mxu0 0
      %2623 = vmatprep.subr.bf16.mxu0 0
      %2624 = vmatpush2.bf16.msra.mxu0 0
      %2625 = vmatprep.subr.bf16.mxu0 0
      %2626 = vmatpush2.bf16.msra.mxu0 0
      %2627 = vmatprep.mubr.bf16.mxu0 0
      %2628 = vmatmul.mubr.bf16.gmra.mxu0 %v2525
      %v2629 = vpop.f32.mrf.mxu0
      %v2630 = vadd.f32 %v2546, %v2629
      %v2631 = vpop.f32.mrf.mxu0
      %v2632 = vpop.f32.mrf.mxu0
      %v2633 = vadd.f32 %v2546, %v2632
      %v2634 = vpop.f32.mrf.mxu0
      %2635 = vdwg.mxu0
      %v2636 = vld [vmem:[#allocation2 + $0x9] sm:$0xff]
      %v2637 = vld [vmem:[#allocation2 + $0x11] sm:$0xff]
      %2638 = vrot.lane.b32.xlu0 %v2636, 16
      %v2639 = vpop.permute.xlu0 %2638
      %2640 = vrot.lane.b32.xlu0 %v2637, 16
      %v2641 = vpop.permute.xlu0 %2640
      %v2642 = vadd.f32 %v2517, %v2639
      %v2643 = vadd.f32 %v2518, %v2641
      %v2644 = vpack.c.bf16 %v2643, %v2642
      %v2645 = vld [vmem:[%s1 + $0x500] sm:$0xf]
      %v2646 = vld [vmem:[%s1 + $0x504] sm:$0xf]
      %v2647 = vld [vmem:[%s1 + $0x508] sm:$0xf]
      %v2648 = vld [vmem:[%s1 + $0x50c] sm:$0xf]
      %v2649 = vld [vmem:[%s1 + $0x510] sm:$0xf]
      %v2650 = vld [vmem:[%s1 + $0x514] sm:$0xf]
      %v2651 = vld [vmem:[%s1 + $0x518] sm:$0xf]
      %v2652 = vld [vmem:[%s1 + $0x51c] sm:$0xf]
      %v2653 = vld [vmem:[%s1 + $0x520] sm:$0xf]
      %v2654 = vld [vmem:[%s1 + $0x524] sm:$0xf]
      %v2655 = vld [vmem:[%s1 + $0x528] sm:$0xf]
      %v2656 = vld [vmem:[%s1 + $0x52c] sm:$0xf]
      %v2657 = vld [vmem:[%s1 + $0x530] sm:$0xf]
      %v2658 = vld [vmem:[%s1 + $0x534] sm:$0xf]
      %v2659 = vld [vmem:[%s1 + $0x538] sm:$0xf]
      %v2660 = vld [vmem:[%s1 + $0x53c] sm:$0xf]
      %v2677 = vunpack.c.l.b16 %v2645
      %v2678 = vunpack.c.l.b16 %v2646
      %v2679 = vunpack.c.l.b16 %v2647
      %v2680 = vunpack.c.l.b16 %v2648
      %v2681 = vunpack.c.l.b16 %v2649
      %v2682 = vunpack.c.l.b16 %v2650
      %v2683 = vunpack.c.l.b16 %v2651
      %v2684 = vunpack.c.l.b16 %v2652
      %v2685 = vunpack.c.l.b16 %v2653
      %v2686 = vunpack.c.l.b16 %v2654
      %v2687 = vunpack.c.l.b16 %v2655
      %v2688 = vunpack.c.l.b16 %v2656
      %v2689 = vunpack.c.l.b16 %v2657
      %v2690 = vunpack.c.l.b16 %v2658
      %v2691 = vunpack.c.l.b16 %v2659
      %v2692 = vunpack.c.l.b16 %v2660
      %v2693 = vpack.c.b16 %v2678, %v2677
      %v2694 = vpack.c.b16 %v2680, %v2679
      %v2695 = vpack.c.b16 %v2682, %v2681
      %v2696 = vpack.c.b16 %v2684, %v2683
      %v2697 = vpack.c.b16 %v2686, %v2685
      %v2698 = vpack.c.b16 %v2688, %v2687
      %v2699 = vpack.c.b16 %v2690, %v2689
      %v2700 = vpack.c.b16 %v2692, %v2691
      %2709 = vmatprep.subr.bf16.mxu0 0
      %2710 = vmatpush1.bf16.msra.mxu0 %v2700
      %2711 = vmatprep.subr.bf16.mxu0 0
      %2712 = vmatpush1.bf16.msra.mxu0 %v2699
      %2713 = vmatprep.subr.bf16.mxu0 0
      %2714 = vmatpush1.bf16.msra.mxu0 %v2698
      %2715 = vmatprep.subr.bf16.mxu0 0
      %2716 = vmatpush1.bf16.msra.mxu0 %v2697
      %2717 = vmatprep.subr.bf16.mxu0 0
      %2718 = vmatpush1.bf16.msra.mxu0 %v2696
      %2719 = vmatprep.subr.bf16.mxu0 0
      %2720 = vmatpush1.bf16.msra.mxu0 %v2695
      %2721 = vmatprep.subr.bf16.mxu0 0
      %2722 = vmatpush1.bf16.msra.mxu0 %v2694
      %2723 = vmatprep.subr.bf16.mxu0 0
      %2724 = vmatpush1.bf16.msra.mxu0 %v2693
      %2725 = vmatprep.subr.bf16.mxu0 0
      %2726 = vmatpush2.bf16.msra.mxu0 0
      %2727 = vmatprep.subr.bf16.mxu0 0
      %2728 = vmatpush2.bf16.msra.mxu0 0
      %2729 = vmatprep.subr.bf16.mxu0 0
      %2730 = vmatpush2.bf16.msra.mxu0 0
      %2731 = vmatprep.subr.bf16.mxu0 0
      %2732 = vmatpush2.bf16.msra.mxu0 0
      %2733 = vmatprep.subr.bf16.mxu0 0
      %2734 = vmatpush2.bf16.msra.mxu0 0
      %2735 = vmatprep.subr.bf16.mxu0 0
      %2736 = vmatpush2.bf16.msra.mxu0 0
      %2737 = vmatprep.subr.bf16.mxu0 0
      %2738 = vmatpush2.bf16.msra.mxu0 0
      %2739 = vmatprep.subr.bf16.mxu0 0
      %2740 = vmatpush2.bf16.msra.mxu0 0
      %2741 = vmatprep.mubr.bf16.mxu0 0
      %2742 = vmatmul.mubr.bf16.gmra.mxu0 %v2644
      %v2743 = vpop.f32.mrf.mxu0
      %v2744 = vadd.f32 %v2546, %v2743
      %v2745 = vpop.f32.mrf.mxu0
      %v2746 = vpop.f32.mrf.mxu0
      %v2747 = vadd.f32 %v2546, %v2746
      %v2748 = vpop.f32.mrf.mxu0
      %2749 = vdwg.mxu0
      %2750 = vst [vmem:[%s1335] ss:$2 sm:$0xff] %v2630
      %s2751 = scalar_lea.vmem [#allocation2], 24
      %2752 = vst [vmem:[%s2751] ss:$2 sm:$0xff] %v2633
      %2753 = vst [vmem:[%s1337] ss:$2 sm:$0xff] %v2744
      %s2754 = scalar_lea.vmem [#allocation2], 25
      %2755 = vst [vmem:[%s2754] ss:$2 sm:$0xff] %v2747
      %v2756 = vld [vmem:[#allocation2 + $0x8] sm:$0xff]
      %v2757 = vld [vmem:[#allocation2 + $0x10] sm:$0xff]
      %v2758 = vld [vmem:[#allocation2 + $0x18] sm:$0xff]
      %v2759 = vld [vmem:[#allocation2 + $0x20] sm:$0xff]
      %vm2760 = vcmp.ge.f32.partialorder %v2756, 0.0
      %vm2761 = vcmp.ge.f32.partialorder %v2757, 0.0
      %vm2762 = vcmp.ge.f32.partialorder %v2758, 0.0
      %vm2763 = vcmp.ge.f32.partialorder %v2759, 0.0
      %v2764 = vmul.f32 %v2756, 0.1
      %v2765 = vmul.f32 %v2757, 0.1
      %v2766 = vmul.f32 %v2758, 0.1
      %v2767 = vmul.f32 %v2759, 0.1
      %v2768 = vsel %vm2760, %v2756, %v2764
      %v2769 = vsel %vm2761, %v2757, %v2765
      %v2770 = vsel %vm2762, %v2758, %v2766
      %v2771 = vsel %vm2763, %v2759, %v2767
      %2772 = vst [vmem:[#allocation2 + $0x8] sm:$0xff] %v2768
      %2773 = vst [vmem:[#allocation2 + $0x10] sm:$0xff] %v2769
      %2774 = vst [vmem:[#allocation2 + $0x18] sm:$0xff] %v2770
      %2775 = vst [vmem:[#allocation2 + $0x20] sm:$0xff] %v2771
      %v2776 = vld [vmem:[#allocation2 + $0x7] sm:$0xff]
      %v2777 = vld [vmem:[#allocation2 + $0xf] sm:$0xff]
      %v2778 = vld [vmem:[#allocation2 + $0x17] sm:$0xff]
      %v2779 = vld [vmem:[#allocation2 + $0x1f] sm:$0xff]
      %v2780 = vld [vmem:[#allocation2 + $0x8] sm:$0xff]
      %v2781 = vld [vmem:[#allocation2 + $0x10] sm:$0xff]
      %v2782 = vld [vmem:[#allocation2 + $0x18] sm:$0xff]
      %v2783 = vld [vmem:[#allocation2 + $0x20] sm:$0xff]
      %2784 = vrot.lane.b32.xlu0 %v2780, 8
      %v2785 = vpop.permute.xlu0 %2784
      %2786 = vrot.lane.b32.xlu0 %v2781, 8
      %v2787 = vpop.permute.xlu0 %2786
      %2788 = vrot.lane.b32.xlu0 %v2782, 8
      %v2789 = vpop.permute.xlu0 %2788
      %2790 = vrot.lane.b32.xlu0 %v2783, 8
      %v2791 = vpop.permute.xlu0 %2790
      %v2792 = vadd.f32 %v2776, %v2785
      %v2793 = vadd.f32 %v2777, %v2787
      %v2794 = vadd.f32 %v2778, %v2789
      %v2795 = vadd.f32 %v2779, %v2791
      %v2796 = vld [vmem:[#allocation2 + $0x9] sm:$0xff]
      %v2797 = vld [vmem:[#allocation2 + $0x11] sm:$0xff]
      %v2798 = vld [vmem:[#allocation2 + $0x19] sm:$0xff]
      %v2799 = vld [vmem:[#allocation2 + $0x21] sm:$0xff]
      %2800 = vrot.lane.b32.xlu0 %v2796, 16
      %v2801 = vpop.permute.xlu0 %2800
      %2802 = vrot.lane.b32.xlu0 %v2797, 16
      %v2803 = vpop.permute.xlu0 %2802
      %2804 = vrot.lane.b32.xlu0 %v2798, 16
      %v2805 = vpop.permute.xlu0 %2804
      %2806 = vrot.lane.b32.xlu0 %v2799, 16
      %v2807 = vpop.permute.xlu0 %2806
      %v2808 = vadd.f32 %v2792, %v2801
      %v2809 = vadd.f32 %v2793, %v2803
      %v2810 = vadd.f32 %v2794, %v2805
      %v2811 = vadd.f32 %v2795, %v2807
      %v2812 = vpack.c.bf16 %v2809, %v2808
      %v2813 = vpack.c.bf16 %v2811, %v2810
      %v2814 = vld [vmem:[%s1 + $0x540] sm:$0xf]
      %v2815 = vld [vmem:[%s1 + $0x544] sm:$0xf]
      %v2816 = vld [vmem:[%s1 + $0x548] sm:$0xf]
      %v2817 = vld [vmem:[%s1 + $0x54c] sm:$0xf]
      %v2818 = vld [vmem:[%s1 + $0x550] sm:$0xf]
      %v2819 = vld [vmem:[%s1 + $0x554] sm:$0xf]
      %v2820 = vld [vmem:[%s1 + $0x558] sm:$0xf]
      %v2821 = vld [vmem:[%s1 + $0x55c] sm:$0xf]
      %v2822 = vld [vmem:[%s1 + $0x560] sm:$0xf]
      %v2823 = vld [vmem:[%s1 + $0x564] sm:$0xf]
      %v2824 = vld [vmem:[%s1 + $0x568] sm:$0xf]
      %v2825 = vld [vmem:[%s1 + $0x56c] sm:$0xf]
      %v2826 = vld [vmem:[%s1 + $0x570] sm:$0xf]
      %v2827 = vld [vmem:[%s1 + $0x574] sm:$0xf]
      %v2828 = vld [vmem:[%s1 + $0x578] sm:$0xf]
      %v2829 = vld [vmem:[%s1 + $0x57c] sm:$0xf]
      %v2830 = vld [vmem:[%s2 + $0xc] sm:$0x1]
      %v2831 = vlaneseq
      %v2832 = vshrl.u32 %v2831, 7
      %v2833 = vsub.s32 0, %v2832
      %v2834 = vrot.slane %v2830, %v2833
      %v2851 = vunpack.c.l.b16 %v2814
      %v2852 = vunpack.c.l.b16 %v2815
      %v2853 = vunpack.c.l.b16 %v2816
      %v2854 = vunpack.c.l.b16 %v2817
      %v2855 = vunpack.c.l.b16 %v2818
      %v2856 = vunpack.c.l.b16 %v2819
      %v2857 = vunpack.c.l.b16 %v2820
      %v2858 = vunpack.c.l.b16 %v2821
      %v2859 = vunpack.c.l.b16 %v2822
      %v2860 = vunpack.c.l.b16 %v2823
      %v2861 = vunpack.c.l.b16 %v2824
      %v2862 = vunpack.c.l.b16 %v2825
      %v2863 = vunpack.c.l.b16 %v2826
      %v2864 = vunpack.c.l.b16 %v2827
      %v2865 = vunpack.c.l.b16 %v2828
      %v2866 = vunpack.c.l.b16 %v2829
      %v2867 = vpack.c.b16 %v2852, %v2851
      %v2868 = vpack.c.b16 %v2854, %v2853
      %v2869 = vpack.c.b16 %v2856, %v2855
      %v2870 = vpack.c.b16 %v2858, %v2857
      %v2871 = vpack.c.b16 %v2860, %v2859
      %v2872 = vpack.c.b16 %v2862, %v2861
      %v2873 = vpack.c.b16 %v2864, %v2863
      %v2874 = vpack.c.b16 %v2866, %v2865
      %2883 = vmatprep.subr.bf16.mxu0 0
      %2884 = vmatpush1.bf16.msra.mxu0 %v2874
      %2885 = vmatprep.subr.bf16.mxu0 0
      %2886 = vmatpush1.bf16.msra.mxu0 %v2873
      %2887 = vmatprep.subr.bf16.mxu0 0
      %2888 = vmatpush1.bf16.msra.mxu0 %v2872
      %2889 = vmatprep.subr.bf16.mxu0 0
      %2890 = vmatpush1.bf16.msra.mxu0 %v2871
      %2891 = vmatprep.subr.bf16.mxu0 0
      %2892 = vmatpush1.bf16.msra.mxu0 %v2870
      %2893 = vmatprep.subr.bf16.mxu0 0
      %2894 = vmatpush1.bf16.msra.mxu0 %v2869
      %2895 = vmatprep.subr.bf16.mxu0 0
      %2896 = vmatpush1.bf16.msra.mxu0 %v2868
      %2897 = vmatprep.subr.bf16.mxu0 0
      %2898 = vmatpush1.bf16.msra.mxu0 %v2867
      %2899 = vmatprep.subr.bf16.mxu0 0
      %2900 = vmatpush2.bf16.msra.mxu0 0
      %2901 = vmatprep.subr.bf16.mxu0 0
      %2902 = vmatpush2.bf16.msra.mxu0 0
      %2903 = vmatprep.subr.bf16.mxu0 0
      %2904 = vmatpush2.bf16.msra.mxu0 0
      %2905 = vmatprep.subr.bf16.mxu0 0
      %2906 = vmatpush2.bf16.msra.mxu0 0
      %2907 = vmatprep.subr.bf16.mxu0 0
      %2908 = vmatpush2.bf16.msra.mxu0 0
      %2909 = vmatprep.subr.bf16.mxu0 0
      %2910 = vmatpush2.bf16.msra.mxu0 0
      %2911 = vmatprep.subr.bf16.mxu0 0
      %2912 = vmatpush2.bf16.msra.mxu0 0
      %2913 = vmatprep.subr.bf16.mxu0 0
      %2914 = vmatpush2.bf16.msra.mxu0 0
      %2915 = vmatprep.mubr.bf16.mxu0 0
      %2916 = vmatmul.mubr.bf16.gmra.mxu0 %v2812
      %v2917 = vpop.f32.mrf.mxu0
      %v2918 = vadd.f32 %v2834, %v2917
      %v2919 = vpop.f32.mrf.mxu0
      %v2920 = vpop.f32.mrf.mxu0
      %v2921 = vadd.f32 %v2834, %v2920
      %v2922 = vpop.f32.mrf.mxu0
      %2923 = vmatprep.mubr.bf16.mxu0 0
      %2924 = vmatmul.mubr.bf16.gmra.mxu0 %v2813
      %v2925 = vpop.f32.mrf.mxu0
      %v2926 = vadd.f32 %v2834, %v2925
      %v2927 = vpop.f32.mrf.mxu0
      %v2928 = vpop.f32.mrf.mxu0
      %v2929 = vadd.f32 %v2834, %v2928
      %v2930 = vpop.f32.mrf.mxu0
      %2931 = vdwg.mxu0
      %vm2932 = vcmp.ge.f32.partialorder %v2918, 0.0
      %vm2933 = vcmp.ge.f32.partialorder %v2921, 0.0
      %vm2934 = vcmp.ge.f32.partialorder %v2926, 0.0
      %vm2935 = vcmp.ge.f32.partialorder %v2929, 0.0
      %v2936 = vmul.f32 %v2918, 0.1
      %v2937 = vmul.f32 %v2921, 0.1
      %v2938 = vmul.f32 %v2926, 0.1
      %v2939 = vmul.f32 %v2929, 0.1
      %v2940 = vsel %vm2932, %v2918, %v2936
      %v2941 = vsel %vm2933, %v2921, %v2937
      %v2942 = vsel %vm2934, %v2926, %v2938
      %v2943 = vsel %vm2935, %v2929, %v2939
      %2944 = vst [vmem:[#allocation2 + $0x8] sm:$0xff] %v2940
      %2945 = vst [vmem:[#allocation2 + $0x10] sm:$0xff] %v2941
      %2946 = vst [vmem:[#allocation2 + $0x18] sm:$0xff] %v2942
      %2947 = vst [vmem:[#allocation2 + $0x20] sm:$0xff] %v2943
      %v2948 = vld [vmem:[#allocation2 + $0x7] sm:$0xff]
      %v2949 = vld [vmem:[#allocation2 + $0xf] sm:$0xff]
      %v2950 = vld [vmem:[#allocation2 + $0x17] sm:$0xff]
      %v2951 = vld [vmem:[#allocation2 + $0x1f] sm:$0xff]
      %v2952 = vld [vmem:[#allocation2 + $0x8] sm:$0xff]
      %v2953 = vld [vmem:[#allocation2 + $0x10] sm:$0xff]
      %v2954 = vld [vmem:[#allocation2 + $0x18] sm:$0xff]
      %v2955 = vld [vmem:[#allocation2 + $0x20] sm:$0xff]
      %2956 = vrot.lane.b32.xlu0 %v2952, 8
      %v2957 = vpop.permute.xlu0 %2956
      %2958 = vrot.lane.b32.xlu0 %v2953, 8
      %v2959 = vpop.permute.xlu0 %2958
      %2960 = vrot.lane.b32.xlu0 %v2954, 8
      %v2961 = vpop.permute.xlu0 %2960
      %2962 = vrot.lane.b32.xlu0 %v2955, 8
      %v2963 = vpop.permute.xlu0 %2962
      %v2964 = vadd.f32 %v2948, %v2957
      %v2965 = vadd.f32 %v2949, %v2959
      %v2966 = vadd.f32 %v2950, %v2961
      %v2967 = vadd.f32 %v2951, %v2963
      %v2968 = vld [vmem:[#allocation2 + $0x9] sm:$0xff]
      %v2969 = vld [vmem:[#allocation2 + $0x11] sm:$0xff]
      %v2970 = vld [vmem:[#allocation2 + $0x19] sm:$0xff]
      %v2971 = vld [vmem:[#allocation2 + $0x21] sm:$0xff]
      %2972 = vrot.lane.b32.xlu0 %v2968, 16
      %v2973 = vpop.permute.xlu0 %2972
      %2974 = vrot.lane.b32.xlu0 %v2969, 16
      %v2975 = vpop.permute.xlu0 %2974
      %2976 = vrot.lane.b32.xlu0 %v2970, 16
      %v2977 = vpop.permute.xlu0 %2976
      %2978 = vrot.lane.b32.xlu0 %v2971, 16
      %v2979 = vpop.permute.xlu0 %2978
      %v2980 = vadd.f32 %v2964, %v2973
      %v2981 = vadd.f32 %v2965, %v2975
      %v2982 = vadd.f32 %v2966, %v2977
      %v2983 = vadd.f32 %v2967, %v2979
      %v2984 = vpack.c.bf16 %v2981, %v2980
      %v2985 = vpack.c.bf16 %v2983, %v2982
      %v2986 = vld [vmem:[%s1 + $0x580] sm:$0xf]
      %v2987 = vld [vmem:[%s1 + $0x584] sm:$0xf]
      %v2988 = vld [vmem:[%s1 + $0x588] sm:$0xf]
      %v2989 = vld [vmem:[%s1 + $0x58c] sm:$0xf]
      %v2990 = vld [vmem:[%s1 + $0x590] sm:$0xf]
      %v2991 = vld [vmem:[%s1 + $0x594] sm:$0xf]
      %v2992 = vld [vmem:[%s1 + $0x598] sm:$0xf]
      %v2993 = vld [vmem:[%s1 + $0x59c] sm:$0xf]
      %v2994 = vld [vmem:[%s1 + $0x5a0] sm:$0xf]
      %v2995 = vld [vmem:[%s1 + $0x5a4] sm:$0xf]
      %v2996 = vld [vmem:[%s1 + $0x5a8] sm:$0xf]
      %v2997 = vld [vmem:[%s1 + $0x5ac] sm:$0xf]
      %v2998 = vld [vmem:[%s1 + $0x5b0] sm:$0xf]
      %v2999 = vld [vmem:[%s1 + $0x5b4] sm:$0xf]
      %v3000 = vld [vmem:[%s1 + $0x5b8] sm:$0xf]
      %v3001 = vld [vmem:[%s1 + $0x5bc] sm:$0xf]
      %v3002 = vld [vmem:[%s2 + $0xd] sm:$0x1]
      %v3003 = vlaneseq
      %v3004 = vshrl.u32 %v3003, 7
      %v3005 = vsub.s32 0, %v3004
      %v3006 = vrot.slane %v3002, %v3005
      %v3023 = vunpack.c.l.b16 %v2986
      %v3024 = vunpack.c.l.b16 %v2987
      %v3025 = vunpack.c.l.b16 %v2988
      %v3026 = vunpack.c.l.b16 %v2989
      %v3027 = vunpack.c.l.b16 %v2990
      %v3028 = vunpack.c.l.b16 %v2991
      %v3029 = vunpack.c.l.b16 %v2992
      %v3030 = vunpack.c.l.b16 %v2993
      %v3031 = vunpack.c.l.b16 %v2994
      %v3032 = vunpack.c.l.b16 %v2995
      %v3033 = vunpack.c.l.b16 %v2996
      %v3034 = vunpack.c.l.b16 %v2997
      %v3035 = vunpack.c.l.b16 %v2998
      %v3036 = vunpack.c.l.b16 %v2999
      %v3037 = vunpack.c.l.b16 %v3000
      %v3038 = vunpack.c.l.b16 %v3001
      %v3039 = vpack.c.b16 %v3024, %v3023
      %v3040 = vpack.c.b16 %v3026, %v3025
      %v3041 = vpack.c.b16 %v3028, %v3027
      %v3042 = vpack.c.b16 %v3030, %v3029
      %v3043 = vpack.c.b16 %v3032, %v3031
      %v3044 = vpack.c.b16 %v3034, %v3033
      %v3045 = vpack.c.b16 %v3036, %v3035
      %v3046 = vpack.c.b16 %v3038, %v3037
      %3055 = vmatprep.subr.bf16.mxu0 0
      %3056 = vmatpush1.bf16.msra.mxu0 %v3046
      %3057 = vmatprep.subr.bf16.mxu0 0
      %3058 = vmatpush1.bf16.msra.mxu0 %v3045
      %3059 = vmatprep.subr.bf16.mxu0 0
      %3060 = vmatpush1.bf16.msra.mxu0 %v3044
      %3061 = vmatprep.subr.bf16.mxu0 0
      %3062 = vmatpush1.bf16.msra.mxu0 %v3043
      %3063 = vmatprep.subr.bf16.mxu0 0
      %3064 = vmatpush1.bf16.msra.mxu0 %v3042
      %3065 = vmatprep.subr.bf16.mxu0 0
      %3066 = vmatpush1.bf16.msra.mxu0 %v3041
      %3067 = vmatprep.subr.bf16.mxu0 0
      %3068 = vmatpush1.bf16.msra.mxu0 %v3040
      %3069 = vmatprep.subr.bf16.mxu0 0
      %3070 = vmatpush1.bf16.msra.mxu0 %v3039
      %3071 = vmatprep.subr.bf16.mxu0 0
      %3072 = vmatpush2.bf16.msra.mxu0 0
      %3073 = vmatprep.subr.bf16.mxu0 0
      %3074 = vmatpush2.bf16.msra.mxu0 0
      %3075 = vmatprep.subr.bf16.mxu0 0
      %3076 = vmatpush2.bf16.msra.mxu0 0
      %3077 = vmatprep.subr.bf16.mxu0 0
      %3078 = vmatpush2.bf16.msra.mxu0 0
      %3079 = vmatprep.subr.bf16.mxu0 0
      %3080 = vmatpush2.bf16.msra.mxu0 0
      %3081 = vmatprep.subr.bf16.mxu0 0
      %3082 = vmatpush2.bf16.msra.mxu0 0
      %3083 = vmatprep.subr.bf16.mxu0 0
      %3084 = vmatpush2.bf16.msra.mxu0 0
      %3085 = vmatprep.subr.bf16.mxu0 0
      %3086 = vmatpush2.bf16.msra.mxu0 0
      %3087 = vmatprep.mubr.bf16.mxu0 0
      %3088 = vmatmul.mubr.bf16.gmra.mxu0 %v2984
      %v3089 = vpop.f32.mrf.mxu0
      %v3090 = vadd.f32 %v3006, %v3089
      %v3091 = vpop.f32.mrf.mxu0
      %v3092 = vpop.f32.mrf.mxu0
      %v3093 = vadd.f32 %v3006, %v3092
      %v3094 = vpop.f32.mrf.mxu0
      %3095 = vmatprep.mubr.bf16.mxu0 0
      %3096 = vmatmul.mubr.bf16.gmra.mxu0 %v2985
      %v3097 = vpop.f32.mrf.mxu0
      %v3098 = vadd.f32 %v3006, %v3097
      %v3099 = vpop.f32.mrf.mxu0
      %v3100 = vpop.f32.mrf.mxu0
      %v3101 = vadd.f32 %v3006, %v3100
      %v3102 = vpop.f32.mrf.mxu0
      %3103 = vdwg.mxu0
      %v3104 = vadd.f32 %v2756, %v3090
      %v3105 = vadd.f32 %v2757, %v3093
      %v3106 = vadd.f32 %v2758, %v3098
      %v3107 = vadd.f32 %v2759, %v3101
      %vm3108 = vcmp.ge.f32.partialorder %v3104, 0.0
      %vm3109 = vcmp.ge.f32.partialorder %v3105, 0.0
      %vm3110 = vcmp.ge.f32.partialorder %v3106, 0.0
      %vm3111 = vcmp.ge.f32.partialorder %v3107, 0.0
      %v3112 = vmul.f32 %v3104, 0.1
      %v3113 = vmul.f32 %v3105, 0.1
      %v3114 = vmul.f32 %v3106, 0.1
      %v3115 = vmul.f32 %v3107, 0.1
      %v3116 = vsel %vm3108, %v3104, %v3112
      %v3117 = vsel %vm3109, %v3105, %v3113
      %v3118 = vsel %vm3110, %v3106, %v3114
      %v3119 = vsel %vm3111, %v3107, %v3115
      %3120 = vst [vmem:[#allocation2 + $0x8] sm:$0xff] %v3116
      %3121 = vst [vmem:[#allocation2 + $0x10] sm:$0xff] %v3117
      %3122 = vst [vmem:[#allocation2 + $0x18] sm:$0xff] %v3118
      %3123 = vst [vmem:[#allocation2 + $0x20] sm:$0xff] %v3119
      %v3124 = vld [vmem:[#allocation2 + $0x5] sm:$0xff]
      %v3125 = vld [vmem:[#allocation2 + $0xd] sm:$0xff]
      %v3126 = vld [vmem:[#allocation2 + $0x15] sm:$0xff]
      %v3127 = vld [vmem:[#allocation2 + $0x1d] sm:$0xff]
      %v3128 = vld [vmem:[#allocation2 + $0x8] sm:$0xff]
      %v3129 = vld [vmem:[#allocation2 + $0x10] sm:$0xff]
      %v3130 = vld [vmem:[#allocation2 + $0x18] sm:$0xff]
      %v3131 = vld [vmem:[#allocation2 + $0x20] sm:$0xff]
      %3132 = vrot.lane.b32.xlu0 %v3128, 8
      %v3133 = vpop.permute.xlu0 %3132
      %3134 = vrot.lane.b32.xlu0 %v3129, 8
      %v3135 = vpop.permute.xlu0 %3134
      %3136 = vrot.lane.b32.xlu0 %v3130, 8
      %v3137 = vpop.permute.xlu0 %3136
      %3138 = vrot.lane.b32.xlu0 %v3131, 8
      %v3139 = vpop.permute.xlu0 %3138
      %v3140 = vadd.f32 %v3124, %v3133
      %v3141 = vadd.f32 %v3125, %v3135
      %v3142 = vadd.f32 %v3126, %v3137
      %v3143 = vadd.f32 %v3127, %v3139
      %v3144 = vld [vmem:[#allocation2 + $0xb] sm:$0xff]
      %v3145 = vld [vmem:[#allocation2 + $0x13] sm:$0xff]
      %v3146 = vld [vmem:[#allocation2 + $0x1b] sm:$0xff]
      %v3147 = vld [vmem:[#allocation2 + $0x23] sm:$0xff]
      %3148 = vrot.lane.b32.xlu0 %v3144, 16
      %v3149 = vpop.permute.xlu0 %3148
      %3150 = vrot.lane.b32.xlu0 %v3145, 16
      %v3151 = vpop.permute.xlu0 %3150
      %3152 = vrot.lane.b32.xlu0 %v3146, 16
      %v3153 = vpop.permute.xlu0 %3152
      %3154 = vrot.lane.b32.xlu0 %v3147, 16
      %v3155 = vpop.permute.xlu0 %3154
      %v3156 = vadd.f32 %v3140, %v3149
      %v3157 = vadd.f32 %v3141, %v3151
      %v3158 = vadd.f32 %v3142, %v3153
      %v3159 = vadd.f32 %v3143, %v3155
      %v3160 = vpack.c.bf16 %v3157, %v3156
      %v3161 = vpack.c.bf16 %v3159, %v3158
      %v3162 = vld [vmem:[%s1 + $0x5c0] sm:$0xf]
      %v3163 = vld [vmem:[%s1 + $0x5c4] sm:$0xf]
      %v3164 = vld [vmem:[%s1 + $0x5c8] sm:$0xf]
      %v3165 = vld [vmem:[%s1 + $0x5cc] sm:$0xf]
      %v3166 = vld [vmem:[%s1 + $0x5d0] sm:$0xf]
      %v3167 = vld [vmem:[%s1 + $0x5d4] sm:$0xf]
      %v3168 = vld [vmem:[%s1 + $0x5d8] sm:$0xf]
      %v3169 = vld [vmem:[%s1 + $0x5dc] sm:$0xf]
      %v3170 = vld [vmem:[%s1 + $0x5e0] sm:$0xf]
      %v3171 = vld [vmem:[%s1 + $0x5e4] sm:$0xf]
      %v3172 = vld [vmem:[%s1 + $0x5e8] sm:$0xf]
      %v3173 = vld [vmem:[%s1 + $0x5ec] sm:$0xf]
      %v3174 = vld [vmem:[%s1 + $0x5f0] sm:$0xf]
      %v3175 = vld [vmem:[%s1 + $0x5f4] sm:$0xf]
      %v3176 = vld [vmem:[%s1 + $0x5f8] sm:$0xf]
      %v3177 = vld [vmem:[%s1 + $0x5fc] sm:$0xf]
      %v3178 = vld [vmem:[%s2 + $0xe] sm:$0x1]
      %v3179 = vlaneseq
      %v3180 = vshrl.u32 %v3179, 7
      %v3181 = vsub.s32 0, %v3180
      %v3182 = vrot.slane %v3178, %v3181
      %v3199 = vunpack.c.l.b16 %v3162
      %v3200 = vunpack.c.l.b16 %v3163
      %v3201 = vunpack.c.l.b16 %v3164
      %v3202 = vunpack.c.l.b16 %v3165
      %v3203 = vunpack.c.l.b16 %v3166
      %v3204 = vunpack.c.l.b16 %v3167
      %v3205 = vunpack.c.l.b16 %v3168
      %v3206 = vunpack.c.l.b16 %v3169
      %v3207 = vunpack.c.l.b16 %v3170
      %v3208 = vunpack.c.l.b16 %v3171
      %v3209 = vunpack.c.l.b16 %v3172
      %v3210 = vunpack.c.l.b16 %v3173
      %v3211 = vunpack.c.l.b16 %v3174
      %v3212 = vunpack.c.l.b16 %v3175
      %v3213 = vunpack.c.l.b16 %v3176
      %v3214 = vunpack.c.l.b16 %v3177
      %v3215 = vpack.c.b16 %v3200, %v3199
      %v3216 = vpack.c.b16 %v3202, %v3201
      %v3217 = vpack.c.b16 %v3204, %v3203
      %v3218 = vpack.c.b16 %v3206, %v3205
      %v3219 = vpack.c.b16 %v3208, %v3207
      %v3220 = vpack.c.b16 %v3210, %v3209
      %v3221 = vpack.c.b16 %v3212, %v3211
      %v3222 = vpack.c.b16 %v3214, %v3213
      %3231 = vmatprep.subr.bf16.mxu0 0
      %3232 = vmatpush1.bf16.msra.mxu0 %v3222
      %3233 = vmatprep.subr.bf16.mxu0 0
      %3234 = vmatpush1.bf16.msra.mxu0 %v3221
      %3235 = vmatprep.subr.bf16.mxu0 0
      %3236 = vmatpush1.bf16.msra.mxu0 %v3220
      %3237 = vmatprep.subr.bf16.mxu0 0
      %3238 = vmatpush1.bf16.msra.mxu0 %v3219
      %3239 = vmatprep.subr.bf16.mxu0 0
      %3240 = vmatpush1.bf16.msra.mxu0 %v3218
      %3241 = vmatprep.subr.bf16.mxu0 0
      %3242 = vmatpush1.bf16.msra.mxu0 %v3217
      %3243 = vmatprep.subr.bf16.mxu0 0
      %3244 = vmatpush1.bf16.msra.mxu0 %v3216
      %3245 = vmatprep.subr.bf16.mxu0 0
      %3246 = vmatpush1.bf16.msra.mxu0 %v3215
      %3247 = vmatprep.subr.bf16.mxu0 0
      %3248 = vmatpush2.bf16.msra.mxu0 0
      %3249 = vmatprep.subr.bf16.mxu0 0
      %3250 = vmatpush2.bf16.msra.mxu0 0
      %3251 = vmatprep.subr.bf16.mxu0 0
      %3252 = vmatpush2.bf16.msra.mxu0 0
      %3253 = vmatprep.subr.bf16.mxu0 0
      %3254 = vmatpush2.bf16.msra.mxu0 0
      %3255 = vmatprep.subr.bf16.mxu0 0
      %3256 = vmatpush2.bf16.msra.mxu0 0
      %3257 = vmatprep.subr.bf16.mxu0 0
      %3258 = vmatpush2.bf16.msra.mxu0 0
      %3259 = vmatprep.subr.bf16.mxu0 0
      %3260 = vmatpush2.bf16.msra.mxu0 0
      %3261 = vmatprep.subr.bf16.mxu0 0
      %3262 = vmatpush2.bf16.msra.mxu0 0
      %3263 = vmatprep.mubr.bf16.mxu0 0
      %3264 = vmatmul.mubr.bf16.gmra.mxu0 %v3160
      %v3265 = vpop.f32.mrf.mxu0
      %v3266 = vadd.f32 %v3182, %v3265
      %v3267 = vpop.f32.mrf.mxu0
      %v3268 = vpop.f32.mrf.mxu0
      %v3269 = vadd.f32 %v3182, %v3268
      %v3270 = vpop.f32.mrf.mxu0
      %3271 = vmatprep.mubr.bf16.mxu0 0
      %3272 = vmatmul.mubr.bf16.gmra.mxu0 %v3161
      %v3273 = vpop.f32.mrf.mxu0
      %v3274 = vadd.f32 %v3182, %v3273
      %v3275 = vpop.f32.mrf.mxu0
      %v3276 = vpop.f32.mrf.mxu0
      %v3277 = vadd.f32 %v3182, %v3276
      %v3278 = vpop.f32.mrf.mxu0
      %3279 = vdwg.mxu0
      %vm3280 = vcmp.ge.f32.partialorder %v3266, 0.0
      %vm3281 = vcmp.ge.f32.partialorder %v3269, 0.0
      %vm3282 = vcmp.ge.f32.partialorder %v3274, 0.0
      %vm3283 = vcmp.ge.f32.partialorder %v3277, 0.0
      %v3284 = vmul.f32 %v3266, 0.1
      %v3285 = vmul.f32 %v3269, 0.1
      %v3286 = vmul.f32 %v3274, 0.1
      %v3287 = vmul.f32 %v3277, 0.1
      %v3288 = vsel %vm3280, %v3266, %v3284
      %v3289 = vsel %vm3281, %v3269, %v3285
      %v3290 = vsel %vm3282, %v3274, %v3286
      %v3291 = vsel %vm3283, %v3277, %v3287
      %3292 = vst [vmem:[#allocation2 + $0x8] sm:$0xff] %v3288
      %3293 = vst [vmem:[#allocation2 + $0x10] sm:$0xff] %v3289
      %3294 = vst [vmem:[#allocation2 + $0x18] sm:$0xff] %v3290
      %3295 = vst [vmem:[#allocation2 + $0x20] sm:$0xff] %v3291
      %v3296 = vld [vmem:[#allocation2 + $0x7] sm:$0xff]
      %v3297 = vld [vmem:[#allocation2 + $0xf] sm:$0xff]
      %v3298 = vld [vmem:[#allocation2 + $0x17] sm:$0xff]
      %v3299 = vld [vmem:[#allocation2 + $0x1f] sm:$0xff]
      %v3300 = vld [vmem:[#allocation2 + $0x8] sm:$0xff]
      %v3301 = vld [vmem:[#allocation2 + $0x10] sm:$0xff]
      %v3302 = vld [vmem:[#allocation2 + $0x18] sm:$0xff]
      %v3303 = vld [vmem:[#allocation2 + $0x20] sm:$0xff]
      %3304 = vrot.lane.b32.xlu0 %v3300, 8
      %v3305 = vpop.permute.xlu0 %3304
      %3306 = vrot.lane.b32.xlu0 %v3301, 8
      %v3307 = vpop.permute.xlu0 %3306
      %3308 = vrot.lane.b32.xlu0 %v3302, 8
      %v3309 = vpop.permute.xlu0 %3308
      %3310 = vrot.lane.b32.xlu0 %v3303, 8
      %v3311 = vpop.permute.xlu0 %3310
      %v3312 = vadd.f32 %v3296, %v3305
      %v3313 = vadd.f32 %v3297, %v3307
      %v3314 = vadd.f32 %v3298, %v3309
      %v3315 = vadd.f32 %v3299, %v3311
      %v3316 = vld [vmem:[#allocation2 + $0x9] sm:$0xff]
      %v3317 = vld [vmem:[#allocation2 + $0x11] sm:$0xff]
      %v3318 = vld [vmem:[#allocation2 + $0x19] sm:$0xff]
      %v3319 = vld [vmem:[#allocation2 + $0x21] sm:$0xff]
      %3320 = vrot.lane.b32.xlu0 %v3316, 16
      %v3321 = vpop.permute.xlu0 %3320
      %3322 = vrot.lane.b32.xlu0 %v3317, 16
      %v3323 = vpop.permute.xlu0 %3322
      %3324 = vrot.lane.b32.xlu0 %v3318, 16
      %v3325 = vpop.permute.xlu0 %3324
      %3326 = vrot.lane.b32.xlu0 %v3319, 16
      %v3327 = vpop.permute.xlu0 %3326
      %v3328 = vadd.f32 %v3312, %v3321
      %v3329 = vadd.f32 %v3313, %v3323
      %v3330 = vadd.f32 %v3314, %v3325
      %v3331 = vadd.f32 %v3315, %v3327
      %v3332 = vpack.c.bf16 %v3329, %v3328
      %v3333 = vpack.c.bf16 %v3331, %v3330
      %v3334 = vld [vmem:[%s1 + $0x600] sm:$0xf]
      %v3335 = vld [vmem:[%s1 + $0x604] sm:$0xf]
      %v3336 = vld [vmem:[%s1 + $0x608] sm:$0xf]
      %v3337 = vld [vmem:[%s1 + $0x60c] sm:$0xf]
      %v3338 = vld [vmem:[%s1 + $0x610] sm:$0xf]
      %v3339 = vld [vmem:[%s1 + $0x614] sm:$0xf]
      %v3340 = vld [vmem:[%s1 + $0x618] sm:$0xf]
      %v3341 = vld [vmem:[%s1 + $0x61c] sm:$0xf]
      %v3342 = vld [vmem:[%s1 + $0x620] sm:$0xf]
      %v3343 = vld [vmem:[%s1 + $0x624] sm:$0xf]
      %v3344 = vld [vmem:[%s1 + $0x628] sm:$0xf]
      %v3345 = vld [vmem:[%s1 + $0x62c] sm:$0xf]
      %v3346 = vld [vmem:[%s1 + $0x630] sm:$0xf]
      %v3347 = vld [vmem:[%s1 + $0x634] sm:$0xf]
      %v3348 = vld [vmem:[%s1 + $0x638] sm:$0xf]
      %v3349 = vld [vmem:[%s1 + $0x63c] sm:$0xf]
      %v3350 = vld [vmem:[%s2 + $0xf] sm:$0x1]
      %v3351 = vlaneseq
      %v3352 = vshrl.u32 %v3351, 7
      %v3353 = vsub.s32 0, %v3352
      %v3354 = vrot.slane %v3350, %v3353
      %v3371 = vunpack.c.l.b16 %v3334
      %v3372 = vunpack.c.l.b16 %v3335
      %v3373 = vunpack.c.l.b16 %v3336
      %v3374 = vunpack.c.l.b16 %v3337
      %v3375 = vunpack.c.l.b16 %v3338
      %v3376 = vunpack.c.l.b16 %v3339
      %v3377 = vunpack.c.l.b16 %v3340
      %v3378 = vunpack.c.l.b16 %v3341
      %v3379 = vunpack.c.l.b16 %v3342
      %v3380 = vunpack.c.l.b16 %v3343
      %v3381 = vunpack.c.l.b16 %v3344
      %v3382 = vunpack.c.l.b16 %v3345
      %v3383 = vunpack.c.l.b16 %v3346
      %v3384 = vunpack.c.l.b16 %v3347
      %v3385 = vunpack.c.l.b16 %v3348
      %v3386 = vunpack.c.l.b16 %v3349
      %v3387 = vpack.c.b16 %v3372, %v3371
      %v3388 = vpack.c.b16 %v3374, %v3373
      %v3389 = vpack.c.b16 %v3376, %v3375
      %v3390 = vpack.c.b16 %v3378, %v3377
      %v3391 = vpack.c.b16 %v3380, %v3379
      %v3392 = vpack.c.b16 %v3382, %v3381
      %v3393 = vpack.c.b16 %v3384, %v3383
      %v3394 = vpack.c.b16 %v3386, %v3385
      %3403 = vmatprep.subr.bf16.mxu0 0
      %3404 = vmatpush1.bf16.msra.mxu0 %v3394
      %3405 = vmatprep.subr.bf16.mxu0 0
      %3406 = vmatpush1.bf16.msra.mxu0 %v3393
      %3407 = vmatprep.subr.bf16.mxu0 0
      %3408 = vmatpush1.bf16.msra.mxu0 %v3392
      %3409 = vmatprep.subr.bf16.mxu0 0
      %3410 = vmatpush1.bf16.msra.mxu0 %v3391
      %3411 = vmatprep.subr.bf16.mxu0 0
      %3412 = vmatpush1.bf16.msra.mxu0 %v3390
      %3413 = vmatprep.subr.bf16.mxu0 0
      %3414 = vmatpush1.bf16.msra.mxu0 %v3389
      %3415 = vmatprep.subr.bf16.mxu0 0
      %3416 = vmatpush1.bf16.msra.mxu0 %v3388
      %3417 = vmatprep.subr.bf16.mxu0 0
      %3418 = vmatpush1.bf16.msra.mxu0 %v3387
      %3419 = vmatprep.subr.bf16.mxu0 0
      %3420 = vmatpush2.bf16.msra.mxu0 0
      %3421 = vmatprep.subr.bf16.mxu0 0
      %3422 = vmatpush2.bf16.msra.mxu0 0
      %3423 = vmatprep.subr.bf16.mxu0 0
      %3424 = vmatpush2.bf16.msra.mxu0 0
      %3425 = vmatprep.subr.bf16.mxu0 0
      %3426 = vmatpush2.bf16.msra.mxu0 0
      %3427 = vmatprep.subr.bf16.mxu0 0
      %3428 = vmatpush2.bf16.msra.mxu0 0
      %3429 = vmatprep.subr.bf16.mxu0 0
      %3430 = vmatpush2.bf16.msra.mxu0 0
      %3431 = vmatprep.subr.bf16.mxu0 0
      %3432 = vmatpush2.bf16.msra.mxu0 0
      %3433 = vmatprep.subr.bf16.mxu0 0
      %3434 = vmatpush2.bf16.msra.mxu0 0
      %3435 = vmatprep.mubr.bf16.mxu0 0
      %3436 = vmatmul.mubr.bf16.gmra.mxu0 %v3332
      %v3437 = vpop.f32.mrf.mxu0
      %v3438 = vadd.f32 %v3354, %v3437
      %v3439 = vpop.f32.mrf.mxu0
      %v3440 = vpop.f32.mrf.mxu0
      %v3441 = vadd.f32 %v3354, %v3440
      %v3442 = vpop.f32.mrf.mxu0
      %3443 = vmatprep.mubr.bf16.mxu0 0
      %3444 = vmatmul.mubr.bf16.gmra.mxu0 %v3333
      %v3445 = vpop.f32.mrf.mxu0
      %v3446 = vadd.f32 %v3354, %v3445
      %v3447 = vpop.f32.mrf.mxu0
      %v3448 = vpop.f32.mrf.mxu0
      %v3449 = vadd.f32 %v3354, %v3448
      %v3450 = vpop.f32.mrf.mxu0
      %3451 = vdwg.mxu0
      %v3452 = vadd.f32 %v3104, %v3438
      %v3453 = vadd.f32 %v3105, %v3441
      %v3454 = vadd.f32 %v3106, %v3446
      %v3455 = vadd.f32 %v3107, %v3449
      %3456 = vst [vmem:[#allocation2 + $0x8] sm:$0xff] %v2768
      %3457 = vst [vmem:[#allocation2 + $0x10] sm:$0xff] %v2769
      %3458 = vst [vmem:[#allocation2 + $0x18] sm:$0xff] %v2770
      %3459 = vst [vmem:[#allocation2 + $0x20] sm:$0xff] %v2771
      %v3460 = vld [vmem:[#allocation2 + $0x6] sm:$0xff]
      %v3461 = vld [vmem:[#allocation2 + $0xe] sm:$0xff]
      %v3462 = vld [vmem:[#allocation2 + $0x16] sm:$0xff]
      %v3463 = vld [vmem:[#allocation2 + $0x1e] sm:$0xff]
      %v3464 = vld [vmem:[#allocation2 + $0x7] sm:$0xff]
      %v3465 = vld [vmem:[#allocation2 + $0xf] sm:$0xff]
      %v3466 = vld [vmem:[#allocation2 + $0x17] sm:$0xff]
      %v3467 = vld [vmem:[#allocation2 + $0x1f] sm:$0xff]
      %3468 = vrot.lane.b32.xlu0 %v3464, 8
      %v3469 = vpop.permute.xlu0 %3468
      %3470 = vrot.lane.b32.xlu0 %v3465, 8
      %v3471 = vpop.permute.xlu0 %3470
      %3472 = vrot.lane.b32.xlu0 %v3466, 8
      %v3473 = vpop.permute.xlu0 %3472
      %3474 = vrot.lane.b32.xlu0 %v3467, 8
      %v3475 = vpop.permute.xlu0 %3474
      %v3476 = vadd.f32 %v3460, %v3469
      %v3477 = vadd.f32 %v3461, %v3471
      %v3478 = vadd.f32 %v3462, %v3473
      %v3479 = vadd.f32 %v3463, %v3475
      %v3480 = vld [vmem:[#allocation2 + $0x8] sm:$0xff]
      %v3481 = vld [vmem:[#allocation2 + $0x10] sm:$0xff]
      %v3482 = vld [vmem:[#allocation2 + $0x18] sm:$0xff]
      %v3483 = vld [vmem:[#allocation2 + $0x20] sm:$0xff]
      %3484 = vrot.lane.b32.xlu0 %v3480, 16
      %v3485 = vpop.permute.xlu0 %3484
      %3486 = vrot.lane.b32.xlu0 %v3481, 16
      %v3487 = vpop.permute.xlu0 %3486
      %3488 = vrot.lane.b32.xlu0 %v3482, 16
      %v3489 = vpop.permute.xlu0 %3488
      %3490 = vrot.lane.b32.xlu0 %v3483, 16
      %v3491 = vpop.permute.xlu0 %3490
      %v3492 = vadd.f32 %v3476, %v3485
      %v3493 = vadd.f32 %v3477, %v3487
      %v3494 = vadd.f32 %v3478, %v3489
      %v3495 = vadd.f32 %v3479, %v3491
      %v3496 = vld [vmem:[#allocation2 + $0x9] sm:$0xff]
      %v3497 = vld [vmem:[#allocation2 + $0x11] sm:$0xff]
      %v3498 = vld [vmem:[#allocation2 + $0x19] sm:$0xff]
      %v3499 = vld [vmem:[#allocation2 + $0x21] sm:$0xff]
      %3500 = vrot.lane.b32.xlu0 %v3496, 24
      %v3501 = vpop.permute.xlu0 %3500
      %3502 = vrot.lane.b32.xlu0 %v3497, 24
      %v3503 = vpop.permute.xlu0 %3502
      %3504 = vrot.lane.b32.xlu0 %v3498, 24
      %v3505 = vpop.permute.xlu0 %3504
      %3506 = vrot.lane.b32.xlu0 %v3499, 24
      %v3507 = vpop.permute.xlu0 %3506
      %v3508 = vadd.f32 %v3492, %v3501
      %v3509 = vadd.f32 %v3493, %v3503
      %v3510 = vadd.f32 %v3494, %v3505
      %v3511 = vadd.f32 %v3495, %v3507
      %v3512 = vld [vmem:[#allocation2 + $0xa] sm:$0xff]
      %v3513 = vld [vmem:[#allocation2 + $0x12] sm:$0xff]
      %v3514 = vld [vmem:[#allocation2 + $0x1a] sm:$0xff]
      %v3515 = vld [vmem:[#allocation2 + $0x22] sm:$0xff]
      %3516 = vrot.lane.b32.xlu0 %v3512, 32
      %v3517 = vpop.permute.xlu0 %3516
      %3518 = vrot.lane.b32.xlu0 %v3513, 32
      %v3519 = vpop.permute.xlu0 %3518
      %3520 = vrot.lane.b32.xlu0 %v3514, 32
      %v3521 = vpop.permute.xlu0 %3520
      %3522 = vrot.lane.b32.xlu0 %v3515, 32
      %v3523 = vpop.permute.xlu0 %3522
      %v3524 = vadd.f32 %v3508, %v3517
      %v3525 = vadd.f32 %v3509, %v3519
      %v3526 = vadd.f32 %v3510, %v3521
      %v3527 = vadd.f32 %v3511, %v3523
      %v3528 = vpack.c.bf16 %v3525, %v3524
      %v3529 = vpack.c.bf16 %v3527, %v3526
      %v3530 = vld [vmem:[%s1 + $0x640] sm:$0xf]
      %v3531 = vld [vmem:[%s1 + $0x644] sm:$0xf]
      %v3532 = vld [vmem:[%s1 + $0x648] sm:$0xf]
      %v3533 = vld [vmem:[%s1 + $0x64c] sm:$0xf]
      %v3534 = vld [vmem:[%s1 + $0x650] sm:$0xf]
      %v3535 = vld [vmem:[%s1 + $0x654] sm:$0xf]
      %v3536 = vld [vmem:[%s1 + $0x658] sm:$0xf]
      %v3537 = vld [vmem:[%s1 + $0x65c] sm:$0xf]
      %v3538 = vld [vmem:[%s1 + $0x660] sm:$0xf]
      %v3539 = vld [vmem:[%s1 + $0x664] sm:$0xf]
      %v3540 = vld [vmem:[%s1 + $0x668] sm:$0xf]
      %v3541 = vld [vmem:[%s1 + $0x66c] sm:$0xf]
      %v3542 = vld [vmem:[%s1 + $0x670] sm:$0xf]
      %v3543 = vld [vmem:[%s1 + $0x674] sm:$0xf]
      %v3544 = vld [vmem:[%s1 + $0x678] sm:$0xf]
      %v3545 = vld [vmem:[%s1 + $0x67c] sm:$0xf]
      %v3546 = vld [vmem:[%s2 + $0x10] sm:$0x1]
      %v3547 = vlaneseq
      %v3548 = vshrl.u32 %v3547, 7
      %v3549 = vsub.s32 0, %v3548
      %v3550 = vrot.slane %v3546, %v3549
      %v3567 = vunpack.c.l.b16 %v3530
      %v3568 = vunpack.c.l.b16 %v3531
      %v3569 = vunpack.c.l.b16 %v3532
      %v3570 = vunpack.c.l.b16 %v3533
      %v3571 = vunpack.c.l.b16 %v3534
      %v3572 = vunpack.c.l.b16 %v3535
      %v3573 = vunpack.c.l.b16 %v3536
      %v3574 = vunpack.c.l.b16 %v3537
      %v3575 = vunpack.c.l.b16 %v3538
      %v3576 = vunpack.c.l.b16 %v3539
      %v3577 = vunpack.c.l.b16 %v3540
      %v3578 = vunpack.c.l.b16 %v3541
      %v3579 = vunpack.c.l.b16 %v3542
      %v3580 = vunpack.c.l.b16 %v3543
      %v3581 = vunpack.c.l.b16 %v3544
      %v3582 = vunpack.c.l.b16 %v3545
      %v3583 = vpack.c.b16 %v3568, %v3567
      %v3584 = vpack.c.b16 %v3570, %v3569
      %v3585 = vpack.c.b16 %v3572, %v3571
      %v3586 = vpack.c.b16 %v3574, %v3573
      %v3587 = vpack.c.b16 %v3576, %v3575
      %v3588 = vpack.c.b16 %v3578, %v3577
      %v3589 = vpack.c.b16 %v3580, %v3579
      %v3590 = vpack.c.b16 %v3582, %v3581
      %3599 = vmatprep.subr.bf16.mxu0 0
      %3600 = vmatpush1.bf16.msra.mxu0 %v3590
      %3601 = vmatprep.subr.bf16.mxu0 0
      %3602 = vmatpush1.bf16.msra.mxu0 %v3589
      %3603 = vmatprep.subr.bf16.mxu0 0
      %3604 = vmatpush1.bf16.msra.mxu0 %v3588
      %3605 = vmatprep.subr.bf16.mxu0 0
      %3606 = vmatpush1.bf16.msra.mxu0 %v3587
      %3607 = vmatprep.subr.bf16.mxu0 0
      %3608 = vmatpush1.bf16.msra.mxu0 %v3586
      %3609 = vmatprep.subr.bf16.mxu0 0
      %3610 = vmatpush1.bf16.msra.mxu0 %v3585
      %3611 = vmatprep.subr.bf16.mxu0 0
      %3612 = vmatpush1.bf16.msra.mxu0 %v3584
      %3613 = vmatprep.subr.bf16.mxu0 0
      %3614 = vmatpush1.bf16.msra.mxu0 %v3583
      %3615 = vmatprep.subr.bf16.mxu0 0
      %3616 = vmatpush2.bf16.msra.mxu0 0
      %3617 = vmatprep.subr.bf16.mxu0 0
      %3618 = vmatpush2.bf16.msra.mxu0 0
      %3619 = vmatprep.subr.bf16.mxu0 0
      %3620 = vmatpush2.bf16.msra.mxu0 0
      %3621 = vmatprep.subr.bf16.mxu0 0
      %3622 = vmatpush2.bf16.msra.mxu0 0
      %3623 = vmatprep.subr.bf16.mxu0 0
      %3624 = vmatpush2.bf16.msra.mxu0 0
      %3625 = vmatprep.subr.bf16.mxu0 0
      %3626 = vmatpush2.bf16.msra.mxu0 0
      %3627 = vmatprep.subr.bf16.mxu0 0
      %3628 = vmatpush2.bf16.msra.mxu0 0
      %3629 = vmatprep.subr.bf16.mxu0 0
      %3630 = vmatpush2.bf16.msra.mxu0 0
      %3631 = vmatprep.mubr.bf16.mxu0 0
      %3632 = vmatmul.mubr.bf16.gmra.mxu0 %v3528
      %v3633 = vpop.f32.mrf.mxu0
      %v3634 = vadd.f32 %v3550, %v3633
      %v3635 = vpop.f32.mrf.mxu0
      %v3636 = vpop.f32.mrf.mxu0
      %v3637 = vadd.f32 %v3550, %v3636
      %v3638 = vpop.f32.mrf.mxu0
      %3639 = vmatprep.mubr.bf16.mxu0 0
      %3640 = vmatmul.mubr.bf16.gmra.mxu0 %v3529
      %v3641 = vpop.f32.mrf.mxu0
      %v3642 = vadd.f32 %v3550, %v3641
      %v3643 = vpop.f32.mrf.mxu0
      %v3644 = vpop.f32.mrf.mxu0
      %v3645 = vadd.f32 %v3550, %v3644
      %v3646 = vpop.f32.mrf.mxu0
      %3647 = vdwg.mxu0
      %vm3648 = vcmp.ge.f32.partialorder %v3634, 0.0
      %vm3649 = vcmp.ge.f32.partialorder %v3637, 0.0
      %vm3650 = vcmp.ge.f32.partialorder %v3642, 0.0
      %vm3651 = vcmp.ge.f32.partialorder %v3645, 0.0
      %v3652 = vmul.f32 %v3634, 0.1
      %v3653 = vmul.f32 %v3637, 0.1
      %v3654 = vmul.f32 %v3642, 0.1
      %v3655 = vmul.f32 %v3645, 0.1
      %v3656 = vsel %vm3648, %v3634, %v3652
      %v3657 = vsel %vm3649, %v3637, %v3653
      %v3658 = vsel %vm3650, %v3642, %v3654
      %v3659 = vsel %vm3651, %v3645, %v3655
      %3660 = vst [vmem:[#allocation2 + $0x8] sm:$0xff] %v3656
      %3661 = vst [vmem:[#allocation2 + $0x10] sm:$0xff] %v3657
      %3662 = vst [vmem:[#allocation2 + $0x18] sm:$0xff] %v3658
      %3663 = vst [vmem:[#allocation2 + $0x20] sm:$0xff] %v3659
      %v3664 = vld [vmem:[#allocation2 + $0x6] sm:$0xff]
      %v3665 = vld [vmem:[#allocation2 + $0xe] sm:$0xff]
      %v3666 = vld [vmem:[#allocation2 + $0x16] sm:$0xff]
      %v3667 = vld [vmem:[#allocation2 + $0x1e] sm:$0xff]
      %v3668 = vld [vmem:[#allocation2 + $0x7] sm:$0xff]
      %v3669 = vld [vmem:[#allocation2 + $0xf] sm:$0xff]
      %v3670 = vld [vmem:[#allocation2 + $0x17] sm:$0xff]
      %v3671 = vld [vmem:[#allocation2 + $0x1f] sm:$0xff]
      %3672 = vrot.lane.b32.xlu0 %v3668, 8
      %v3673 = vpop.permute.xlu0 %3672
      %3674 = vrot.lane.b32.xlu0 %v3669, 8
      %v3675 = vpop.permute.xlu0 %3674
      %3676 = vrot.lane.b32.xlu0 %v3670, 8
      %v3677 = vpop.permute.xlu0 %3676
      %3678 = vrot.lane.b32.xlu0 %v3671, 8
      %v3679 = vpop.permute.xlu0 %3678
      %v3680 = vadd.f32 %v3664, %v3673
      %v3681 = vadd.f32 %v3665, %v3675
      %v3682 = vadd.f32 %v3666, %v3677
      %v3683 = vadd.f32 %v3667, %v3679
      %v3684 = vld [vmem:[#allocation2 + $0x8] sm:$0xff]
      %v3685 = vld [vmem:[#allocation2 + $0x10] sm:$0xff]
      %v3686 = vld [vmem:[#allocation2 + $0x18] sm:$0xff]
      %v3687 = vld [vmem:[#allocation2 + $0x20] sm:$0xff]
      %3688 = vrot.lane.b32.xlu0 %v3684, 16
      %v3689 = vpop.permute.xlu0 %3688
      %3690 = vrot.lane.b32.xlu0 %v3685, 16
      %v3691 = vpop.permute.xlu0 %3690
      %3692 = vrot.lane.b32.xlu0 %v3686, 16
      %v3693 = vpop.permute.xlu0 %3692
      %3694 = vrot.lane.b32.xlu0 %v3687, 16
      %v3695 = vpop.permute.xlu0 %3694
      %v3696 = vadd.f32 %v3680, %v3689
      %v3697 = vadd.f32 %v3681, %v3691
      %v3698 = vadd.f32 %v3682, %v3693
      %v3699 = vadd.f32 %v3683, %v3695
      %v3700 = vld [vmem:[#allocation2 + $0x9] sm:$0xff]
      %v3701 = vld [vmem:[#allocation2 + $0x11] sm:$0xff]
      %v3702 = vld [vmem:[#allocation2 + $0x19] sm:$0xff]
      %v3703 = vld [vmem:[#allocation2 + $0x21] sm:$0xff]
      %3704 = vrot.lane.b32.xlu0 %v3700, 24
      %v3705 = vpop.permute.xlu0 %3704
      %3706 = vrot.lane.b32.xlu0 %v3701, 24
      %v3707 = vpop.permute.xlu0 %3706
      %3708 = vrot.lane.b32.xlu0 %v3702, 24
      %v3709 = vpop.permute.xlu0 %3708
      %3710 = vrot.lane.b32.xlu0 %v3703, 24
      %v3711 = vpop.permute.xlu0 %3710
      %v3712 = vadd.f32 %v3696, %v3705
      %v3713 = vadd.f32 %v3697, %v3707
      %v3714 = vadd.f32 %v3698, %v3709
      %v3715 = vadd.f32 %v3699, %v3711
      %v3716 = vld [vmem:[#allocation2 + $0xa] sm:$0xff]
      %v3717 = vld [vmem:[#allocation2 + $0x12] sm:$0xff]
      %v3718 = vld [vmem:[#allocation2 + $0x1a] sm:$0xff]
      %v3719 = vld [vmem:[#allocation2 + $0x22] sm:$0xff]
      %3720 = vrot.lane.b32.xlu0 %v3716, 32
      %v3721 = vpop.permute.xlu0 %3720
      %3722 = vrot.lane.b32.xlu0 %v3717, 32
      %v3723 = vpop.permute.xlu0 %3722
      %3724 = vrot.lane.b32.xlu0 %v3718, 32
      %v3725 = vpop.permute.xlu0 %3724
      %3726 = vrot.lane.b32.xlu0 %v3719, 32
      %v3727 = vpop.permute.xlu0 %3726
      %v3728 = vadd.f32 %v3712, %v3721
      %v3729 = vadd.f32 %v3713, %v3723
      %v3730 = vadd.f32 %v3714, %v3725
      %v3731 = vadd.f32 %v3715, %v3727
      %v3732 = vpack.c.bf16 %v3729, %v3728
      %v3733 = vpack.c.bf16 %v3731, %v3730
      %v3734 = vld [vmem:[%s1 + $0x680] sm:$0xf]
      %v3735 = vld [vmem:[%s1 + $0x684] sm:$0xf]
      %v3736 = vld [vmem:[%s1 + $0x688] sm:$0xf]
      %v3737 = vld [vmem:[%s1 + $0x68c] sm:$0xf]
      %v3738 = vld [vmem:[%s1 + $0x690] sm:$0xf]
      %v3739 = vld [vmem:[%s1 + $0x694] sm:$0xf]
      %v3740 = vld [vmem:[%s1 + $0x698] sm:$0xf]
      %v3741 = vld [vmem:[%s1 + $0x69c] sm:$0xf]
      %v3742 = vld [vmem:[%s1 + $0x6a0] sm:$0xf]
      %v3743 = vld [vmem:[%s1 + $0x6a4] sm:$0xf]
      %v3744 = vld [vmem:[%s1 + $0x6a8] sm:$0xf]
      %v3745 = vld [vmem:[%s1 + $0x6ac] sm:$0xf]
      %v3746 = vld [vmem:[%s1 + $0x6b0] sm:$0xf]
      %v3747 = vld [vmem:[%s1 + $0x6b4] sm:$0xf]
      %v3748 = vld [vmem:[%s1 + $0x6b8] sm:$0xf]
      %v3749 = vld [vmem:[%s1 + $0x6bc] sm:$0xf]
      %v3750 = vld [vmem:[%s2 + $0x11] sm:$0x1]
      %v3751 = vlaneseq
      %v3752 = vshrl.u32 %v3751, 7
      %v3753 = vsub.s32 0, %v3752
      %v3754 = vrot.slane %v3750, %v3753
      %v3771 = vunpack.c.l.b16 %v3734
      %v3772 = vunpack.c.l.b16 %v3735
      %v3773 = vunpack.c.l.b16 %v3736
      %v3774 = vunpack.c.l.b16 %v3737
      %v3775 = vunpack.c.l.b16 %v3738
      %v3776 = vunpack.c.l.b16 %v3739
      %v3777 = vunpack.c.l.b16 %v3740
      %v3778 = vunpack.c.l.b16 %v3741
      %v3779 = vunpack.c.l.b16 %v3742
      %v3780 = vunpack.c.l.b16 %v3743
      %v3781 = vunpack.c.l.b16 %v3744
      %v3782 = vunpack.c.l.b16 %v3745
      %v3783 = vunpack.c.l.b16 %v3746
      %v3784 = vunpack.c.l.b16 %v3747
      %v3785 = vunpack.c.l.b16 %v3748
      %v3786 = vunpack.c.l.b16 %v3749
      %v3787 = vpack.c.b16 %v3772, %v3771
      %v3788 = vpack.c.b16 %v3774, %v3773
      %v3789 = vpack.c.b16 %v3776, %v3775
      %v3790 = vpack.c.b16 %v3778, %v3777
      %v3791 = vpack.c.b16 %v3780, %v3779
      %v3792 = vpack.c.b16 %v3782, %v3781
      %v3793 = vpack.c.b16 %v3784, %v3783
      %v3794 = vpack.c.b16 %v3786, %v3785
      %3803 = vmatprep.subr.bf16.mxu0 0
      %3804 = vmatpush1.bf16.msra.mxu0 %v3794
      %3805 = vmatprep.subr.bf16.mxu0 0
      %3806 = vmatpush1.bf16.msra.mxu0 %v3793
      %3807 = vmatprep.subr.bf16.mxu0 0
      %3808 = vmatpush1.bf16.msra.mxu0 %v3792
      %3809 = vmatprep.subr.bf16.mxu0 0
      %3810 = vmatpush1.bf16.msra.mxu0 %v3791
      %3811 = vmatprep.subr.bf16.mxu0 0
      %3812 = vmatpush1.bf16.msra.mxu0 %v3790
      %3813 = vmatprep.subr.bf16.mxu0 0
      %3814 = vmatpush1.bf16.msra.mxu0 %v3789
      %3815 = vmatprep.subr.bf16.mxu0 0
      %3816 = vmatpush1.bf16.msra.mxu0 %v3788
      %3817 = vmatprep.subr.bf16.mxu0 0
      %3818 = vmatpush1.bf16.msra.mxu0 %v3787
      %3819 = vmatprep.subr.bf16.mxu0 0
      %3820 = vmatpush2.bf16.msra.mxu0 0
      %3821 = vmatprep.subr.bf16.mxu0 0
      %3822 = vmatpush2.bf16.msra.mxu0 0
      %3823 = vmatprep.subr.bf16.mxu0 0
      %3824 = vmatpush2.bf16.msra.mxu0 0
      %3825 = vmatprep.subr.bf16.mxu0 0
      %3826 = vmatpush2.bf16.msra.mxu0 0
      %3827 = vmatprep.subr.bf16.mxu0 0
      %3828 = vmatpush2.bf16.msra.mxu0 0
      %3829 = vmatprep.subr.bf16.mxu0 0
      %3830 = vmatpush2.bf16.msra.mxu0 0
      %3831 = vmatprep.subr.bf16.mxu0 0
      %3832 = vmatpush2.bf16.msra.mxu0 0
      %3833 = vmatprep.subr.bf16.mxu0 0
      %3834 = vmatpush2.bf16.msra.mxu0 0
      %3835 = vmatprep.mubr.bf16.mxu0 0
      %3836 = vmatmul.mubr.bf16.gmra.mxu0 %v3732
      %v3837 = vpop.f32.mrf.mxu0
      %v3838 = vadd.f32 %v3754, %v3837
      %v3839 = vpop.f32.mrf.mxu0
      %v3840 = vpop.f32.mrf.mxu0
      %v3841 = vadd.f32 %v3754, %v3840
      %v3842 = vpop.f32.mrf.mxu0
      %3843 = vmatprep.mubr.bf16.mxu0 0
      %3844 = vmatmul.mubr.bf16.gmra.mxu0 %v3733
      %v3845 = vpop.f32.mrf.mxu0
      %v3846 = vadd.f32 %v3754, %v3845
      %v3847 = vpop.f32.mrf.mxu0
      %v3848 = vpop.f32.mrf.mxu0
      %v3849 = vadd.f32 %v3754, %v3848
      %v3850 = vpop.f32.mrf.mxu0
      %3851 = vdwg.mxu0
      %v3852 = vadd.f32 %v2756, %v3838
      %v3853 = vadd.f32 %v2757, %v3841
      %v3854 = vadd.f32 %v2758, %v3846
      %v3855 = vadd.f32 %v2759, %v3849
      %vm3856 = vcmp.ge.f32.partialorder %v3852, 0.0
      %vm3857 = vcmp.ge.f32.partialorder %v3853, 0.0
      %vm3858 = vcmp.ge.f32.partialorder %v3854, 0.0
      %vm3859 = vcmp.ge.f32.partialorder %v3855, 0.0
      %v3860 = vmul.f32 %v3852, 0.1
      %v3861 = vmul.f32 %v3853, 0.1
      %v3862 = vmul.f32 %v3854, 0.1
      %v3863 = vmul.f32 %v3855, 0.1
      %v3864 = vsel %vm3856, %v3852, %v3860
      %v3865 = vsel %vm3857, %v3853, %v3861
      %v3866 = vsel %vm3858, %v3854, %v3862
      %v3867 = vsel %vm3859, %v3855, %v3863
      %3868 = vst [vmem:[#allocation2 + $0x8] sm:$0xff] %v3864
      %3869 = vst [vmem:[#allocation2 + $0x10] sm:$0xff] %v3865
      %3870 = vst [vmem:[#allocation2 + $0x18] sm:$0xff] %v3866
      %3871 = vst [vmem:[#allocation2 + $0x20] sm:$0xff] %v3867
      %v3872 = vld [vmem:[#allocation2 + $0x2] sm:$0xff]
      %v3873 = vld [vmem:[#allocation2 + $0xa] sm:$0xff]
      %v3874 = vld [vmem:[#allocation2 + $0x12] sm:$0xff]
      %v3875 = vld [vmem:[#allocation2 + $0x1a] sm:$0xff]
      %v3876 = vld [vmem:[#allocation2 + $0x5] sm:$0xff]
      %v3877 = vld [vmem:[#allocation2 + $0xd] sm:$0xff]
      %v3878 = vld [vmem:[#allocation2 + $0x15] sm:$0xff]
      %v3879 = vld [vmem:[#allocation2 + $0x1d] sm:$0xff]
      %3880 = vrot.lane.b32.xlu0 %v3876, 8
      %v3881 = vpop.permute.xlu0 %3880
      %3882 = vrot.lane.b32.xlu0 %v3877, 8
      %v3883 = vpop.permute.xlu0 %3882
      %3884 = vrot.lane.b32.xlu0 %v3878, 8
      %v3885 = vpop.permute.xlu0 %3884
      %3886 = vrot.lane.b32.xlu0 %v3879, 8
      %v3887 = vpop.permute.xlu0 %3886
      %v3888 = vadd.f32 %v3872, %v3881
      %v3889 = vadd.f32 %v3873, %v3883
      %v3890 = vadd.f32 %v3874, %v3885
      %v3891 = vadd.f32 %v3875, %v3887
      %v3892 = vld [vmem:[#allocation2 + $0x8] sm:$0xff]
      %v3893 = vld [vmem:[#allocation2 + $0x10] sm:$0xff]
      %v3894 = vld [vmem:[#allocation2 + $0x18] sm:$0xff]
      %v3895 = vld [vmem:[#allocation2 + $0x20] sm:$0xff]
      %3896 = vrot.lane.b32.xlu0 %v3892, 16
      %v3897 = vpop.permute.xlu0 %3896
      %3898 = vrot.lane.b32.xlu0 %v3893, 16
      %v3899 = vpop.permute.xlu0 %3898
      %3900 = vrot.lane.b32.xlu0 %v3894, 16
      %v3901 = vpop.permute.xlu0 %3900
      %3902 = vrot.lane.b32.xlu0 %v3895, 16
      %v3903 = vpop.permute.xlu0 %3902
      %v3904 = vadd.f32 %v3888, %v3897
      %v3905 = vadd.f32 %v3889, %v3899
      %v3906 = vadd.f32 %v3890, %v3901
      %v3907 = vadd.f32 %v3891, %v3903
      %v3908 = vld [vmem:[#allocation2 + $0xb] sm:$0xff]
      %v3909 = vld [vmem:[#allocation2 + $0x13] sm:$0xff]
      %v3910 = vld [vmem:[#allocation2 + $0x1b] sm:$0xff]
      %v3911 = vld [vmem:[#allocation2 + $0x23] sm:$0xff]
      %3912 = vrot.lane.b32.xlu0 %v3908, 24
      %v3913 = vpop.permute.xlu0 %3912
      %3914 = vrot.lane.b32.xlu0 %v3909, 24
      %v3915 = vpop.permute.xlu0 %3914
      %3916 = vrot.lane.b32.xlu0 %v3910, 24
      %v3917 = vpop.permute.xlu0 %3916
      %3918 = vrot.lane.b32.xlu0 %v3911, 24
      %v3919 = vpop.permute.xlu0 %3918
      %v3920 = vadd.f32 %v3904, %v3913
      %v3921 = vadd.f32 %v3905, %v3915
      %v3922 = vadd.f32 %v3906, %v3917
      %v3923 = vadd.f32 %v3907, %v3919
      %v3924 = vld [vmem:[#allocation2 + $0xe] sm:$0xff]
      %v3925 = vld [vmem:[#allocation2 + $0x16] sm:$0xff]
      %v3926 = vld [vmem:[#allocation2 + $0x1e] sm:$0xff]
      %v3927 = vld [vmem:[#allocation2 + $0x26] sm:$0xff]
      %3928 = vrot.lane.b32.xlu0 %v3924, 32
      %v3929 = vpop.permute.xlu0 %3928
      %3930 = vrot.lane.b32.xlu0 %v3925, 32
      %v3931 = vpop.permute.xlu0 %3930
      %3932 = vrot.lane.b32.xlu0 %v3926, 32
      %v3933 = vpop.permute.xlu0 %3932
      %3934 = vrot.lane.b32.xlu0 %v3927, 32
      %v3935 = vpop.permute.xlu0 %3934
      %v3936 = vadd.f32 %v3920, %v3929
      %v3937 = vadd.f32 %v3921, %v3931
      %v3938 = vadd.f32 %v3922, %v3933
      %v3939 = vadd.f32 %v3923, %v3935
      %v3940 = vpack.c.bf16 %v3937, %v3936
      %v3941 = vpack.c.bf16 %v3939, %v3938
      %v3942 = vld [vmem:[%s1 + $0x6c0] sm:$0xf]
      %v3943 = vld [vmem:[%s1 + $0x6c4] sm:$0xf]
      %v3944 = vld [vmem:[%s1 + $0x6c8] sm:$0xf]
      %v3945 = vld [vmem:[%s1 + $0x6cc] sm:$0xf]
      %v3946 = vld [vmem:[%s1 + $0x6d0] sm:$0xf]
      %v3947 = vld [vmem:[%s1 + $0x6d4] sm:$0xf]
      %v3948 = vld [vmem:[%s1 + $0x6d8] sm:$0xf]
      %v3949 = vld [vmem:[%s1 + $0x6dc] sm:$0xf]
      %v3950 = vld [vmem:[%s1 + $0x6e0] sm:$0xf]
      %v3951 = vld [vmem:[%s1 + $0x6e4] sm:$0xf]
      %v3952 = vld [vmem:[%s1 + $0x6e8] sm:$0xf]
      %v3953 = vld [vmem:[%s1 + $0x6ec] sm:$0xf]
      %v3954 = vld [vmem:[%s1 + $0x6f0] sm:$0xf]
      %v3955 = vld [vmem:[%s1 + $0x6f4] sm:$0xf]
      %v3956 = vld [vmem:[%s1 + $0x6f8] sm:$0xf]
      %v3957 = vld [vmem:[%s1 + $0x6fc] sm:$0xf]
      %v3958 = vld [vmem:[%s2 + $0x12] sm:$0x1]
      %v3959 = vlaneseq
      %v3960 = vshrl.u32 %v3959, 7
      %v3961 = vsub.s32 0, %v3960
      %v3962 = vrot.slane %v3958, %v3961
      %v3979 = vunpack.c.l.b16 %v3942
      %v3980 = vunpack.c.l.b16 %v3943
      %v3981 = vunpack.c.l.b16 %v3944
      %v3982 = vunpack.c.l.b16 %v3945
      %v3983 = vunpack.c.l.b16 %v3946
      %v3984 = vunpack.c.l.b16 %v3947
      %v3985 = vunpack.c.l.b16 %v3948
      %v3986 = vunpack.c.l.b16 %v3949
      %v3987 = vunpack.c.l.b16 %v3950
      %v3988 = vunpack.c.l.b16 %v3951
      %v3989 = vunpack.c.l.b16 %v3952
      %v3990 = vunpack.c.l.b16 %v3953
      %v3991 = vunpack.c.l.b16 %v3954
      %v3992 = vunpack.c.l.b16 %v3955
      %v3993 = vunpack.c.l.b16 %v3956
      %v3994 = vunpack.c.l.b16 %v3957
      %v3995 = vpack.c.b16 %v3980, %v3979
      %v3996 = vpack.c.b16 %v3982, %v3981
      %v3997 = vpack.c.b16 %v3984, %v3983
      %v3998 = vpack.c.b16 %v3986, %v3985
      %v3999 = vpack.c.b16 %v3988, %v3987
      %v4000 = vpack.c.b16 %v3990, %v3989
      %v4001 = vpack.c.b16 %v3992, %v3991
      %v4002 = vpack.c.b16 %v3994, %v3993
      %4011 = vmatprep.subr.bf16.mxu0 0
      %4012 = vmatpush1.bf16.msra.mxu0 %v4002
      %4013 = vmatprep.subr.bf16.mxu0 0
      %4014 = vmatpush1.bf16.msra.mxu0 %v4001
      %4015 = vmatprep.subr.bf16.mxu0 0
      %4016 = vmatpush1.bf16.msra.mxu0 %v4000
      %4017 = vmatprep.subr.bf16.mxu0 0
      %4018 = vmatpush1.bf16.msra.mxu0 %v3999
      %4019 = vmatprep.subr.bf16.mxu0 0
      %4020 = vmatpush1.bf16.msra.mxu0 %v3998
      %4021 = vmatprep.subr.bf16.mxu0 0
      %4022 = vmatpush1.bf16.msra.mxu0 %v3997
      %4023 = vmatprep.subr.bf16.mxu0 0
      %4024 = vmatpush1.bf16.msra.mxu0 %v3996
      %4025 = vmatprep.subr.bf16.mxu0 0
      %4026 = vmatpush1.bf16.msra.mxu0 %v3995
      %4027 = vmatprep.subr.bf16.mxu0 0
      %4028 = vmatpush2.bf16.msra.mxu0 0
      %4029 = vmatprep.subr.bf16.mxu0 0
      %4030 = vmatpush2.bf16.msra.mxu0 0
      %4031 = vmatprep.subr.bf16.mxu0 0
      %4032 = vmatpush2.bf16.msra.mxu0 0
      %4033 = vmatprep.subr.bf16.mxu0 0
      %4034 = vmatpush2.bf16.msra.mxu0 0
      %4035 = vmatprep.subr.bf16.mxu0 0
      %4036 = vmatpush2.bf16.msra.mxu0 0
      %4037 = vmatprep.subr.bf16.mxu0 0
      %4038 = vmatpush2.bf16.msra.mxu0 0
      %4039 = vmatprep.subr.bf16.mxu0 0
      %4040 = vmatpush2.bf16.msra.mxu0 0
      %4041 = vmatprep.subr.bf16.mxu0 0
      %4042 = vmatpush2.bf16.msra.mxu0 0
      %4043 = vmatprep.mubr.bf16.mxu0 0
      %4044 = vmatmul.mubr.bf16.gmra.mxu0 %v3940
      %v4045 = vpop.f32.mrf.mxu0
      %v4046 = vadd.f32 %v3962, %v4045
      %v4047 = vpop.f32.mrf.mxu0
      %v4048 = vpop.f32.mrf.mxu0
      %v4049 = vadd.f32 %v3962, %v4048
      %v4050 = vpop.f32.mrf.mxu0
      %4051 = vmatprep.mubr.bf16.mxu0 0
      %4052 = vmatmul.mubr.bf16.gmra.mxu0 %v3941
      %v4053 = vpop.f32.mrf.mxu0
      %v4054 = vadd.f32 %v3962, %v4053
      %v4055 = vpop.f32.mrf.mxu0
      %v4056 = vpop.f32.mrf.mxu0
      %v4057 = vadd.f32 %v3962, %v4056
      %v4058 = vpop.f32.mrf.mxu0
      %4059 = vdwg.mxu0
      %vm4060 = vcmp.ge.f32.partialorder %v4046, 0.0
      %vm4061 = vcmp.ge.f32.partialorder %v4049, 0.0
      %vm4062 = vcmp.ge.f32.partialorder %v4054, 0.0
      %vm4063 = vcmp.ge.f32.partialorder %v4057, 0.0
      %v4064 = vmul.f32 %v4046, 0.1
      %v4065 = vmul.f32 %v4049, 0.1
      %v4066 = vmul.f32 %v4054, 0.1
      %v4067 = vmul.f32 %v4057, 0.1
      %v4068 = vsel %vm4060, %v4046, %v4064
      %v4069 = vsel %vm4061, %v4049, %v4065
      %v4070 = vsel %vm4062, %v4054, %v4066
      %v4071 = vsel %vm4063, %v4057, %v4067
      %4072 = vst [vmem:[#allocation2 + $0x8] sm:$0xff] %v4068
      %4073 = vst [vmem:[#allocation2 + $0x10] sm:$0xff] %v4069
      %4074 = vst [vmem:[#allocation2 + $0x18] sm:$0xff] %v4070
      %4075 = vst [vmem:[#allocation2 + $0x20] sm:$0xff] %v4071
      %v4076 = vld [vmem:[#allocation2 + $0x6] sm:$0xff]
      %v4077 = vld [vmem:[#allocation2 + $0xe] sm:$0xff]
      %v4078 = vld [vmem:[#allocation2 + $0x16] sm:$0xff]
      %v4079 = vld [vmem:[#allocation2 + $0x1e] sm:$0xff]
      %v4080 = vld [vmem:[#allocation2 + $0x7] sm:$0xff]
      %v4081 = vld [vmem:[#allocation2 + $0xf] sm:$0xff]
      %v4082 = vld [vmem:[#allocation2 + $0x17] sm:$0xff]
      %v4083 = vld [vmem:[#allocation2 + $0x1f] sm:$0xff]
      %4084 = vrot.lane.b32.xlu0 %v4080, 8
      %v4085 = vpop.permute.xlu0 %4084
      %4086 = vrot.lane.b32.xlu0 %v4081, 8
      %v4087 = vpop.permute.xlu0 %4086
      %4088 = vrot.lane.b32.xlu0 %v4082, 8
      %v4089 = vpop.permute.xlu0 %4088
      %4090 = vrot.lane.b32.xlu0 %v4083, 8
      %v4091 = vpop.permute.xlu0 %4090
      %v4092 = vadd.f32 %v4076, %v4085
      %v4093 = vadd.f32 %v4077, %v4087
      %v4094 = vadd.f32 %v4078, %v4089
      %v4095 = vadd.f32 %v4079, %v4091
      %v4096 = vld [vmem:[#allocation2 + $0x8] sm:$0xff]
      %v4097 = vld [vmem:[#allocation2 + $0x10] sm:$0xff]
      %v4098 = vld [vmem:[#allocation2 + $0x18] sm:$0xff]
      %v4099 = vld [vmem:[#allocation2 + $0x20] sm:$0xff]
      %4100 = vrot.lane.b32.xlu0 %v4096, 16
      %v4101 = vpop.permute.xlu0 %4100
      %4102 = vrot.lane.b32.xlu0 %v4097, 16
      %v4103 = vpop.permute.xlu0 %4102
      %4104 = vrot.lane.b32.xlu0 %v4098, 16
      %v4105 = vpop.permute.xlu0 %4104
      %4106 = vrot.lane.b32.xlu0 %v4099, 16
      %v4107 = vpop.permute.xlu0 %4106
      %v4108 = vadd.f32 %v4092, %v4101
      %v4109 = vadd.f32 %v4093, %v4103
      %v4110 = vadd.f32 %v4094, %v4105
      %v4111 = vadd.f32 %v4095, %v4107
      %v4112 = vld [vmem:[#allocation2 + $0x9] sm:$0xff]
      %v4113 = vld [vmem:[#allocation2 + $0x11] sm:$0xff]
      %v4114 = vld [vmem:[#allocation2 + $0x19] sm:$0xff]
      %v4115 = vld [vmem:[#allocation2 + $0x21] sm:$0xff]
      %4116 = vrot.lane.b32.xlu0 %v4112, 24
      %v4117 = vpop.permute.xlu0 %4116
      %4118 = vrot.lane.b32.xlu0 %v4113, 24
      %v4119 = vpop.permute.xlu0 %4118
      %4120 = vrot.lane.b32.xlu0 %v4114, 24
      %v4121 = vpop.permute.xlu0 %4120
      %4122 = vrot.lane.b32.xlu0 %v4115, 24
      %v4123 = vpop.permute.xlu0 %4122
      %v4124 = vadd.f32 %v4108, %v4117
      %v4125 = vadd.f32 %v4109, %v4119
      %v4126 = vadd.f32 %v4110, %v4121
      %v4127 = vadd.f32 %v4111, %v4123
      %v4128 = vld [vmem:[#allocation2 + $0xa] sm:$0xff]
      %v4129 = vld [vmem:[#allocation2 + $0x12] sm:$0xff]
      %v4130 = vld [vmem:[#allocation2 + $0x1a] sm:$0xff]
      %v4131 = vld [vmem:[#allocation2 + $0x22] sm:$0xff]
      %4132 = vrot.lane.b32.xlu0 %v4128, 32
      %v4133 = vpop.permute.xlu0 %4132
      %4134 = vrot.lane.b32.xlu0 %v4129, 32
      %v4135 = vpop.permute.xlu0 %4134
      %4136 = vrot.lane.b32.xlu0 %v4130, 32
      %v4137 = vpop.permute.xlu0 %4136
      %4138 = vrot.lane.b32.xlu0 %v4131, 32
      %v4139 = vpop.permute.xlu0 %4138
      %v4140 = vadd.f32 %v4124, %v4133
      %v4141 = vadd.f32 %v4125, %v4135
      %v4142 = vadd.f32 %v4126, %v4137
      %v4143 = vadd.f32 %v4127, %v4139
      %v4144 = vpack.c.bf16 %v4141, %v4140
      %v4145 = vpack.c.bf16 %v4143, %v4142
      %v4146 = vld [vmem:[%s1 + $0x700] sm:$0xf]
      %v4147 = vld [vmem:[%s1 + $0x704] sm:$0xf]
      %v4148 = vld [vmem:[%s1 + $0x708] sm:$0xf]
      %v4149 = vld [vmem:[%s1 + $0x70c] sm:$0xf]
      %v4150 = vld [vmem:[%s1 + $0x710] sm:$0xf]
      %v4151 = vld [vmem:[%s1 + $0x714] sm:$0xf]
      %v4152 = vld [vmem:[%s1 + $0x718] sm:$0xf]
      %v4153 = vld [vmem:[%s1 + $0x71c] sm:$0xf]
      %v4154 = vld [vmem:[%s1 + $0x720] sm:$0xf]
      %v4155 = vld [vmem:[%s1 + $0x724] sm:$0xf]
      %v4156 = vld [vmem:[%s1 + $0x728] sm:$0xf]
      %v4157 = vld [vmem:[%s1 + $0x72c] sm:$0xf]
      %v4158 = vld [vmem:[%s1 + $0x730] sm:$0xf]
      %v4159 = vld [vmem:[%s1 + $0x734] sm:$0xf]
      %v4160 = vld [vmem:[%s1 + $0x738] sm:$0xf]
      %v4161 = vld [vmem:[%s1 + $0x73c] sm:$0xf]
      %v4162 = vld [vmem:[%s2 + $0x13] sm:$0x1]
      %v4163 = vlaneseq
      %v4164 = vshrl.u32 %v4163, 7
      %v4165 = vsub.s32 0, %v4164
      %v4166 = vrot.slane %v4162, %v4165
      %v4183 = vunpack.c.l.b16 %v4146
      %v4184 = vunpack.c.l.b16 %v4147
      %v4185 = vunpack.c.l.b16 %v4148
      %v4186 = vunpack.c.l.b16 %v4149
      %v4187 = vunpack.c.l.b16 %v4150
      %v4188 = vunpack.c.l.b16 %v4151
      %v4189 = vunpack.c.l.b16 %v4152
      %v4190 = vunpack.c.l.b16 %v4153
      %v4191 = vunpack.c.l.b16 %v4154
      %v4192 = vunpack.c.l.b16 %v4155
      %v4193 = vunpack.c.l.b16 %v4156
      %v4194 = vunpack.c.l.b16 %v4157
      %v4195 = vunpack.c.l.b16 %v4158
      %v4196 = vunpack.c.l.b16 %v4159
      %v4197 = vunpack.c.l.b16 %v4160
      %v4198 = vunpack.c.l.b16 %v4161
      %v4199 = vpack.c.b16 %v4184, %v4183
      %v4200 = vpack.c.b16 %v4186, %v4185
      %v4201 = vpack.c.b16 %v4188, %v4187
      %v4202 = vpack.c.b16 %v4190, %v4189
      %v4203 = vpack.c.b16 %v4192, %v4191
      %v4204 = vpack.c.b16 %v4194, %v4193
      %v4205 = vpack.c.b16 %v4196, %v4195
      %v4206 = vpack.c.b16 %v4198, %v4197
      %4215 = vmatprep.subr.bf16.mxu0 0
      %4216 = vmatpush1.bf16.msra.mxu0 %v4206
      %4217 = vmatprep.subr.bf16.mxu0 0
      %4218 = vmatpush1.bf16.msra.mxu0 %v4205
      %4219 = vmatprep.subr.bf16.mxu0 0
      %4220 = vmatpush1.bf16.msra.mxu0 %v4204
      %4221 = vmatprep.subr.bf16.mxu0 0
      %4222 = vmatpush1.bf16.msra.mxu0 %v4203
      %4223 = vmatprep.subr.bf16.mxu0 0
      %4224 = vmatpush1.bf16.msra.mxu0 %v4202
      %4225 = vmatprep.subr.bf16.mxu0 0
      %4226 = vmatpush1.bf16.msra.mxu0 %v4201
      %4227 = vmatprep.subr.bf16.mxu0 0
      %4228 = vmatpush1.bf16.msra.mxu0 %v4200
      %4229 = vmatprep.subr.bf16.mxu0 0
      %4230 = vmatpush1.bf16.msra.mxu0 %v4199
      %4231 = vmatprep.subr.bf16.mxu0 0
      %4232 = vmatpush2.bf16.msra.mxu0 0
      %4233 = vmatprep.subr.bf16.mxu0 0
      %4234 = vmatpush2.bf16.msra.mxu0 0
      %4235 = vmatprep.subr.bf16.mxu0 0
      %4236 = vmatpush2.bf16.msra.mxu0 0
      %4237 = vmatprep.subr.bf16.mxu0 0
      %4238 = vmatpush2.bf16.msra.mxu0 0
      %4239 = vmatprep.subr.bf16.mxu0 0
      %4240 = vmatpush2.bf16.msra.mxu0 0
      %4241 = vmatprep.subr.bf16.mxu0 0
      %4242 = vmatpush2.bf16.msra.mxu0 0
      %4243 = vmatprep.subr.bf16.mxu0 0
      %4244 = vmatpush2.bf16.msra.mxu0 0
      %4245 = vmatprep.subr.bf16.mxu0 0
      %4246 = vmatpush2.bf16.msra.mxu0 0
      %4247 = vmatprep.mubr.bf16.mxu0 0
      %4248 = vmatmul.mubr.bf16.gmra.mxu0 %v4144
      %v4249 = vpop.f32.mrf.mxu0
      %v4250 = vadd.f32 %v4166, %v4249
      %v4251 = vpop.f32.mrf.mxu0
      %v4252 = vpop.f32.mrf.mxu0
      %v4253 = vadd.f32 %v4166, %v4252
      %v4254 = vpop.f32.mrf.mxu0
      %4255 = vmatprep.mubr.bf16.mxu0 0
      %4256 = vmatmul.mubr.bf16.gmra.mxu0 %v4145
      %v4257 = vpop.f32.mrf.mxu0
      %v4258 = vadd.f32 %v4166, %v4257
      %v4259 = vpop.f32.mrf.mxu0
      %v4260 = vpop.f32.mrf.mxu0
      %v4261 = vadd.f32 %v4166, %v4260
      %v4262 = vpop.f32.mrf.mxu0
      %4263 = vdwg.mxu0
      %v4264 = vadd.f32 %v3852, %v4250
      %v4265 = vadd.f32 %v3853, %v4253
      %v4266 = vadd.f32 %v3854, %v4258
      %v4267 = vadd.f32 %v3855, %v4261
      %v4268 = vadd.f32 %v3452, %v4264
      %v4269 = vadd.f32 %v3453, %v4265
      %v4270 = vadd.f32 %v3454, %v4266
      %v4271 = vadd.f32 %v3455, %v4267
      %v4272 = vmul.f32 %v4268, 0.5
      %v4273 = vmul.f32 %v4269, 0.5
      %v4274 = vmul.f32 %v4270, 0.5
      %v4275 = vmul.f32 %v4271, 0.5
      %vm4276 = vcmp.ge.f32.partialorder %v4272, 0.0
      %vm4277 = vcmp.ge.f32.partialorder %v4273, 0.0
      %vm4278 = vcmp.ge.f32.partialorder %v4274, 0.0
      %vm4279 = vcmp.ge.f32.partialorder %v4275, 0.0
      %v4280 = vmul.f32 %v4272, 0.1
      %v4281 = vmul.f32 %v4273, 0.1
      %v4282 = vmul.f32 %v4274, 0.1
      %v4283 = vmul.f32 %v4275, 0.1
      %v4284 = vsel %vm4276, %v4272, %v4280
      %v4285 = vsel %vm4277, %v4273, %v4281
      %v4286 = vsel %vm4278, %v4274, %v4282
      %v4287 = vsel %vm4279, %v4275, %v4283
      %4288 = vst [vmem:[#allocation2 + $0x8] sm:$0xff] %v4284
      %4289 = vst [vmem:[#allocation2 + $0x10] sm:$0xff] %v4285
      %4290 = vst [vmem:[#allocation2 + $0x18] sm:$0xff] %v4286
      %4291 = vst [vmem:[#allocation2 + $0x20] sm:$0xff] %v4287
      %v4292 = vld [vmem:[#allocation2 + $0x5] sm:$0xff]
      %v4293 = vld [vmem:[#allocation2 + $0xd] sm:$0xff]
      %v4294 = vld [vmem:[#allocation2 + $0x15] sm:$0xff]
      %v4295 = vld [vmem:[#allocation2 + $0x1d] sm:$0xff]
      %v4296 = vld [vmem:[#allocation2 + $0x6] sm:$0xff]
      %v4297 = vld [vmem:[#allocation2 + $0xe] sm:$0xff]
      %v4298 = vld [vmem:[#allocation2 + $0x16] sm:$0xff]
      %v4299 = vld [vmem:[#allocation2 + $0x1e] sm:$0xff]
      %4300 = vrot.lane.b32.xlu0 %v4296, 8
      %v4301 = vpop.permute.xlu0 %4300
      %4302 = vrot.lane.b32.xlu0 %v4297, 8
      %v4303 = vpop.permute.xlu0 %4302
      %4304 = vrot.lane.b32.xlu0 %v4298, 8
      %v4305 = vpop.permute.xlu0 %4304
      %4306 = vrot.lane.b32.xlu0 %v4299, 8
      %v4307 = vpop.permute.xlu0 %4306
      %v4308 = vadd.f32 %v4292, %v4301
      %v4309 = vadd.f32 %v4293, %v4303
      %v4310 = vadd.f32 %v4294, %v4305
      %v4311 = vadd.f32 %v4295, %v4307
      %v4312 = vld [vmem:[#allocation2 + $0x7] sm:$0xff]
      %v4313 = vld [vmem:[#allocation2 + $0xf] sm:$0xff]
      %v4314 = vld [vmem:[#allocation2 + $0x17] sm:$0xff]
      %v4315 = vld [vmem:[#allocation2 + $0x1f] sm:$0xff]
      %4316 = vrot.lane.b32.xlu0 %v4312, 16
      %v4317 = vpop.permute.xlu0 %4316
      %4318 = vrot.lane.b32.xlu0 %v4313, 16
      %v4319 = vpop.permute.xlu0 %4318
      %4320 = vrot.lane.b32.xlu0 %v4314, 16
      %v4321 = vpop.permute.xlu0 %4320
      %4322 = vrot.lane.b32.xlu0 %v4315, 16
      %v4323 = vpop.permute.xlu0 %4322
      %v4324 = vadd.f32 %v4308, %v4317
      %v4325 = vadd.f32 %v4309, %v4319
      %v4326 = vadd.f32 %v4310, %v4321
      %v4327 = vadd.f32 %v4311, %v4323
      %v4328 = vld [vmem:[#allocation2 + $0x8] sm:$0xff]
      %v4329 = vld [vmem:[#allocation2 + $0x10] sm:$0xff]
      %v4330 = vld [vmem:[#allocation2 + $0x18] sm:$0xff]
      %v4331 = vld [vmem:[#allocation2 + $0x20] sm:$0xff]
      %4332 = vrot.lane.b32.xlu0 %v4328, 24
      %v4333 = vpop.permute.xlu0 %4332
      %4334 = vrot.lane.b32.xlu0 %v4329, 24
      %v4335 = vpop.permute.xlu0 %4334
      %4336 = vrot.lane.b32.xlu0 %v4330, 24
      %v4337 = vpop.permute.xlu0 %4336
      %4338 = vrot.lane.b32.xlu0 %v4331, 24
      %v4339 = vpop.permute.xlu0 %4338
      %v4340 = vadd.f32 %v4324, %v4333
      %v4341 = vadd.f32 %v4325, %v4335
      %v4342 = vadd.f32 %v4326, %v4337
      %v4343 = vadd.f32 %v4327, %v4339
      %v4344 = vld [vmem:[#allocation2 + $0x9] sm:$0xff]
      %v4345 = vld [vmem:[#allocation2 + $0x11] sm:$0xff]
      %v4346 = vld [vmem:[#allocation2 + $0x19] sm:$0xff]
      %v4347 = vld [vmem:[#allocation2 + $0x21] sm:$0xff]
      %4348 = vrot.lane.b32.xlu0 %v4344, 32
      %v4349 = vpop.permute.xlu0 %4348
      %4350 = vrot.lane.b32.xlu0 %v4345, 32
      %v4351 = vpop.permute.xlu0 %4350
      %4352 = vrot.lane.b32.xlu0 %v4346, 32
      %v4353 = vpop.permute.xlu0 %4352
      %4354 = vrot.lane.b32.xlu0 %v4347, 32
      %v4355 = vpop.permute.xlu0 %4354
      %v4356 = vadd.f32 %v4340, %v4349
      %v4357 = vadd.f32 %v4341, %v4351
      %v4358 = vadd.f32 %v4342, %v4353
      %v4359 = vadd.f32 %v4343, %v4355
      %v4360 = vld [vmem:[#allocation2 + $0xa] sm:$0xff]
      %v4361 = vld [vmem:[#allocation2 + $0x12] sm:$0xff]
      %v4362 = vld [vmem:[#allocation2 + $0x1a] sm:$0xff]
      %v4363 = vld [vmem:[#allocation2 + $0x22] sm:$0xff]
      %4364 = vrot.lane.b32.xlu0 %v4360, 40
      %v4365 = vpop.permute.xlu0 %4364
      %4366 = vrot.lane.b32.xlu0 %v4361, 40
      %v4367 = vpop.permute.xlu0 %4366
      %4368 = vrot.lane.b32.xlu0 %v4362, 40
      %v4369 = vpop.permute.xlu0 %4368
      %4370 = vrot.lane.b32.xlu0 %v4363, 40
      %v4371 = vpop.permute.xlu0 %4370
      %v4372 = vadd.f32 %v4356, %v4365
      %v4373 = vadd.f32 %v4357, %v4367
      %v4374 = vadd.f32 %v4358, %v4369
      %v4375 = vadd.f32 %v4359, %v4371
      %v4376 = vld [vmem:[#allocation2 + $0xb] sm:$0xff]
      %v4377 = vld [vmem:[#allocation2 + $0x13] sm:$0xff]
      %v4378 = vld [vmem:[#allocation2 + $0x1b] sm:$0xff]
      %v4379 = vld [vmem:[#allocation2 + $0x23] sm:$0xff]
      %4380 = vrot.lane.b32.xlu0 %v4376, 48
      %v4381 = vpop.permute.xlu0 %4380
      %4382 = vrot.lane.b32.xlu0 %v4377, 48
      %v4383 = vpop.permute.xlu0 %4382
      %4384 = vrot.lane.b32.xlu0 %v4378, 48
      %v4385 = vpop.permute.xlu0 %4384
      %4386 = vrot.lane.b32.xlu0 %v4379, 48
      %v4387 = vpop.permute.xlu0 %4386
      %v4388 = vadd.f32 %v4372, %v4381
      %v4389 = vadd.f32 %v4373, %v4383
      %v4390 = vadd.f32 %v4374, %v4385
      %v4391 = vadd.f32 %v4375, %v4387
      %v4392 = vpack.c.bf16 %v4389, %v4388
      %v4393 = vpack.c.bf16 %v4391, %v4390
      %v4394 = vld [vmem:[%s1 + $0x740] sm:$0xf]
      %v4395 = vld [vmem:[%s1 + $0x744] sm:$0xf]
      %v4396 = vld [vmem:[%s1 + $0x748] sm:$0xf]
      %v4397 = vld [vmem:[%s1 + $0x74c] sm:$0xf]
      %v4398 = vld [vmem:[%s1 + $0x750] sm:$0xf]
      %v4399 = vld [vmem:[%s1 + $0x754] sm:$0xf]
      %v4400 = vld [vmem:[%s1 + $0x758] sm:$0xf]
      %v4401 = vld [vmem:[%s1 + $0x75c] sm:$0xf]
      %v4402 = vld [vmem:[%s1 + $0x760] sm:$0xf]
      %v4403 = vld [vmem:[%s1 + $0x764] sm:$0xf]
      %v4404 = vld [vmem:[%s1 + $0x768] sm:$0xf]
      %v4405 = vld [vmem:[%s1 + $0x76c] sm:$0xf]
      %v4406 = vld [vmem:[%s1 + $0x770] sm:$0xf]
      %v4407 = vld [vmem:[%s1 + $0x774] sm:$0xf]
      %v4408 = vld [vmem:[%s1 + $0x778] sm:$0xf]
      %v4409 = vld [vmem:[%s1 + $0x77c] sm:$0xf]
      %v4410 = vld [vmem:[%s2 + $0x14] sm:$0x1]
      %v4411 = vlaneseq
      %v4412 = vshrl.u32 %v4411, 7
      %v4413 = vsub.s32 0, %v4412
      %v4414 = vrot.slane %v4410, %v4413
      %v4431 = vunpack.c.l.b16 %v4394
      %v4432 = vunpack.c.l.b16 %v4395
      %v4433 = vunpack.c.l.b16 %v4396
      %v4434 = vunpack.c.l.b16 %v4397
      %v4435 = vunpack.c.l.b16 %v4398
      %v4436 = vunpack.c.l.b16 %v4399
      %v4437 = vunpack.c.l.b16 %v4400
      %v4438 = vunpack.c.l.b16 %v4401
      %v4439 = vunpack.c.l.b16 %v4402
      %v4440 = vunpack.c.l.b16 %v4403
      %v4441 = vunpack.c.l.b16 %v4404
      %v4442 = vunpack.c.l.b16 %v4405
      %v4443 = vunpack.c.l.b16 %v4406
      %v4444 = vunpack.c.l.b16 %v4407
      %v4445 = vunpack.c.l.b16 %v4408
      %v4446 = vunpack.c.l.b16 %v4409
      %v4447 = vpack.c.b16 %v4432, %v4431
      %v4448 = vpack.c.b16 %v4434, %v4433
      %v4449 = vpack.c.b16 %v4436, %v4435
      %v4450 = vpack.c.b16 %v4438, %v4437
      %v4451 = vpack.c.b16 %v4440, %v4439
      %v4452 = vpack.c.b16 %v4442, %v4441
      %v4453 = vpack.c.b16 %v4444, %v4443
      %v4454 = vpack.c.b16 %v4446, %v4445
      %4463 = vmatprep.subr.bf16.mxu0 0
      %4464 = vmatpush1.bf16.msra.mxu0 %v4454
      %4465 = vmatprep.subr.bf16.mxu0 0
      %4466 = vmatpush1.bf16.msra.mxu0 %v4453
      %4467 = vmatprep.subr.bf16.mxu0 0
      %4468 = vmatpush1.bf16.msra.mxu0 %v4452
      %4469 = vmatprep.subr.bf16.mxu0 0
      %4470 = vmatpush1.bf16.msra.mxu0 %v4451
      %4471 = vmatprep.subr.bf16.mxu0 0
      %4472 = vmatpush1.bf16.msra.mxu0 %v4450
      %4473 = vmatprep.subr.bf16.mxu0 0
      %4474 = vmatpush1.bf16.msra.mxu0 %v4449
      %4475 = vmatprep.subr.bf16.mxu0 0
      %4476 = vmatpush1.bf16.msra.mxu0 %v4448
      %4477 = vmatprep.subr.bf16.mxu0 0
      %4478 = vmatpush1.bf16.msra.mxu0 %v4447
      %4479 = vmatprep.subr.bf16.mxu0 0
      %4480 = vmatpush2.bf16.msra.mxu0 0
      %4481 = vmatprep.subr.bf16.mxu0 0
      %4482 = vmatpush2.bf16.msra.mxu0 0
      %4483 = vmatprep.subr.bf16.mxu0 0
      %4484 = vmatpush2.bf16.msra.mxu0 0
      %4485 = vmatprep.subr.bf16.mxu0 0
      %4486 = vmatpush2.bf16.msra.mxu0 0
      %4487 = vmatprep.subr.bf16.mxu0 0
      %4488 = vmatpush2.bf16.msra.mxu0 0
      %4489 = vmatprep.subr.bf16.mxu0 0
      %4490 = vmatpush2.bf16.msra.mxu0 0
      %4491 = vmatprep.subr.bf16.mxu0 0
      %4492 = vmatpush2.bf16.msra.mxu0 0
      %4493 = vmatprep.subr.bf16.mxu0 0
      %4494 = vmatpush2.bf16.msra.mxu0 0
      %4495 = vmatprep.mubr.bf16.mxu0 0
      %4496 = vmatmul.mubr.bf16.gmra.mxu0 %v4392
      %v4497 = vpop.f32.mrf.mxu0
      %v4498 = vadd.f32 %v4414, %v4497
      %v4499 = vpop.f32.mrf.mxu0
      %v4500 = vpop.f32.mrf.mxu0
      %v4501 = vadd.f32 %v4414, %v4500
      %v4502 = vpop.f32.mrf.mxu0
      %4503 = vmatprep.mubr.bf16.mxu0 0
      %4504 = vmatmul.mubr.bf16.gmra.mxu0 %v4393
      %v4505 = vpop.f32.mrf.mxu0
      %v4506 = vadd.f32 %v4414, %v4505
      %v4507 = vpop.f32.mrf.mxu0
      %v4508 = vpop.f32.mrf.mxu0
      %v4509 = vadd.f32 %v4414, %v4508
      %v4510 = vpop.f32.mrf.mxu0
      %4511 = vdwg.mxu0
      %v4512 = vtanh.pop %v4498
      %v4513 = vtanh.pop %v4501
      %v4514 = vtanh.pop %v4506
      %v4515 = vtanh.pop %v4509
      %4516 = vst [vmem:[%s170] sm:$0xff] %v4512
      %4517 = vst [vmem:[%s170 + $0x8] sm:$0xff] %v4513
      %4518 = vst [vmem:[%s170 + $0x10] sm:$0xff] %v4514
      %4519 = vst [vmem:[%s170 + $0x18] sm:$0xff] %v4515
      %p4520 = scmp.lt.s32.totalorder %s14, 1
      %s4521 = scalar_select %p4520, %s14, 1
      %s4522 = smul.addr %s4521, 4
      %s4523 = smul.addr %s4522, 8
      %s4524 = scalar_lea.vmem %s3, %s4523
      // Predicated region
      $region33: #{hifigan_vocoder_forward.1} parent=31 // pred_check
        %p4525 = pneg %p100
      $region34: #{hifigan_vocoder_forward.1} parent=31 // pred_check_branch
        %4527 = sbr.rel (%p4525) target = $region36
      $region35: #{hifigan_vocoder_forward.1} parent=31 // pred_region
        _
      $region36: #{hifigan_vocoder_forward.1} parent=31 // pred_fallthru
        _
    $region32: #{hifigan_vocoder_forward.1} parent=5 // pred_fallthru
      _
    %p4528 = scmp.le.s32.totalorder 2, %s9
    // Predicated region
    $region37: #{hifigan_vocoder_forward.1} parent=5 // pred_check
      %p4529 = pneg %p4528
    $region38: #{hifigan_vocoder_forward.1} parent=5 // pred_check_branch
      %4531 = sbr.rel (%p4529) target = $region40
    $region39: #{hifigan_vocoder_forward.1} parent=5 // pred_region
      %s4532 = ssub.s32 %s9, 2
      // Predicated region
      $region41: #{hifigan_vocoder_forward.1} parent=39 // pred_check
        %p4533 = pneg %p106
      $region42: #{hifigan_vocoder_forward.1} parent=39 // pred_check_branch
        %4535 = sbr.rel (%p4533) target = $region44
      $region43: #{hifigan_vocoder_forward.1} parent=39 // pred_region
        %p4536 = scmp.lt.s32.totalorder %s15, 1
        %s4537 = scalar_select %p4536, %s15, 1
        %s4538 = smul.addr %s4537, 4
        %s4539 = smul.addr %s4538, 8
        %s4540 = scalar_lea.vmem %s3, %s4539
      $region44: #{hifigan_vocoder_forward.1} parent=39 // pred_fallthru
        _
    $region40: #{hifigan_vocoder_forward.1} parent=5 // pred_fallthru
      _
  $region6: #{hifigan_vocoder_forward.1} parent=0 // loop_footer
    %s13 = sadd.s32 1, %s9
  $region7: #{hifigan_vocoder_forward.1} parent=0 // loop_footer_branch
    %8 = sbr.rel target = $region3
  $region8: #{hifigan_vocoder_forward.1} parent=0 // loop_exit
    _

</llo_original>
